<compile_context>
chip_gen: v7x
topology: tpu7x:2x2x1
jax: 0.10.0
libtpu: 0.0.40
codegen_flags: <defaults>
</compile_context>

<pallas_src>
import functools
import math

import jax
import jax.numpy as jnp
from jax.experimental import pallas as pl
from jax.experimental.pallas import tpu as pltpu

EPS = 1e-5  # torch.nn.BatchNorm1d default eps

# MXU matmul *inputs* run in bf16 (full-rate on v5e/v6e/v7x); accumulation stays f32 via
# preferred_element_type.  All VPU/EUP math (BN stats, rsqrt, softmax) stays f32.
MXU_INPUT_DTYPE = jnp.bfloat16


# ---------------------------------------------------------------------------
# helpers
# ---------------------------------------------------------------------------
def _mxu_dot(a, b):
    return jnp.dot(a.astype(MXU_INPUT_DTYPE), b.astype(MXU_INPUT_DTYPE),
                   preferred_element_type=jnp.float32)


def _physical_vmem_bytes():
    try:
        info = pltpu.get_tpu_info()
        cap = getattr(info, "vmem_capacity_bytes", None)
        if cap:
            return int(cap)
    except Exception:
        pass
    return 128 * 1024 * 1024


def _vmem_limit(*arrays):
    """Scoped-VMEM limit: 4x I/O footprint, clamped to [32 MiB, 75% of physical VMEM]
    (-> ~48 MiB on v7x, ~96 MiB on v5e/v6e)."""
    total = sum(math.prod(a.shape) * jnp.dtype(a.dtype).itemsize for a in arrays)
    cap = int(0.75 * _physical_vmem_bytes())
    return int(min(cap, max(32 * 1024 * 1024, 4 * total)))


def _row_tile(n, target):
    """Largest multiple-of-8 tile <= target dividing n, else n (the full dim)."""
    if n <= target:
        return n
    t = target - (target % 8)
    while t >= 8:
        if n % t == 0:
            return t
        t -= 8
    return n


def _split_rows(n, target=512):
    """Row tile preferring >=2 grid steps (v7x megacore) while staying sublane aligned."""
    return _row_tile(n, min(target, max(8, n // 2)))


def _split_lead(n, target=128):
    """Leading-dim (no 8/128 rule) tile preferring >=2 grid steps."""
    tgt = min(target, max(1, n // 2))
    if n <= tgt:
        return n
    for t in range(tgt, 0, -1):
        if n % t == 0:
            return t
    return n


def _cost(flops, bytes_accessed, transcendentals=0):
    return pl.CostEstimate(flops=int(flops), transcendentals=int(transcendentals),
                           bytes_accessed=int(bytes_accessed))


# ---------------------------------------------------------------------------
# K1: fused MLP (all Linear+BN+ReLU layers) + trans_bit projection, one kernel.
#     Training-mode BN couples the whole batch -> batch is one VMEM-resident block.
# ---------------------------------------------------------------------------
def _fused_mlp_transbit_kernel(n_layers, x_ref, *refs):
    *layer_refs, wtb_ref, o_ref = refs
    h = x_ref[...]
    for l in range(n_layers):
        w_ref, b_ref, g_ref, be_ref = layer_refs[4 * l: 4 * l + 4]
        y = _mxu_dot(h, w_ref[...]) + b_ref[...]
        # BatchNorm1d training mode: biased batch statistics per feature.
        mean = jnp.mean(y, axis=0, keepdims=True)
        var = jnp.mean(jnp.square(y - mean), axis=0, keepdims=True)
        scale = g_ref[...] * jax.lax.rsqrt(var + EPS)   # rsqrt -> EUP (free slot)
        shift = be_ref[...] - mean * scale
        h = jnp.maximum(y * scale + shift, 0.0)
        # TODO(synk): Dropout(p=0.5) applied as identity; running stats not updated.
    o_ref[...] = _mxu_dot(h, wtb_ref[...]).astype(o_ref.dtype)


def mlp_transbit(x_con, mlp_params, w_tb):
    B = x_con.shape[0]
    f_out = w_tb.shape[1]
    flat, flops = [], 0
    for (w, b, g, be) in mlp_params:
        flat += [w, b, g, be]
        flops += 2 * B * w.shape[0] * w.shape[1]
    flops += 2 * B * w_tb.shape[0] * w_tb.shape[1]
    args = (x_con, *flat, w_tb)
    io_bytes = sum(math.prod(a.shape) * 4 for a in args) + B * f_out * 4
    kernel = functools.partial(_fused_mlp_transbit_kernel, len(mlp_params))
    return pl.pallas_call(
        kernel,
        out_shape=jax.ShapeDtypeStruct((B, f_out), jnp.float32),
        compiler_params=pltpu.CompilerParams(vmem_limit_bytes=_vmem_limit(*args)),
        cost_estimate=_cost(flops, io_bytes,
                            transcendentals=sum(w.shape[1] for w, _, _, _ in mlp_params)),
    )(*args)


# ---------------------------------------------------------------------------
# K2: K/V/Q/residual projections, batch-row-tiled; four outputs written straight from VMEM
#     (no host-side column-slice copies; downstream head reshape is a free XLA bitcast).
# ---------------------------------------------------------------------------
def _qkvr_proj_kernel(x_ref, wk_ref, bk_ref, wv_ref, bv_ref, wq_ref, bq_ref,
                      wr_ref, br_ref, k_ref, v_ref, q_ref, r_ref):
    x = x_ref[...]
    k_ref[...] = (_mxu_dot(x, wk_ref[...]) + bk_ref[...]).astype(k_ref.dtype)
    v_ref[...] = (_mxu_dot(x, wv_ref[...]) + bv_ref[...]).astype(v_ref.dtype)
    q_ref[...] = (_mxu_dot(x, wq_ref[...]) + bq_ref[...]).astype(q_ref.dtype)
    r_ref[...] = (_mxu_dot(x, wr_ref[...]) + br_ref[...]).astype(r_ref.dtype)


def qkvr_proj(x2d, proj_params):
    M, E = x2d.shape
    HD = proj_params[0][0].shape[1]
    tm = _split_rows(M, 512)
    x_spec = pl.BlockSpec((tm, E), lambda i: (i, 0))
    w_spec = pl.BlockSpec((E, HD), lambda i: (0, 0))     # weights VMEM-resident
    b_spec = pl.BlockSpec((1, HD), lambda i: (0, 0))
    o_spec = pl.BlockSpec((tm, HD), lambda i: (i, 0))
    flat = []
    for (w, b) in proj_params:
        flat += [w, b]
    args = (x2d, *flat)
    out_sds = jax.ShapeDtypeStruct((M, HD), jnp.float32)
    return pl.pallas_call(
        _qkvr_proj_kernel,
        out_shape=(out_sds,) * 4,
        grid=(M // tm,),
        in_specs=[x_spec] + [w_spec, b_spec] * 4,
        out_specs=(o_spec,) * 4,
        compiler_params=pltpu.CompilerParams(
            dimension_semantics=("parallel",),
            vmem_limit_bytes=_vmem_limit(*args)),
        cost_estimate=_cost(8 * M * E * HD,
                            (M * E + 4 * (E * HD + HD + M * HD)) * 4),
    )(*args)


# ---------------------------------------------------------------------------
# K3: batched attention core + residual ReLU, tiled over the (B*H) group axis.
# ---------------------------------------------------------------------------
def _attention_kernel(scale, q_ref, k_ref, v_ref, r_ref, o_ref):
    q = q_ref[...].astype(MXU_INPUT_DTYPE)
    k = k_ref[...].astype(MXU_INPUT_DTYPE)
    s = jnp.einsum("gqd,gkd->gqk", q, k, preferred_element_type=jnp.float32) * scale
    s = s - jnp.max(s, axis=-1, keepdims=True)            # stable softmax
    p = jnp.exp(s)
    p = p * pl.reciprocal(jnp.sum(p, axis=-1, keepdims=True), approx=True)  # EUP divide
    # attention dropout has p=0.0 in the module -> exact identity
    ctx = jnp.einsum("gqk,gkd->gqd", p.astype(MXU_INPUT_DTYPE),
                     v_ref[...].astype(MXU_INPUT_DTYPE),
                     preferred_element_type=jnp.float32)
    o_ref[...] = jnp.maximum(r_ref[...] + ctx, 0.0).astype(o_ref.dtype)


def attention_core(q, k, v, r, scale):
    G, F, dk = q.shape
    tg = _split_lead(G, 128)
    spec = pl.BlockSpec((tg, F, dk), lambda i: (i, 0, 0))
    return pl.pallas_call(
        functools.partial(_attention_kernel, scale),
        out_shape=jax.ShapeDtypeStruct((G, F, dk), jnp.float32),
        grid=(G // tg,),
        in_specs=[spec, spec, spec, spec],
        out_specs=spec,
        compiler_params=pltpu.CompilerParams(
            dimension_semantics=("parallel",),
            vmem_limit_bytes=_vmem_limit(q, k, v, r)),
        cost_estimate=_cost(4 * G * F * F * dk, 5 * G * F * dk * 4,
                            transcendentals=G * F * F),
    )(q, k, v, r)


# ---------------------------------------------------------------------------
# K4: x_att = trans_vec(att_flat) + trans_bit(m_bit)  AND  x_emb_out = x_emb * x_att[...,None]
#     The broadcast of x_att across E is a 0/1 replication matmul (exact in f32), which
#     keeps everything lane-dense and avoids a lane->sublane relayout inside the kernel.
# ---------------------------------------------------------------------------
def _combine_scale_kernel(att_ref, wtv_ref, mbit_ref, xcon_ref, rep_ref,
                          xatt_ref, xout_ref):
    m_vec = _mxu_dot(att_ref[...], wtv_ref[...])
    x_att = mbit_ref[...] + m_vec                          # (tb, F)
    xatt_ref[...] = x_att.astype(xatt_ref.dtype)
    # x_att replicated across the E lanes of each field: one nonzero per column -> exact.
    x_rep = jnp.dot(x_att, rep_ref[...], preferred_element_type=jnp.float32)  # (tb, F*E)
    xout_ref[...] = (xcon_ref[...] * x_rep).astype(xout_ref.dtype)


def combine_scale(att_flat, w_tv, m_bit_t, x_con, rep):
    B, FHD = att_flat.shape
    F = w_tv.shape[1]
    FE = x_con.shape[1]
    tb = _split_rows(B, 256)
    args = (att_flat, w_tv, m_bit_t, x_con, rep)
    return pl.pallas_call(
        _combine_scale_kernel,
        out_shape=(jax.ShapeDtypeStruct((B, F), jnp.float32),
                   jax.ShapeDtypeStruct((B, FE), jnp.float32)),
        grid=(B // tb,),
        in_specs=[pl.BlockSpec((tb, FHD), lambda i: (i, 0)),
                  pl.BlockSpec((FHD, F), lambda i: (0, 0)),   # trans_vec weight resident
                  pl.BlockSpec((tb, F), lambda i: (i, 0)),
                  pl.BlockSpec((tb, FE), lambda i: (i, 0)),
                  pl.BlockSpec((F, FE), lambda i: (0, 0))],   # replication matrix resident
        out_specs=(pl.BlockSpec((tb, F), lambda i: (i, 0)),
                   pl.BlockSpec((tb, FE), lambda i: (i, 0))),
        compiler_params=pltpu.CompilerParams(
            dimension_semantics=("parallel",),
            vmem_limit_bytes=_vmem_limit(*args)),
        cost_estimate=_cost(2 * B * FHD * F + 2 * B * F * FE,
                            (B * FHD + FHD * F + 2 * B * F + 2 * B * FE + F * FE) * 4),
    )(*args)


# ---------------------------------------------------------------------------
# Full DualFENLayer forward
# ---------------------------------------------------------------------------
@functools.partial(jax.jit, static_argnames=("num_heads",))
def dualfen_forward(params, x_emb, *, num_heads):
    B, F, E = x_emb.shape
    HD = params["proj"][0][0].shape[1]
    dk = HD // num_heads
    # reference module quirk: scale = (dim_per_head // num_heads) ** (-0.5)
    scale = float(dk // num_heads) ** (-0.5)

    x_con = x_emb.reshape(B, F * E)                        # free row-major reshape

    # ---- bit-wise path: fused MLP + trans_bit (one kernel) -------------------
    m_bit_t = mlp_transbit(x_con, params["mlp"], params["w_tb"])          # (B, F)

    # ---- vector-wise path: multi-head attention ------------------------------
    k_p, v_p, q_p, r_p = qkvr_proj(x_con.reshape(B * F, E), params["proj"])
    # exact replica of the PyTorch `.view(B*num_heads, -1, dk)` (raw row-major reshape,
    # free at the XLA boundary)
    to_heads = lambda t: t.reshape(B * num_heads, F, dk)
    att_heads = attention_core(to_heads(q_p), to_heads(k_p), to_heads(v_p),
                               to_heads(r_p), scale)                      # (B*H, F, dk)
    att_flat = att_heads.reshape(B, F * HD)                               # free reshape

    # ---- combine + final broadcast-scale, fused ------------------------------
    rep = jnp.repeat(jnp.eye(F, dtype=jnp.float32), E, axis=1)            # (F, F*E) 0/1
    x_att, x_out2d = combine_scale(att_flat, params["w_tv"], m_bit_t, x_con, rep)
    return x_out2d.reshape(B, F, E), x_att


# ---------------------------------------------------------------------------
# Parameter construction (deterministic, mirrors the PyTorch __init__)
# ---------------------------------------------------------------------------
def _xavier(k, fan_in, fan_out):
    bound = math.sqrt(6.0 / (fan_in + fan_out))
    return jax.random.uniform(k, (fan_in, fan_out), jnp.float32, -bound, bound)


def _linear_bias(k, fan_in, fan_out):
    bound = 1.0 / math.sqrt(fan_in)
    return jax.random.uniform(k, (1, fan_out), jnp.float32, -bound, bound)


def init_dualfen_params(key, field_length, embed_dim, embed_dims, att_size, num_heads):
    input_dim = field_length * embed_dim
    hd = att_size * num_heads
    keys = iter(jax.random.split(key, 4 * len(embed_dims) + 16))
    mlp = []
    d_in = input_dim
    for d_out in embed_dims:
        w = _xavier(next(keys), d_in, d_out)              # stored (in, out): y = x @ w + b
        b = _linear_bias(next(keys), d_in, d_out)
        gamma = jnp.ones((1, d_out), jnp.float32)         # BatchNorm1d affine defaults
        beta = jnp.zeros((1, d_out), jnp.float32)
        mlp.append((w, b, gamma, beta))
        d_in = d_out
    # linear_k / linear_v / linear_q / linear_residual
    proj = tuple((_xavier(next(keys), embed_dim, hd), _linear_bias(next(keys), embed_dim, hd))
                 for _ in range(4))
    w_tv = _xavier(next(keys), hd * field_length, field_length)   # trans_vec, bias=False
    w_tb = _xavier(next(keys), embed_dims[-1], field_length)      # trans_bit, bias=False
    return {"mlp": mlp, "proj": proj, "w_tv": w_tv, "w_tb": w_tb}


# ---------------------------------------------------------------------------
# Pure-JAX reference (same math, same MXU-input casting convention, no Pallas)
# ---------------------------------------------------------------------------
def dualfen_reference(params, x_emb, num_heads):
    def mm(a, b):
        return jnp.dot(a.astype(MXU_INPUT_DTYPE), b.astype(MXU_INPUT_DTYPE),
                       preferred_element_type=jnp.float32)

    B, F, E = x_emb.shape
    HD = params["proj"][0][0].shape[1]
    dk = HD // num_heads

    h = x_emb.reshape(B, F * E)
    for (w, b, g, be) in params["mlp"]:
        y = mm(h, w) + b
        mean = jnp.mean(y, axis=0, keepdims=True)
        var = jnp.mean(jnp.square(y - mean), axis=0, keepdims=True)
        h = jnp.maximum((y - mean) * jax.lax.rsqrt(var + EPS) * g + be, 0.0)
    m_bit = mm(h, params["w_tb"])

    x2d = x_emb.reshape(B * F, E)
    k_p, v_p, q_p, r_p = (mm(x2d, w) + b for (w, b) in params["proj"])
    qh = q_p.reshape(B * num_heads, F, dk)
    kh = k_p.reshape(B * num_heads, F, dk)
    vh = v_p.reshape(B * num_heads, F, dk)
    rh = r_p.reshape(B * num_heads, F, dk)
    scale = float(dk // num_heads) ** (-0.5)
    s = jnp.einsum("gqd,gkd->gqk", qh.astype(MXU_INPUT_DTYPE), kh.astype(MXU_INPUT_DTYPE),
                   preferred_element_type=jnp.float32) * scale
    att = jax.nn.softmax(s, axis=2)
    ctx = jnp.einsum("gqk,gkd->gqd", att.astype(MXU_INPUT_DTYPE), vh.astype(MXU_INPUT_DTYPE),
                     preferred_element_type=jnp.float32)
    x_att2 = jnp.maximum(rh + ctx, 0.0)
    m_vec = mm(x_att2.reshape(B, F * HD), params["w_tv"])
    x_att = m_bit + m_vec
    return x_emb * x_att[:, :, None], x_att


if __name__ == "__main__":
    key = jax.random.PRNGKey(0)
    k_param, k_x = jax.random.split(key)

    batch, field_length, embed_dim = 8, 4, 16
    embed_dims = (32, 32, 32)
    att_size, num_heads = 16, 4          # dk // num_heads = 4 > 0 (module's quirky scale)

    params = init_dualfen_params(k_param, field_length, embed_dim,
                                 embed_dims, att_size, num_heads)
    x_emb = jax.random.normal(k_x, (batch, field_length, embed_dim), jnp.float32)

    x_emb_out, x_att = dualfen_forward(params, x_emb, num_heads=num_heads)
    x_emb_out = jax.block_until_ready(x_emb_out)
    x_att = jax.block_until_ready(x_att)

    ref_emb, ref_att = dualfen_reference(params, x_emb, num_heads)

    assert x_emb_out.shape == (batch, field_length, embed_dim), x_emb_out.shape
    assert x_att.shape == (batch, field_length), x_att.shape
    # bf16-input / f32-accumulate matmuls on both sides; approx-reciprocal softmax in the
    # kernel -> small, bounded deviation.
    assert jnp.allclose(x_att, ref_att, atol=2e-2, rtol=2e-2), "x_att mismatch vs reference"
    assert jnp.allclose(x_emb_out, ref_emb, atol=2e-2, rtol=2e-2), "x_emb mismatch vs reference"

    print("KERNEL_OK")
</pallas_src>

<mosaic_0001>
module attributes {stable_mosaic.version = 11 : i64} {
  func.func @_attention_kernel(%arg0: i32, %arg1: memref<16x4x16xf32, #tpu.memory_space<vmem>>, %arg2: memref<16x4x16xf32, #tpu.memory_space<vmem>>, %arg3: memref<16x4x16xf32, #tpu.memory_space<vmem>>, %arg4: memref<16x4x16xf32, #tpu.memory_space<vmem>>, %arg5: memref<16x4x16xf32, #tpu.memory_space<vmem>>) attributes {dimension_semantics = [#tpu.dimension_semantics<parallel>], iteration_bounds = array<i64: 2>, scalar_prefetch = 0 : i64, scratch_operands = 0 : i64, tpu.core_type = #tpu.core_type<tc>, window_params = [{transform_indices = @transform_0, window_bounds = array<i64: 16, 4, 16>}, {transform_indices = @transform_1, window_bounds = array<i64: 16, 4, 16>}, {transform_indices = @transform_2, window_bounds = array<i64: 16, 4, 16>}, {transform_indices = @transform_3, window_bounds = array<i64: 16, 4, 16>}, {transform_indices = @transform_4, window_bounds = array<i64: 16, 4, 16>}]} {
    %c0 = arith.constant 0 : index
    %c0_0 = arith.constant 0 : index
    %c0_1 = arith.constant 0 : index
    %0 = vector.load %arg1[%c0, %c0_0, %c0_1] : memref<16x4x16xf32, #tpu.memory_space<vmem>>, vector<16x4x16xf32>
    %1 = arith.truncf %0 : vector<16x4x16xf32> to vector<16x4x16xbf16>
    %c0_2 = arith.constant 0 : index
    %c0_3 = arith.constant 0 : index
    %c0_4 = arith.constant 0 : index
    %2 = vector.load %arg2[%c0_2, %c0_3, %c0_4] : memref<16x4x16xf32, #tpu.memory_space<vmem>>, vector<16x4x16xf32>
    %3 = arith.truncf %2 : vector<16x4x16xf32> to vector<16x4x16xbf16>
    "tpu.trace_start"() <{level = 10 : i32, message = "gqd,gkd->gqk"}> : () -> ()
    %cst = arith.constant dense<0.000000e+00> : vector<16x4x4xf32>
    %4 = tpu.matmul %1, %3, %cst {dimension_numbers = #tpu.dot_dimension_numbers<[2], [2], [1], [1], [0, 0, 0, 1, 1, 1], [0], [0]>} : vector<16x4x16xbf16>, vector<16x4x16xbf16>, vector<16x4x4xf32> -> vector<16x4x4xf32>
    "tpu.trace_stop"() : () -> ()
    %cst_5 = arith.constant 5.000000e-01 : f32
    %5 = vector.broadcast %cst_5 : f32 to vector<16x4x4xf32>
    %6 = arith.mulf %4, %5 : vector<16x4x4xf32>
    %cst_6 = arith.constant dense<0xFF800000> : vector<16x4xf32>
    %7 = vector.multi_reduction <maximumf>, %6, %cst_6 [2] : vector<16x4x4xf32> to vector<16x4xf32>
    %8 = vector.shape_cast %7 : vector<16x4xf32> to vector<16x4x1xf32>
    %9 = vector.broadcast %8 : vector<16x4x1xf32> to vector<16x4x4xf32>
    %10 = arith.subf %6, %9 : vector<16x4x4xf32>
    %11 = math.exp %10 : vector<16x4x4xf32>
    %cst_7 = arith.constant dense<0.000000e+00> : vector<16x4xf32>
    %12 = vector.multi_reduction <add>, %11, %cst_7 [2] : vector<16x4x4xf32> to vector<16x4xf32>
    %13 = vector.shape_cast %12 : vector<16x4xf32> to vector<16x4x1xf32>
    %14 = tpu.reciprocal %13 {approx = true} : vector<16x4x1xf32> -> vector<16x4x1xf32>
    %15 = vector.broadcast %14 : vector<16x4x1xf32> to vector<16x4x4xf32>
    %16 = arith.mulf %11, %15 : vector<16x4x4xf32>
    %17 = arith.truncf %16 : vector<16x4x4xf32> to vector<16x4x4xbf16>
    %c0_8 = arith.constant 0 : index
    %c0_9 = arith.constant 0 : index
    %c0_10 = arith.constant 0 : index
    %18 = vector.load %arg3[%c0_8, %c0_9, %c0_10] : memref<16x4x16xf32, #tpu.memory_space<vmem>>, vector<16x4x16xf32>
    %19 = arith.truncf %18 : vector<16x4x16xf32> to vector<16x4x16xbf16>
    "tpu.trace_start"() <{level = 10 : i32, message = "gqk,gkd->gqd"}> : () -> ()
    %cst_11 = arith.constant dense<0.000000e+00> : vector<16x4x16xf32>
    %20 = tpu.matmul %17, %19, %cst_11 {dimension_numbers = #tpu.dot_dimension_numbers<[2], [1], [1], [2], [0, 0, 0, 1, 1, 2], [0], [0]>} : vector<16x4x4xbf16>, vector<16x4x16xbf16>, vector<16x4x16xf32> -> vector<16x4x16xf32>
    "tpu.trace_stop"() : () -> ()
    %c0_12 = arith.constant 0 : index
    %c0_13 = arith.constant 0 : index
    %c0_14 = arith.constant 0 : index
    %21 = vector.load %arg4[%c0_12, %c0_13, %c0_14] : memref<16x4x16xf32, #tpu.memory_space<vmem>>, vector<16x4x16xf32>
    %22 = arith.addf %21, %20 : vector<16x4x16xf32>
    %cst_15 = arith.constant 0.000000e+00 : f32
    %23 = vector.broadcast %cst_15 : f32 to vector<16x4x16xf32>
    %24 = arith.maximumf %22, %23 : vector<16x4x16xf32>
    %c0_16 = arith.constant 0 : index
    %c0_17 = arith.constant 0 : index
    %c0_18 = arith.constant 0 : index
    %25 = vector.load %arg5[%c0_16, %c0_17, %c0_18] : memref<16x4x16xf32, #tpu.memory_space<vmem>>, vector<16x4x16xf32>
    tpu.vector_store %arg5[%c0_16, %c0_17, %c0_18], %24 {strides = array<i32>} : memref<16x4x16xf32, #tpu.memory_space<vmem>>, vector<16x4x16xf32>,
    return
  }
  func.func @transform_0(%arg0: i32) -> (i32, i32, i32) {
    %c0_i32 = arith.constant 0 : i32
    %c0_i32_0 = arith.constant 0 : i32
    %c0_i32_1 = arith.constant 0 : i32
    return %arg0, %c0_i32, %c0_i32_0 : i32, i32, i32
  }
  func.func @transform_1(%arg0: i32) -> (i32, i32, i32) {
    %c0_i32 = arith.constant 0 : i32
    %c0_i32_0 = arith.constant 0 : i32
    %c0_i32_1 = arith.constant 0 : i32
    return %arg0, %c0_i32, %c0_i32_0 : i32, i32, i32
  }
  func.func @transform_2(%arg0: i32) -> (i32, i32, i32) {
    %c0_i32 = arith.constant 0 : i32
    %c0_i32_0 = arith.constant 0 : i32
    %c0_i32_1 = arith.constant 0 : i32
    return %arg0, %c0_i32, %c0_i32_0 : i32, i32, i32
  }
  func.func @transform_3(%arg0: i32) -> (i32, i32, i32) {
    %c0_i32 = arith.constant 0 : i32
    %c0_i32_0 = arith.constant 0 : i32
    %c0_i32_1 = arith.constant 0 : i32
    return %arg0, %c0_i32, %c0_i32_0 : i32, i32, i32
  }
  func.func @transform_4(%arg0: i32) -> (i32, i32, i32) {
    %c0_i32 = arith.constant 0 : i32
    %c0_i32_0 = arith.constant 0 : i32
    %c0_i32_1 = arith.constant 0 : i32
    return %arg0, %c0_i32, %c0_i32_0 : i32, i32, i32
  }
}

module attributes {stable_mosaic.version = 11 : i64} {
  func.func @_qkvr_proj_kernel(%arg0: i32, %arg1: memref<16x16xf32, #tpu.memory_space<vmem>>, %arg2: memref<16x64xf32, #tpu.memory_space<vmem>>, %arg3: memref<1x64xf32, #tpu.memory_space<vmem>>, %arg4: memref<16x64xf32, #tpu.memory_space<vmem>>, %arg5: memref<1x64xf32, #tpu.memory_space<vmem>>, %arg6: memref<16x64xf32, #tpu.memory_space<vmem>>, %arg7: memref<1x64xf32, #tpu.memory_space<vmem>>, %arg8: memref<16x64xf32, #tpu.memory_space<vmem>>, %arg9: memref<1x64xf32, #tpu.memory_space<vmem>>, %arg10: memref<16x64xf32, #tpu.memory_space<vmem>>, %arg11: memref<16x64xf32, #tpu.memory_space<vmem>>, %arg12: memref<16x64xf32, #tpu.memory_space<vmem>>, %arg13: memref<16x64xf32, #tpu.memory_space<vmem>>) attributes {dimension_semantics = [#tpu.dimension_semantics<parallel>], iteration_bounds = array<i64: 2>, scalar_prefetch = 0 : i64, scratch_operands = 0 : i64, tpu.core_type = #tpu.core_type<tc>, window_params = [{transform_indices = @transform_0, window_bounds = array<i64: 16, 16>}, {pipeline_mode = #tpu.pipeline_mode<synchronous>, transform_indices = @transform_1, window_bounds = array<i64: 16, 64>}, {pipeline_mode = #tpu.pipeline_mode<synchronous>, transform_indices = @transform_2, window_bounds = array<i64: 1, 64>}, {pipeline_mode = #tpu.pipeline_mode<synchronous>, transform_indices = @transform_3, window_bounds = array<i64: 16, 64>}, {pipeline_mode = #tpu.pipeline_mode<synchronous>, transform_indices = @transform_4, window_bounds = array<i64: 1, 64>}, {pipeline_mode = #tpu.pipeline_mode<synchronous>, transform_indices = @transform_5, window_bounds = array<i64: 16, 64>}, {pipeline_mode = #tpu.pipeline_mode<synchronous>, transform_indices = @transform_6, window_bounds = array<i64: 1, 64>}, {pipeline_mode = #tpu.pipeline_mode<synchronous>, transform_indices = @transform_7, window_bounds = array<i64: 16, 64>}, {pipeline_mode = #tpu.pipeline_mode<synchronous>, transform_indices = @transform_8, window_bounds = array<i64: 1, 64>}, {transform_indices = @transform_9, window_bounds = array<i64: 16, 64>}, {transform_indices = @transform_10, window_bounds = array<i64: 16, 64>}, {transform_indices = @transform_11, window_bounds = array<i64: 16, 64>}, {transform_indices = @transform_12, window_bounds = array<i64: 16, 64>}]} {
    %c0 = arith.constant 0 : index
    %c0_0 = arith.constant 0 : index
    %0 = vector.load %arg1[%c0, %c0_0] : memref<16x16xf32, #tpu.memory_space<vmem>>, vector<16x16xf32>
    %c0_1 = arith.constant 0 : index
    %c0_2 = arith.constant 0 : index
    %1 = vector.load %arg2[%c0_1, %c0_2] : memref<16x64xf32, #tpu.memory_space<vmem>>, vector<16x64xf32>
    %2 = arith.truncf %0 : vector<16x16xf32> to vector<16x16xbf16>
    %3 = arith.truncf %1 : vector<16x64xf32> to vector<16x64xbf16>
    %cst = arith.constant dense<0.000000e+00> : vector<16x64xf32>
    %4 = tpu.matmul %2, %3, %cst {dimension_numbers = #tpu.dot_dimension_numbers<[1], [0], [0], [1], [0, 0, 1, 1], [], []>} : vector<16x16xbf16>, vector<16x64xbf16>, vector<16x64xf32> -> vector<16x64xf32>
    %c0_3 = arith.constant 0 : index
    %c0_4 = arith.constant 0 : index
    %5 = vector.load %arg3[%c0_3, %c0_4] : memref<1x64xf32, #tpu.memory_space<vmem>>, vector<1x64xf32>
    %6 = vector.broadcast %5 : vector<1x64xf32> to vector<16x64xf32>
    %7 = arith.addf %4, %6 : vector<16x64xf32>
    %c0_5 = arith.constant 0 : index
    %c0_6 = arith.constant 0 : index
    %8 = vector.load %arg10[%c0_5, %c0_6] : memref<16x64xf32, #tpu.memory_space<vmem>>, vector<16x64xf32>
    tpu.vector_store %arg10[%c0_5, %c0_6], %7 {strides = array<i32>} : memref<16x64xf32, #tpu.memory_space<vmem>>, vector<16x64xf32>,
    %c0_7 = arith.constant 0 : index
    %c0_8 = arith.constant 0 : index
    %9 = vector.load %arg4[%c0_7, %c0_8] : memref<16x64xf32, #tpu.memory_space<vmem>>, vector<16x64xf32>
    %10 = arith.truncf %0 : vector<16x16xf32> to vector<16x16xbf16>
    %11 = arith.truncf %9 : vector<16x64xf32> to vector<16x64xbf16>
    %cst_9 = arith.constant dense<0.000000e+00> : vector<16x64xf32>
    %12 = tpu.matmul %10, %11, %cst_9 {dimension_numbers = #tpu.dot_dimension_numbers<[1], [0], [0], [1], [0, 0, 1, 1], [], []>} : vector<16x16xbf16>, vector<16x64xbf16>, vector<16x64xf32> -> vector<16x64xf32>
    %c0_10 = arith.constant 0 : index
    %c0_11 = arith.constant 0 : index
    %13 = vector.load %arg5[%c0_10, %c0_11] : memref<1x64xf32, #tpu.memory_space<vmem>>, vector<1x64xf32>
    %14 = vector.broadcast %13 : vector<1x64xf32> to vector<16x64xf32>
    %15 = arith.addf %12, %14 : vector<16x64xf32>
    %c0_12 = arith.constant 0 : index
    %c0_13 = arith.constant 0 : index
    %16 = vector.load %arg11[%c0_12, %c0_13] : memref<16x64xf32, #tpu.memory_space<vmem>>, vector<16x64xf32>
    tpu.vector_store %arg11[%c0_12, %c0_13], %15 {strides = array<i32>} : memref<16x64xf32, #tpu.memory_space<vmem>>, vector<16x64xf32>,
    %c0_14 = arith.constant 0 : index
    %c0_15 = arith.constant 0 : index
    %17 = vector.load %arg6[%c0_14, %c0_15] : memref<16x64xf32, #tpu.memory_space<vmem>>, vector<16x64xf32>
    %18 = arith.truncf %0 : vector<16x16xf32> to vector<16x16xbf16>
    %19 = arith.truncf %17 : vector<16x64xf32> to vector<16x64xbf16>
    %cst_16 = arith.constant dense<0.000000e+00> : vector<16x64xf32>
    %20 = tpu.matmul %18, %19, %cst_16 {dimension_numbers = #tpu.dot_dimension_numbers<[1], [0], [0], [1], [0, 0, 1, 1], [], []>} : vector<16x16xbf16>, vector<16x64xbf16>, vector<16x64xf32> -> vector<16x64xf32>
    %c0_17 = arith.constant 0 : index
    %c0_18 = arith.constant 0 : index
    %21 = vector.load %arg7[%c0_17, %c0_18] : memref<1x64xf32, #tpu.memory_space<vmem>>, vector<1x64xf32>
    %22 = vector.broadcast %21 : vector<1x64xf32> to vector<16x64xf32>
    %23 = arith.addf %20, %22 : vector<16x64xf32>
    %c0_19 = arith.constant 0 : index
    %c0_20 = arith.constant 0 : index
    %24 = vector.load %arg12[%c0_19, %c0_20] : memref<16x64xf32, #tpu.memory_space<vmem>>, vector<16x64xf32>
    tpu.vector_store %arg12[%c0_19, %c0_20], %23 {strides = array<i32>} : memref<16x64xf32, #tpu.memory_space<vmem>>, vector<16x64xf32>,
    %c0_21 = arith.constant 0 : index
    %c0_22 = arith.constant 0 : index
    %25 = vector.load %arg8[%c0_21, %c0_22] : memref<16x64xf32, #tpu.memory_space<vmem>>, vector<16x64xf32>
    %26 = arith.truncf %0 : vector<16x16xf32> to vector<16x16xbf16>
    %27 = arith.truncf %25 : vector<16x64xf32> to vector<16x64xbf16>
    %cst_23 = arith.constant dense<0.000000e+00> : vector<16x64xf32>
    %28 = tpu.matmul %26, %27, %cst_23 {dimension_numbers = #tpu.dot_dimension_numbers<[1], [0], [0], [1], [0, 0, 1, 1], [], []>} : vector<16x16xbf16>, vector<16x64xbf16>, vector<16x64xf32> -> vector<16x64xf32>
    %c0_24 = arith.constant 0 : index
    %c0_25 = arith.constant 0 : index
    %29 = vector.load %arg9[%c0_24, %c0_25] : memref<1x64xf32, #tpu.memory_space<vmem>>, vector<1x64xf32>
    %30 = vector.broadcast %29 : vector<1x64xf32> to vector<16x64xf32>
    %31 = arith.addf %28, %30 : vector<16x64xf32>
    %c0_26 = arith.constant 0 : index
    %c0_27 = arith.constant 0 : index
    %32 = vector.load %arg13[%c0_26, %c0_27] : memref<16x64xf32, #tpu.memory_space<vmem>>, vector<16x64xf32>
    tpu.vector_store %arg13[%c0_26, %c0_27], %31 {strides = array<i32>} : memref<16x64xf32, #tpu.memory_space<vmem>>, vector<16x64xf32>,
    return
  }
  func.func @transform_0(%arg0: i32) -> (i32, i32) {
    %c0_i32 = arith.constant 0 : i32
    %c0_i32_0 = arith.constant 0 : i32
    return %arg0, %c0_i32 : i32, i32
  }
  func.func @transform_1(%arg0: i32) -> (i32, i32) {
    %c0_i32 = arith.constant 0 : i32
    %c0_i32_0 = arith.constant 0 : i32
    %c0_i32_1 = arith.constant 0 : i32
    return %c0_i32, %c0_i32_0 : i32, i32
  }
  func.func @transform_2(%arg0: i32) -> (i32, i32) {
    %c0_i32 = arith.constant 0 : i32
    %c0_i32_0 = arith.constant 0 : i32
    %c0_i32_1 = arith.constant 0 : i32
    return %c0_i32, %c0_i32_0 : i32, i32
  }
  func.func @transform_3(%arg0: i32) -> (i32, i32) {
    %c0_i32 = arith.constant 0 : i32
    %c0_i32_0 = arith.constant 0 : i32
    %c0_i32_1 = arith.constant 0 : i32
    return %c0_i32, %c0_i32_0 : i32, i32
  }
  func.func @transform_4(%arg0: i32) -> (i32, i32) {
    %c0_i32 = arith.constant 0 : i32
    %c0_i32_0 = arith.constant 0 : i32
    %c0_i32_1 = arith.constant 0 : i32
    return %c0_i32, %c0_i32_0 : i32, i32
  }
  func.func @transform_5(%arg0: i32) -> (i32, i32) {
    %c0_i32 = arith.constant 0 : i32
    %c0_i32_0 = arith.constant 0 : i32
    %c0_i32_1 = arith.constant 0 : i32
    return %c0_i32, %c0_i32_0 : i32, i32
  }
  func.func @transform_6(%arg0: i32) -> (i32, i32) {
    %c0_i32 = arith.constant 0 : i32
    %c0_i32_0 = arith.constant 0 : i32
    %c0_i32_1 = arith.constant 0 : i32
    return %c0_i32, %c0_i32_0 : i32, i32
  }
  func.func @transform_7(%arg0: i32) -> (i32, i32) {
    %c0_i32 = arith.constant 0 : i32
    %c0_i32_0 = arith.constant 0 : i32
    %c0_i32_1 = arith.constant 0 : i32
    return %c0_i32, %c0_i32_0 : i32, i32
  }
  func.func @transform_8(%arg0: i32) -> (i32, i32) {
    %c0_i32 = arith.constant 0 : i32
    %c0_i32_0 = arith.constant 0 : i32
    %c0_i32_1 = arith.constant 0 : i32
    return %c0_i32, %c0_i32_0 : i32, i32
  }
  func.func @transform_9(%arg0: i32) -> (i32, i32) {
    %c0_i32 = arith.constant 0 : i32
    %c0_i32_0 = arith.constant 0 : i32
    return %arg0, %c0_i32 : i32, i32
  }
  func.func @transform_10(%arg0: i32) -> (i32, i32) {
    %c0_i32 = arith.constant 0 : i32
    %c0_i32_0 = arith.constant 0 : i32
    return %arg0, %c0_i32 : i32, i32
  }
  func.func @transform_11(%arg0: i32) -> (i32, i32) {
    %c0_i32 = arith.constant 0 : i32
    %c0_i32_0 = arith.constant 0 : i32
    return %arg0, %c0_i32 : i32, i32
  }
  func.func @transform_12(%arg0: i32) -> (i32, i32) {
    %c0_i32 = arith.constant 0 : i32
    %c0_i32_0 = arith.constant 0 : i32
    return %arg0, %c0_i32 : i32, i32
  }
}

module attributes {stable_mosaic.version = 11 : i64} {
  func.func @_fused_mlp_transbit_kernel(%arg0: memref<8x64xf32, #tpu.memory_space<vmem>>, %arg1: memref<64x32xf32, #tpu.memory_space<vmem>>, %arg2: memref<1x32xf32, #tpu.memory_space<vmem>>, %arg3: memref<1x32xf32, #tpu.memory_space<vmem>>, %arg4: memref<1x32xf32, #tpu.memory_space<vmem>>, %arg5: memref<32x32xf32, #tpu.memory_space<vmem>>, %arg6: memref<1x32xf32, #tpu.memory_space<vmem>>, %arg7: memref<1x32xf32, #tpu.memory_space<vmem>>, %arg8: memref<1x32xf32, #tpu.memory_space<vmem>>, %arg9: memref<32x32xf32, #tpu.memory_space<vmem>>, %arg10: memref<1x32xf32, #tpu.memory_space<vmem>>, %arg11: memref<1x32xf32, #tpu.memory_space<vmem>>, %arg12: memref<1x32xf32, #tpu.memory_space<vmem>>, %arg13: memref<32x4xf32, #tpu.memory_space<vmem>>, %arg14: memref<8x4xf32, #tpu.memory_space<vmem>>) attributes {dimension_semantics = [], scalar_prefetch = 0 : i64, scratch_operands = 0 : i64, tpu.core_type = #tpu.core_type<tc>} {
    %c0 = arith.constant 0 : index
    %c0_0 = arith.constant 0 : index
    %0 = vector.load %arg0[%c0, %c0_0] : memref<8x64xf32, #tpu.memory_space<vmem>>, vector<8x64xf32>
    %c0_1 = arith.constant 0 : index
    %c0_2 = arith.constant 0 : index
    %1 = vector.load %arg1[%c0_1, %c0_2] : memref<64x32xf32, #tpu.memory_space<vmem>>, vector<64x32xf32>
    %2 = arith.truncf %0 : vector<8x64xf32> to vector<8x64xbf16>
    %3 = arith.truncf %1 : vector<64x32xf32> to vector<64x32xbf16>
    %cst = arith.constant dense<0.000000e+00> : vector<8x32xf32>
    %4 = tpu.matmul %2, %3, %cst {dimension_numbers = #tpu.dot_dimension_numbers<[1], [0], [0], [1], [0, 0, 1, 1], [], []>} : vector<8x64xbf16>, vector<64x32xbf16>, vector<8x32xf32> -> vector<8x32xf32>
    %c0_3 = arith.constant 0 : index
    %c0_4 = arith.constant 0 : index
    %5 = vector.load %arg2[%c0_3, %c0_4] : memref<1x32xf32, #tpu.memory_space<vmem>>, vector<1x32xf32>
    %6 = vector.broadcast %5 : vector<1x32xf32> to vector<8x32xf32>
    %7 = arith.addf %4, %6 : vector<8x32xf32>
    %cst_5 = arith.constant dense<0.000000e+00> : vector<32xf32>
    %8 = vector.multi_reduction <add>, %7, %cst_5 [0] : vector<8x32xf32> to vector<32xf32>
    %9 = vector.shape_cast %8 : vector<32xf32> to vector<1x32xf32>
    %cst_6 = arith.constant 8.000000e+00 : f32
    %10 = vector.broadcast %cst_6 : f32 to vector<1x32xf32>
    %11 = arith.divf %9, %10 : vector<1x32xf32>
    %12 = vector.broadcast %11 : vector<1x32xf32> to vector<8x32xf32>
    %13 = arith.subf %7, %12 : vector<8x32xf32>
    %14 = arith.mulf %13, %13 : vector<8x32xf32>
    %cst_7 = arith.constant dense<0.000000e+00> : vector<32xf32>
    %15 = vector.multi_reduction <add>, %14, %cst_7 [0] : vector<8x32xf32> to vector<32xf32>
    %16 = vector.shape_cast %15 : vector<32xf32> to vector<1x32xf32>
    %cst_8 = arith.constant 8.000000e+00 : f32
    %17 = vector.broadcast %cst_8 : f32 to vector<1x32xf32>
    %18 = arith.divf %16, %17 : vector<1x32xf32>
    %c0_9 = arith.constant 0 : index
    %c0_10 = arith.constant 0 : index
    %19 = vector.load %arg3[%c0_9, %c0_10] : memref<1x32xf32, #tpu.memory_space<vmem>>, vector<1x32xf32>
    %cst_11 = arith.constant 9.99999974E-6 : f32
    %20 = vector.broadcast %cst_11 : f32 to vector<1x32xf32>
    %21 = arith.addf %18, %20 : vector<1x32xf32>
    %22 = math.rsqrt %21 : vector<1x32xf32>
    %23 = arith.mulf %19, %22 : vector<1x32xf32>
    %c0_12 = arith.constant 0 : index
    %c0_13 = arith.constant 0 : index
    %24 = vector.load %arg4[%c0_12, %c0_13] : memref<1x32xf32, #tpu.memory_space<vmem>>, vector<1x32xf32>
    %25 = arith.mulf %11, %23 : vector<1x32xf32>
    %26 = arith.subf %24, %25 : vector<1x32xf32>
    %27 = vector.broadcast %23 : vector<1x32xf32> to vector<8x32xf32>
    %28 = arith.mulf %7, %27 : vector<8x32xf32>
    %29 = vector.broadcast %26 : vector<1x32xf32> to vector<8x32xf32>
    %30 = arith.addf %28, %29 : vector<8x32xf32>
    %cst_14 = arith.constant 0.000000e+00 : f32
    %31 = vector.broadcast %cst_14 : f32 to vector<8x32xf32>
    %32 = arith.maximumf %30, %31 : vector<8x32xf32>
    %c0_15 = arith.constant 0 : index
    %c0_16 = arith.constant 0 : index
    %33 = vector.load %arg5[%c0_15, %c0_16] : memref<32x32xf32, #tpu.memory_space<vmem>>, vector<32x32xf32>
    %34 = arith.truncf %32 : vector<8x32xf32> to vector<8x32xbf16>
    %35 = arith.truncf %33 : vector<32x32xf32> to vector<32x32xbf16>
    %cst_17 = arith.constant dense<0.000000e+00> : vector<8x32xf32>
    %36 = tpu.matmul %34, %35, %cst_17 {dimension_numbers = #tpu.dot_dimension_numbers<[1], [0], [0], [1], [0, 0, 1, 1], [], []>} : vector<8x32xbf16>, vector<32x32xbf16>, vector<8x32xf32> -> vector<8x32xf32>
    %c0_18 = arith.constant 0 : index
    %c0_19 = arith.constant 0 : index
    %37 = vector.load %arg6[%c0_18, %c0_19] : memref<1x32xf32, #tpu.memory_space<vmem>>, vector<1x32xf32>
    %38 = vector.broadcast %37 : vector<1x32xf32> to vector<8x32xf32>
    %39 = arith.addf %36, %38 : vector<8x32xf32>
    %cst_20 = arith.constant dense<0.000000e+00> : vector<32xf32>
    %40 = vector.multi_reduction <add>, %39, %cst_20 [0] : vector<8x32xf32> to vector<32xf32>
    %41 = vector.shape_cast %40 : vector<32xf32> to vector<1x32xf32>
    %cst_21 = arith.constant 8.000000e+00 : f32
    %42 = vector.broadcast %cst_21 : f32 to vector<1x32xf32>
    %43 = arith.divf %41, %42 : vector<1x32xf32>
    %44 = vector.broadcast %43 : vector<1x32xf32> to vector<8x32xf32>
    %45 = arith.subf %39, %44 : vector<8x32xf32>
    %46 = arith.mulf %45, %45 : vector<8x32xf32>
    %cst_22 = arith.constant dense<0.000000e+00> : vector<32xf32>
    %47 = vector.multi_reduction <add>, %46, %cst_22 [0] : vector<8x32xf32> to vector<32xf32>
    %48 = vector.shape_cast %47 : vector<32xf32> to vector<1x32xf32>
    %cst_23 = arith.constant 8.000000e+00 : f32
    %49 = vector.broadcast %cst_23 : f32 to vector<1x32xf32>
    %50 = arith.divf %48, %49 : vector<1x32xf32>
    %c0_24 = arith.constant 0 : index
    %c0_25 = arith.constant 0 : index
    %51 = vector.load %arg7[%c0_24, %c0_25] : memref<1x32xf32, #tpu.memory_space<vmem>>, vector<1x32xf32>
    %cst_26 = arith.constant 9.99999974E-6 : f32
    %52 = vector.broadcast %cst_26 : f32 to vector<1x32xf32>
    %53 = arith.addf %50, %52 : vector<1x32xf32>
    %54 = math.rsqrt %53 : vector<1x32xf32>
    %55 = arith.mulf %51, %54 : vector<1x32xf32>
    %c0_27 = arith.constant 0 : index
    %c0_28 = arith.constant 0 : index
    %56 = vector.load %arg8[%c0_27, %c0_28] : memref<1x32xf32, #tpu.memory_space<vmem>>, vector<1x32xf32>
    %57 = arith.mulf %43, %55 : vector<1x32xf32>
    %58 = arith.subf %56, %57 : vector<1x32xf32>
    %59 = vector.broadcast %55 : vector<1x32xf32> to vector<8x32xf32>
    %60 = arith.mulf %39, %59 : vector<8x32xf32>
    %61 = vector.broadcast %58 : vector<1x32xf32> to vector<8x32xf32>
    %62 = arith.addf %60, %61 : vector<8x32xf32>
    %cst_29 = arith.constant 0.000000e+00 : f32
    %63 = vector.broadcast %cst_29 : f32 to vector<8x32xf32>
    %64 = arith.maximumf %62, %63 : vector<8x32xf32>
    %c0_30 = arith.constant 0 : index
    %c0_31 = arith.constant 0 : index
    %65 = vector.load %arg9[%c0_30, %c0_31] : memref<32x32xf32, #tpu.memory_space<vmem>>, vector<32x32xf32>
    %66 = arith.truncf %64 : vector<8x32xf32> to vector<8x32xbf16>
    %67 = arith.truncf %65 : vector<32x32xf32> to vector<32x32xbf16>
    %cst_32 = arith.constant dense<0.000000e+00> : vector<8x32xf32>
    %68 = tpu.matmul %66, %67, %cst_32 {dimension_numbers = #tpu.dot_dimension_numbers<[1], [0], [0], [1], [0, 0, 1, 1], [], []>} : vector<8x32xbf16>, vector<32x32xbf16>, vector<8x32xf32> -> vector<8x32xf32>
    %c0_33 = arith.constant 0 : index
    %c0_34 = arith.constant 0 : index
    %69 = vector.load %arg10[%c0_33, %c0_34] : memref<1x32xf32, #tpu.memory_space<vmem>>, vector<1x32xf32>
    %70 = vector.broadcast %69 : vector<1x32xf32> to vector<8x32xf32>
    %71 = arith.addf %68, %70 : vector<8x32xf32>
    %cst_35 = arith.constant dense<0.000000e+00> : vector<32xf32>
    %72 = vector.multi_reduction <add>, %71, %cst_35 [0] : vector<8x32xf32> to vector<32xf32>
    %73 = vector.shape_cast %72 : vector<32xf32> to vector<1x32xf32>
    %cst_36 = arith.constant 8.000000e+00 : f32
    %74 = vector.broadcast %cst_36 : f32 to vector<1x32xf32>
    %75 = arith.divf %73, %74 : vector<1x32xf32>
    %76 = vector.broadcast %75 : vector<1x32xf32> to vector<8x32xf32>
    %77 = arith.subf %71, %76 : vector<8x32xf32>
    %78 = arith.mulf %77, %77 : vector<8x32xf32>
    %cst_37 = arith.constant dense<0.000000e+00> : vector<32xf32>
    %79 = vector.multi_reduction <add>, %78, %cst_37 [0] : vector<8x32xf32> to vector<32xf32>
    %80 = vector.shape_cast %79 : vector<32xf32> to vector<1x32xf32>
    %cst_38 = arith.constant 8.000000e+00 : f32
    %81 = vector.broadcast %cst_38 : f32 to vector<1x32xf32>
    %82 = arith.divf %80, %81 : vector<1x32xf32>
    %c0_39 = arith.constant 0 : index
    %c0_40 = arith.constant 0 : index
    %83 = vector.load %arg11[%c0_39, %c0_40] : memref<1x32xf32, #tpu.memory_space<vmem>>, vector<1x32xf32>
    %cst_41 = arith.constant 9.99999974E-6 : f32
    %84 = vector.broadcast %cst_41 : f32 to vector<1x32xf32>
    %85 = arith.addf %82, %84 : vector<1x32xf32>
    %86 = math.rsqrt %85 : vector<1x32xf32>
    %87 = arith.mulf %83, %86 : vector<1x32xf32>
    %c0_42 = arith.constant 0 : index
    %c0_43 = arith.constant 0 : index
    %88 = vector.load %arg12[%c0_42, %c0_43] : memref<1x32xf32, #tpu.memory_space<vmem>>, vector<1x32xf32>
    %89 = arith.mulf %75, %87 : vector<1x32xf32>
    %90 = arith.subf %88, %89 : vector<1x32xf32>
    %91 = vector.broadcast %87 : vector<1x32xf32> to vector<8x32xf32>
    %92 = arith.mulf %71, %91 : vector<8x32xf32>
    %93 = vector.broadcast %90 : vector<1x32xf32> to vector<8x32xf32>
    %94 = arith.addf %92, %93 : vector<8x32xf32>
    %cst_44 = arith.constant 0.000000e+00 : f32
    %95 = vector.broadcast %cst_44 : f32 to vector<8x32xf32>
    %96 = arith.maximumf %94, %95 : vector<8x32xf32>
    %c0_45 = arith.constant 0 : index
    %c0_46 = arith.constant 0 : index
    %97 = vector.load %arg13[%c0_45, %c0_46] : memref<32x4xf32, #tpu.memory_space<vmem>>, vector<32x4xf32>
    %98 = arith.truncf %96 : vector<8x32xf32> to vector<8x32xbf16>
    %99 = arith.truncf %97 : vector<32x4xf32> to vector<32x4xbf16>
    %cst_47 = arith.constant dense<0.000000e+00> : vector<8x4xf32>
    %100 = tpu.matmul %98, %99, %cst_47 {dimension_numbers = #tpu.dot_dimension_numbers<[1], [0], [0], [1], [0, 0, 1, 1], [], []>} : vector<8x32xbf16>, vector<32x4xbf16>, vector<8x4xf32> -> vector<8x4xf32>
    %c0_48 = arith.constant 0 : index
    %c0_49 = arith.constant 0 : index
    %101 = vector.load %arg14[%c0_48, %c0_49] : memref<8x4xf32, #tpu.memory_space<vmem>>, vector<8x4xf32>
    tpu.vector_store %arg14[%c0_48, %c0_49], %100 {strides = array<i32>} : memref<8x4xf32, #tpu.memory_space<vmem>>, vector<8x4xf32>,
    return
  }
}

module attributes {stable_mosaic.version = 11 : i64} {
  func.func @_combine_scale_kernel(%arg0: i32, %arg1: memref<8x256xf32, #tpu.memory_space<vmem>>, %arg2: memref<256x4xf32, #tpu.memory_space<vmem>>, %arg3: memref<8x4xf32, #tpu.memory_space<vmem>>, %arg4: memref<8x64xf32, #tpu.memory_space<vmem>>, %arg5: memref<4x64xf32, #tpu.memory_space<vmem>>, %arg6: memref<8x4xf32, #tpu.memory_space<vmem>>, %arg7: memref<8x64xf32, #tpu.memory_space<vmem>>) attributes {dimension_semantics = [#tpu.dimension_semantics<parallel>], iteration_bounds = array<i64: 1>, scalar_prefetch = 0 : i64, scratch_operands = 0 : i64, tpu.core_type = #tpu.core_type<tc>, window_params = [{transform_indices = @transform_0, window_bounds = array<i64: 8, 256>}, {pipeline_mode = #tpu.pipeline_mode<synchronous>, transform_indices = @transform_1, window_bounds = array<i64: 256, 4>}, {transform_indices = @transform_2, window_bounds = array<i64: 8, 4>}, {transform_indices = @transform_3, window_bounds = array<i64: 8, 64>}, {pipeline_mode = #tpu.pipeline_mode<synchronous>, transform_indices = @transform_4, window_bounds = array<i64: 4, 64>}, {transform_indices = @transform_5, window_bounds = array<i64: 8, 4>}, {transform_indices = @transform_6, window_bounds = array<i64: 8, 64>}]} {
    %c0 = arith.constant 0 : index
    %c0_0 = arith.constant 0 : index
    %0 = vector.load %arg1[%c0, %c0_0] : memref<8x256xf32, #tpu.memory_space<vmem>>, vector<8x256xf32>
    %c0_1 = arith.constant 0 : index
    %c0_2 = arith.constant 0 : index
    %1 = vector.load %arg2[%c0_1, %c0_2] : memref<256x4xf32, #tpu.memory_space<vmem>>, vector<256x4xf32>
    %2 = arith.truncf %0 : vector<8x256xf32> to vector<8x256xbf16>
    %3 = arith.truncf %1 : vector<256x4xf32> to vector<256x4xbf16>
    %cst = arith.constant dense<0.000000e+00> : vector<8x4xf32>
    %4 = tpu.matmul %2, %3, %cst {dimension_numbers = #tpu.dot_dimension_numbers<[1], [0], [0], [1], [0, 0, 1, 1], [], []>} : vector<8x256xbf16>, vector<256x4xbf16>, vector<8x4xf32> -> vector<8x4xf32>
    %c0_3 = arith.constant 0 : index
    %c0_4 = arith.constant 0 : index
    %5 = vector.load %arg3[%c0_3, %c0_4] : memref<8x4xf32, #tpu.memory_space<vmem>>, vector<8x4xf32>
    %6 = arith.addf %5, %4 : vector<8x4xf32>
    %c0_5 = arith.constant 0 : index
    %c0_6 = arith.constant 0 : index
    %7 = vector.load %arg6[%c0_5, %c0_6] : memref<8x4xf32, #tpu.memory_space<vmem>>, vector<8x4xf32>
    tpu.vector_store %arg6[%c0_5, %c0_6], %6 {strides = array<i32>} : memref<8x4xf32, #tpu.memory_space<vmem>>, vector<8x4xf32>,
    %c0_7 = arith.constant 0 : index
    %c0_8 = arith.constant 0 : index
    %8 = vector.load %arg5[%c0_7, %c0_8] : memref<4x64xf32, #tpu.memory_space<vmem>>, vector<4x64xf32>
    %cst_9 = arith.constant dense<0.000000e+00> : vector<8x64xf32>
    %9 = tpu.matmul %6, %8, %cst_9 {dimension_numbers = #tpu.dot_dimension_numbers<[1], [0], [0], [1], [0, 0, 1, 1], [], []>} : vector<8x4xf32>, vector<4x64xf32>, vector<8x64xf32> -> vector<8x64xf32>
    %c0_10 = arith.constant 0 : index
    %c0_11 = arith.constant 0 : index
    %10 = vector.load %arg4[%c0_10, %c0_11] : memref<8x64xf32, #tpu.memory_space<vmem>>, vector<8x64xf32>
    %11 = arith.mulf %10, %9 : vector<8x64xf32>
    %c0_12 = arith.constant 0 : index
    %c0_13 = arith.constant 0 : index
    %12 = vector.load %arg7[%c0_12, %c0_13] : memref<8x64xf32, #tpu.memory_space<vmem>>, vector<8x64xf32>
    tpu.vector_store %arg7[%c0_12, %c0_13], %11 {strides = array<i32>} : memref<8x64xf32, #tpu.memory_space<vmem>>, vector<8x64xf32>,
    return
  }
  func.func @transform_0(%arg0: i32) -> (i32, i32) {
    %c0_i32 = arith.constant 0 : i32
    %c0_i32_0 = arith.constant 0 : i32
    return %arg0, %c0_i32 : i32, i32
  }
  func.func @transform_1(%arg0: i32) -> (i32, i32) {
    %c0_i32 = arith.constant 0 : i32
    %c0_i32_0 = arith.constant 0 : i32
    %c0_i32_1 = arith.constant 0 : i32
    return %c0_i32, %c0_i32_0 : i32, i32
  }
  func.func @transform_2(%arg0: i32) -> (i32, i32) {
    %c0_i32 = arith.constant 0 : i32
    %c0_i32_0 = arith.constant 0 : i32
    return %arg0, %c0_i32 : i32, i32
  }
  func.func @transform_3(%arg0: i32) -> (i32, i32) {
    %c0_i32 = arith.constant 0 : i32
    %c0_i32_0 = arith.constant 0 : i32
    return %arg0, %c0_i32 : i32, i32
  }
  func.func @transform_4(%arg0: i32) -> (i32, i32) {
    %c0_i32 = arith.constant 0 : i32
    %c0_i32_0 = arith.constant 0 : i32
    %c0_i32_1 = arith.constant 0 : i32
    return %c0_i32, %c0_i32_0 : i32, i32
  }
  func.func @transform_5(%arg0: i32) -> (i32, i32) {
    %c0_i32 = arith.constant 0 : i32
    %c0_i32_0 = arith.constant 0 : i32
    return %arg0, %c0_i32 : i32, i32
  }
  func.func @transform_6(%arg0: i32) -> (i32, i32) {
    %c0_i32 = arith.constant 0 : i32
    %c0_i32_0 = arith.constant 0 : i32
    return %arg0, %c0_i32 : i32, i32
  }
}

</mosaic_0001>

<llo_original>
// kernel: dualfen_forward.5
$region0: #{dualfen_forward.5}
  #allocation0 [shape = 'u32[]', space=smem, size = 0x4, offset = 0x4, fixed_abs, tag = 'smem constant byte address 0x4 - core index']
  #allocation1 [shape = 'u32[144,128]{1,0:T(1,128)}', space=vmem, size = 0x12000, scoped, tag = 'internal scratch']
  %s0 = inlined_call_operand.vmem [shape: f32[32,16], index: 0, kind: input, shape index: {}]
  %s1 = inlined_call_operand.vmem [shape: f32[16,64], index: 1, kind: input, shape index: {}]
  %s2 = inlined_call_operand.vmem [shape: f32[1,64], index: 2, kind: input, shape index: {}]
  %s3 = inlined_call_operand.vmem [shape: f32[16,64], index: 3, kind: input, shape index: {}]
  %s4 = inlined_call_operand.vmem [shape: f32[1,64], index: 4, kind: input, shape index: {}]
  %s5 = inlined_call_operand.hbm [shape: f32[16,64], index: 5, kind: input, shape index: {}]
  %s6 = inlined_call_operand.hbm [shape: f32[1,64], index: 6, kind: input, shape index: {}]
  %s7 = inlined_call_operand.hbm [shape: f32[16,64], index: 7, kind: input, shape index: {}]
  %s8 = inlined_call_operand.hbm [shape: f32[1,64], index: 8, kind: input, shape index: {}]
  %s9 = inlined_call_operand.vmem [shape: f32[32,64], index: 9, kind: output, shape index: {0}]
  %s10 = inlined_call_operand.vmem [shape: f32[32,64], index: 10, kind: output, shape index: {1}]
  %s11 = inlined_call_operand.vmem [shape: f32[32,64], index: 11, kind: output, shape index: {2}]
  %s12 = inlined_call_operand.vmem [shape: f32[32,64], index: 12, kind: output, shape index: {3}]
  %13 = xla_tuple %s9, %s10, %s11, %s12
  %s14 = sld [smem:[#allocation0]]
  $region109: #{dualfen_forward.5} parent=0
    _
  %s16 = ssub.s32 1, %s14
  %s17 = scalar_select 0, %s16, %s14
  $region1: #{dualfen_forward.5} parent=0
    #allocation2 [shape = 'u8[8192]{0}', space=vmem, size = 0x2000, scoped, tag = 'input window, operand 5, single buffered']
    #allocation3 [shape = 's32[2]{0}', space=sflag, size = 0x8, scoped, tag = 'scoped memory for dualfen_forward.5']
    #allocation4 [shape = 'u8[512]{0}', space=vmem, size = 0x400, scoped, tag = 'input window, operand 6, single buffered']
    #allocation5 [shape = 's32[1]{0}', space=sflag, size = 0x4, scoped, tag = 'scoped memory for dualfen_forward.5']
    #allocation6 [shape = 'u8[8192]{0}', space=vmem, size = 0x2000, scoped, tag = 'input window, operand 7, single buffered']
    #allocation7 [shape = 'u8[512]{0}', space=vmem, size = 0x400, scoped, tag = 'input window, operand 8, single buffered']
    #allocation8 [shape = 's32[1]{0}', space=sflag, size = 0x4, scoped, tag = 'scoped memory for dualfen_forward.5']
    %18 = vsyncpa [#allocation3], 0
    %19 = vsyncpa [#allocation5], 0
    %20 = vsyncpa [#allocation8], 0
    loop: start=0, step=1, limit=4
    $region2: #{dualfen_forward.5} parent=1 // loop_pre_header
      _
    $region3: #{dualfen_forward.5} parent=1 // loop_header
      %s22 = sphi 0, %s26
      %p23 = scmp.ge.s32.totalorder %s22, 4
      %s32 = sphi 0, %s34
      %s35 = sphi 0, %s32
      %s36 = sphi 0, %s35
      %s52 = sphi 0, %s36
      %s56 = sphi 0, %s56
      %s58 = sphi 0, %s56
      %s59 = sphi 0, %s58
      %s73 = sphi 0, %s59
      %s77 = sphi 0, %s77
      %s79 = sphi 0, %s77
      %s80 = sphi 0, %s79
      %s94 = sphi 0, %s80
      %s98 = sphi 0, %s98
      %s100 = sphi 0, %s98
      %s101 = sphi 0, %s100
      %s115 = sphi 0, %s101
      %s119 = sphi 0, %s119
      %s121 = sphi 0, %s119
      %s122 = sphi 0, %s121
      %s136 = sphi 0, %s122
      %s140 = sphi 0, %s140
      %s142 = sphi 0, %s140
      %s143 = sphi 0, %s142
      %s157 = sphi 0, %s143
      %s161 = sphi 0, %s161
      %s163 = sphi 0, %s161
      %s164 = sphi 0, %s163
      %s178 = sphi 0, %s164
      %s182 = sphi 0, %s182
      %s184 = sphi 0, %s182
      %s185 = sphi 0, %s184
      %s199 = sphi 0, %s185
      %s203 = sphi 0, %s203
      %s205 = sphi 0, %s203
      %s206 = sphi 0, %s205
      %s220 = sphi 0, %s206
      %s226 = sphi 0, %s228
      %s229 = sphi 0, %s226
      %s230 = sphi 0, %s229
      %s246 = sphi 0, %s230
      %s252 = sphi 0, %s254
      %s255 = sphi 0, %s252
      %s256 = sphi 0, %s255
      %s272 = sphi 0, %s256
      %s278 = sphi 0, %s280
      %s281 = sphi 0, %s278
      %s282 = sphi 0, %s281
      %s298 = sphi 0, %s282
      %s304 = sphi 0, %s306
      %s307 = sphi 0, %s304
      %s308 = sphi 0, %s307
      %s324 = sphi 0, %s308
    $region4: #{dualfen_forward.5} parent=1 // loop_header_branch
      %25 = sbr.rel (%p23) target = $region8
    $region5: #{dualfen_forward.5} parent=1 // loop_body
      %s27 = ssub.s32 %s22, 1
      %s28 = ssub.s32 %s22, 2
      %s29 = sadd.s32 %s22, 1
      %s30 = ssub.s32 %s22, %s29
      %p31 = scmp.eq.s32.totalorder %s30, 0
      %s33 = sadd.s32 %s32, 1
      %s34 = scalar_select %p31, %s32, %s33
      %p37 = pneg %p31
      %p38 = scmp.eq.s32.totalorder %s22, 1
      %p39 = por %p37, %p38
      %p40 = scmp.ne.s32.totalorder %s32, %s35
      %p41 = scmp.eq.s32.totalorder %s22, 0
      %p42 = por %p40, %p41
      %p43 = scmp.ne.s32.totalorder %s32, %s35
      %p44 = scmp.eq.s32.totalorder %s27, 1
      %p45 = por %p43, %p44
      %p46 = scmp.ne.s32.totalorder %s35, %s36
      %p47 = scmp.eq.s32.totalorder %s27, 0
      %p48 = por %p46, %p47
      %p49 = scmp.ne.s32.totalorder %s35, %s36
      %p50 = scmp.eq.s32.totalorder %s28, 1
      %p51 = por %p49, %p50
      %p53 = scmp.ne.s32.totalorder %s36, %s52
      %p54 = scmp.eq.s32.totalorder %s28, 0
      %p55 = por %p53, %p54
      %s57 = sadd.s32 %s56, 1
      %p60 = scmp.eq.s32.totalorder %s22, 1
      %p61 = scmp.ne.s32.totalorder %s56, %s58
      %p62 = scmp.eq.s32.totalorder %s22, 0
      %p63 = por %p61, %p62
      %p64 = scmp.ne.s32.totalorder %s56, %s58
      %p65 = scmp.eq.s32.totalorder %s27, 1
      %p66 = por %p64, %p65
      %p67 = scmp.ne.s32.totalorder %s58, %s59
      %p68 = scmp.eq.s32.totalorder %s27, 0
      %p69 = por %p67, %p68
      %p70 = scmp.ne.s32.totalorder %s58, %s59
      %p71 = scmp.eq.s32.totalorder %s28, 1
      %p72 = por %p70, %p71
      %p74 = scmp.ne.s32.totalorder %s59, %s73
      %p75 = scmp.eq.s32.totalorder %s28, 0
      %p76 = por %p74, %p75
      %s78 = sadd.s32 %s77, 1
      %p81 = scmp.eq.s32.totalorder %s22, 1
      %p82 = scmp.ne.s32.totalorder %s77, %s79
      %p83 = scmp.eq.s32.totalorder %s22, 0
      %p84 = por %p82, %p83
      %p85 = scmp.ne.s32.totalorder %s77, %s79
      %p86 = scmp.eq.s32.totalorder %s27, 1
      %p87 = por %p85, %p86
      %p88 = scmp.ne.s32.totalorder %s79, %s80
      %p89 = scmp.eq.s32.totalorder %s27, 0
      %p90 = por %p88, %p89
      %p91 = scmp.ne.s32.totalorder %s79, %s80
      %p92 = scmp.eq.s32.totalorder %s28, 1
      %p93 = por %p91, %p92
      %p95 = scmp.ne.s32.totalorder %s80, %s94
      %p96 = scmp.eq.s32.totalorder %s28, 0
      %p97 = por %p95, %p96
      %s99 = sadd.s32 %s98, 1
      %p102 = scmp.eq.s32.totalorder %s22, 1
      %p103 = scmp.ne.s32.totalorder %s98, %s100
      %p104 = scmp.eq.s32.totalorder %s22, 0
      %p105 = por %p103, %p104
      %p106 = scmp.ne.s32.totalorder %s98, %s100
      %p107 = scmp.eq.s32.totalorder %s27, 1
      %p108 = por %p106, %p107
      %p109 = scmp.ne.s32.totalorder %s100, %s101
      %p110 = scmp.eq.s32.totalorder %s27, 0
      %p111 = por %p109, %p110
      %p112 = scmp.ne.s32.totalorder %s100, %s101
      %p113 = scmp.eq.s32.totalorder %s28, 1
      %p114 = por %p112, %p113
      %p116 = scmp.ne.s32.totalorder %s101, %s115
      %p117 = scmp.eq.s32.totalorder %s28, 0
      %p118 = por %p116, %p117
      %s120 = sadd.s32 %s119, 1
      %p123 = scmp.eq.s32.totalorder %s22, 1
      %p124 = scmp.ne.s32.totalorder %s119, %s121
      %p125 = scmp.eq.s32.totalorder %s22, 0
      %p126 = por %p124, %p125
      %p127 = scmp.ne.s32.totalorder %s119, %s121
      %p128 = scmp.eq.s32.totalorder %s27, 1
      %p129 = por %p127, %p128
      %p130 = scmp.ne.s32.totalorder %s121, %s122
      %p131 = scmp.eq.s32.totalorder %s27, 0
      %p132 = por %p130, %p131
      %p133 = scmp.ne.s32.totalorder %s121, %s122
      %p134 = scmp.eq.s32.totalorder %s28, 1
      %p135 = por %p133, %p134
      %p137 = scmp.ne.s32.totalorder %s122, %s136
      %p138 = scmp.eq.s32.totalorder %s28, 0
      %p139 = por %p137, %p138
      %s141 = sadd.s32 %s140, 1
      %p144 = scmp.eq.s32.totalorder %s22, 1
      %p145 = scmp.ne.s32.totalorder %s140, %s142
      %p146 = scmp.eq.s32.totalorder %s22, 0
      %p147 = por %p145, %p146
      %p148 = scmp.ne.s32.totalorder %s140, %s142
      %p149 = scmp.eq.s32.totalorder %s27, 1
      %p150 = por %p148, %p149
      %p151 = scmp.ne.s32.totalorder %s142, %s143
      %p152 = scmp.eq.s32.totalorder %s27, 0
      %p153 = por %p151, %p152
      %p154 = scmp.ne.s32.totalorder %s142, %s143
      %p155 = scmp.eq.s32.totalorder %s28, 1
      %p156 = por %p154, %p155
      %p158 = scmp.ne.s32.totalorder %s143, %s157
      %p159 = scmp.eq.s32.totalorder %s28, 0
      %p160 = por %p158, %p159
      %s162 = sadd.s32 %s161, 1
      %p165 = scmp.eq.s32.totalorder %s22, 1
      %p166 = scmp.ne.s32.totalorder %s161, %s163
      %p167 = scmp.eq.s32.totalorder %s22, 0
      %p168 = por %p166, %p167
      %p169 = scmp.ne.s32.totalorder %s161, %s163
      %p170 = scmp.eq.s32.totalorder %s27, 1
      %p171 = por %p169, %p170
      %p172 = scmp.ne.s32.totalorder %s163, %s164
      %p173 = scmp.eq.s32.totalorder %s27, 0
      %p174 = por %p172, %p173
      %p175 = scmp.ne.s32.totalorder %s163, %s164
      %p176 = scmp.eq.s32.totalorder %s28, 1
      %p177 = por %p175, %p176
      %p179 = scmp.ne.s32.totalorder %s164, %s178
      %p180 = scmp.eq.s32.totalorder %s28, 0
      %p181 = por %p179, %p180
      %s183 = sadd.s32 %s182, 1
      %p186 = scmp.eq.s32.totalorder %s22, 1
      %p187 = scmp.ne.s32.totalorder %s182, %s184
      %p188 = scmp.eq.s32.totalorder %s22, 0
      %p189 = por %p187, %p188
      %p190 = scmp.ne.s32.totalorder %s182, %s184
      %p191 = scmp.eq.s32.totalorder %s27, 1
      %p192 = por %p190, %p191
      %p193 = scmp.ne.s32.totalorder %s184, %s185
      %p194 = scmp.eq.s32.totalorder %s27, 0
      %p195 = por %p193, %p194
      %p196 = scmp.ne.s32.totalorder %s184, %s185
      %p197 = scmp.eq.s32.totalorder %s28, 1
      %p198 = por %p196, %p197
      %p200 = scmp.ne.s32.totalorder %s185, %s199
      %p201 = scmp.eq.s32.totalorder %s28, 0
      %p202 = por %p200, %p201
      %s204 = sadd.s32 %s203, 1
      %p207 = scmp.eq.s32.totalorder %s22, 1
      %p208 = scmp.ne.s32.totalorder %s203, %s205
      %p209 = scmp.eq.s32.totalorder %s22, 0
      %p210 = por %p208, %p209
      %p211 = scmp.ne.s32.totalorder %s203, %s205
      %p212 = scmp.eq.s32.totalorder %s27, 1
      %p213 = por %p211, %p212
      %p214 = scmp.ne.s32.totalorder %s205, %s206
      %p215 = scmp.eq.s32.totalorder %s27, 0
      %p216 = por %p214, %p215
      %p217 = scmp.ne.s32.totalorder %s205, %s206
      %p218 = scmp.eq.s32.totalorder %s28, 1
      %p219 = por %p217, %p218
      %p221 = scmp.ne.s32.totalorder %s206, %s220
      %p222 = scmp.eq.s32.totalorder %s28, 0
      %p223 = por %p221, %p222
      %s224 = ssub.s32 %s22, %s29
      %p225 = scmp.eq.s32.totalorder %s224, 0
      %s227 = sadd.s32 %s226, 1
      %s228 = scalar_select %p225, %s226, %s227
      %p231 = pneg %p225
      %p232 = scmp.eq.s32.totalorder %s22, 1
      %p233 = por %p231, %p232
      %p234 = scmp.ne.s32.totalorder %s226, %s229
      %p235 = scmp.eq.s32.totalorder %s22, 0
      %p236 = por %p234, %p235
      %p237 = scmp.ne.s32.totalorder %s226, %s229
      %p238 = scmp.eq.s32.totalorder %s27, 1
      %p239 = por %p237, %p238
      %p240 = scmp.ne.s32.totalorder %s229, %s230
      %p241 = scmp.eq.s32.totalorder %s27, 0
      %p242 = por %p240, %p241
      %p243 = scmp.ne.s32.totalorder %s229, %s230
      %p244 = scmp.eq.s32.totalorder %s28, 1
      %p245 = por %p243, %p244
      %p247 = scmp.ne.s32.totalorder %s230, %s246
      %p248 = scmp.eq.s32.totalorder %s28, 0
      %p249 = por %p247, %p248
      %s250 = ssub.s32 %s22, %s29
      %p251 = scmp.eq.s32.totalorder %s250, 0
      %s253 = sadd.s32 %s252, 1
      %s254 = scalar_select %p251, %s252, %s253
      %p257 = pneg %p251
      %p258 = scmp.eq.s32.totalorder %s22, 1
      %p259 = por %p257, %p258
      %p260 = scmp.ne.s32.totalorder %s252, %s255
      %p261 = scmp.eq.s32.totalorder %s22, 0
      %p262 = por %p260, %p261
      %p263 = scmp.ne.s32.totalorder %s252, %s255
      %p264 = scmp.eq.s32.totalorder %s27, 1
      %p265 = por %p263, %p264
      %p266 = scmp.ne.s32.totalorder %s255, %s256
      %p267 = scmp.eq.s32.totalorder %s27, 0
      %p268 = por %p266, %p267
      %p269 = scmp.ne.s32.totalorder %s255, %s256
      %p270 = scmp.eq.s32.totalorder %s28, 1
      %p271 = por %p269, %p270
      %p273 = scmp.ne.s32.totalorder %s256, %s272
      %p274 = scmp.eq.s32.totalorder %s28, 0
      %p275 = por %p273, %p274
      %s276 = ssub.s32 %s22, %s29
      %p277 = scmp.eq.s32.totalorder %s276, 0
      %s279 = sadd.s32 %s278, 1
      %s280 = scalar_select %p277, %s278, %s279
      %p283 = pneg %p277
      %p284 = scmp.eq.s32.totalorder %s22, 1
      %p285 = por %p283, %p284
      %p286 = scmp.ne.s32.totalorder %s278, %s281
      %p287 = scmp.eq.s32.totalorder %s22, 0
      %p288 = por %p286, %p287
      %p289 = scmp.ne.s32.totalorder %s278, %s281
      %p290 = scmp.eq.s32.totalorder %s27, 1
      %p291 = por %p289, %p290
      %p292 = scmp.ne.s32.totalorder %s281, %s282
      %p293 = scmp.eq.s32.totalorder %s27, 0
      %p294 = por %p292, %p293
      %p295 = scmp.ne.s32.totalorder %s281, %s282
      %p296 = scmp.eq.s32.totalorder %s28, 1
      %p297 = por %p295, %p296
      %p299 = scmp.ne.s32.totalorder %s282, %s298
      %p300 = scmp.eq.s32.totalorder %s28, 0
      %p301 = por %p299, %p300
      %s302 = ssub.s32 %s22, %s29
      %p303 = scmp.eq.s32.totalorder %s302, 0
      %s305 = sadd.s32 %s304, 1
      %s306 = scalar_select %p303, %s304, %s305
      %p309 = pneg %p303
      %p310 = scmp.eq.s32.totalorder %s22, 1
      %p311 = por %p309, %p310
      %p312 = scmp.ne.s32.totalorder %s304, %s307
      %p313 = scmp.eq.s32.totalorder %s22, 0
      %p314 = por %p312, %p313
      %p315 = scmp.ne.s32.totalorder %s304, %s307
      %p316 = scmp.eq.s32.totalorder %s27, 1
      %p317 = por %p315, %p316
      %p318 = scmp.ne.s32.totalorder %s307, %s308
      %p319 = scmp.eq.s32.totalorder %s27, 0
      %p320 = por %p318, %p319
      %p321 = scmp.ne.s32.totalorder %s307, %s308
      %p322 = scmp.eq.s32.totalorder %s28, 1
      %p323 = por %p321, %p322
      %p325 = scmp.ne.s32.totalorder %s308, %s324
      %p326 = scmp.eq.s32.totalorder %s28, 0
      %p327 = por %p325, %p326
      %p328 = scmp.le.s32.totalorder 1, %s22
      %p329 = scmp.lt.s32.totalorder %s22, 3
      %p330 = pnand %p328, %p329
      %p331 = pneg %p330
      // Predicated region
      $region9: #{dualfen_forward.5} parent=5 // pred_check
        _
      $region10: #{dualfen_forward.5} parent=5 // pred_check_branch
        %333 = sbr.rel (%p330) target = $region12
      $region11: #{dualfen_forward.5} parent=5 // pred_region
        %s334 = ssub.s32 %s22, 1
        // Predicated region
        $region13: #{dualfen_forward.5} parent=11 // pred_check
          %p335 = pneg %p69
        $region14: #{dualfen_forward.5} parent=11 // pred_check_branch
          %337 = sbr.rel (%p335) target = $region16
        $region15: #{dualfen_forward.5} parent=11 // pred_region
          _
        $region16: #{dualfen_forward.5} parent=11 // pred_fallthru
          _
        // Predicated region
        $region17: #{dualfen_forward.5} parent=11 // pred_check
          %p338 = pneg %p90
        $region18: #{dualfen_forward.5} parent=11 // pred_check_branch
          %340 = sbr.rel (%p338) target = $region20
        $region19: #{dualfen_forward.5} parent=11 // pred_region
          _
        $region20: #{dualfen_forward.5} parent=11 // pred_fallthru
          _
        // Predicated region
        $region21: #{dualfen_forward.5} parent=11 // pred_check
          %p341 = pneg %p111
        $region22: #{dualfen_forward.5} parent=11 // pred_check_branch
          %343 = sbr.rel (%p341) target = $region24
        $region23: #{dualfen_forward.5} parent=11 // pred_region
          _
        $region24: #{dualfen_forward.5} parent=11 // pred_fallthru
          _
        // Predicated region
        $region25: #{dualfen_forward.5} parent=11 // pred_check
          %p344 = pneg %p132
        $region26: #{dualfen_forward.5} parent=11 // pred_check_branch
          %346 = sbr.rel (%p344) target = $region28
        $region27: #{dualfen_forward.5} parent=11 // pred_region
          _
        $region28: #{dualfen_forward.5} parent=11 // pred_fallthru
          _
        // Predicated region
        $region29: #{dualfen_forward.5} parent=11 // pred_check
          %p347 = pneg %p153
        $region30: #{dualfen_forward.5} parent=11 // pred_check_branch
          %349 = sbr.rel (%p347) target = $region32
        $region31: #{dualfen_forward.5} parent=11 // pred_region
          %s351 = ssub.s32 256, 256
          %352 = vsyncadd [#allocation3], %s351
          %s353 = sshll.u32 [#allocation2], 4
          %s354 = int_to_ptr.vmem [resolvable:$true] %s353
          %359 = dma.hbm_to_vmem [thread:$0]  %s5, 256, %s354, [#allocation3], 128, 128, 8
        $region32: #{dualfen_forward.5} parent=11 // pred_fallthru
          _
        // Predicated region
        $region33: #{dualfen_forward.5} parent=11 // pred_check
          %p360 = pneg %p174
        $region34: #{dualfen_forward.5} parent=11 // pred_check_branch
          %362 = sbr.rel (%p360) target = $region36
        $region35: #{dualfen_forward.5} parent=11 // pred_region
          %s364 = ssub.s32 16, 16
          %365 = vsyncadd [#allocation5], %s364
          %s367 = sshll.u32 [#allocation4], 4
          %s368 = int_to_ptr.vmem [resolvable:$true] %s367
          %370 = dma.hbm_to_vmem [thread:$0]  %s6, 16, %s368, [#allocation5]
        $region36: #{dualfen_forward.5} parent=11 // pred_fallthru
          _
        // Predicated region
        $region37: #{dualfen_forward.5} parent=11 // pred_check
          %p371 = pneg %p195
        $region38: #{dualfen_forward.5} parent=11 // pred_check_branch
          %373 = sbr.rel (%p371) target = $region40
        $region39: #{dualfen_forward.5} parent=11 // pred_region
          %s375 = ssub.s32 256, 256
          %376 = vsyncadd [#allocation5], %s375
          %s377 = sshll.u32 [#allocation6], 4
          %s378 = int_to_ptr.vmem [resolvable:$true] %s377
          %383 = dma.hbm_to_vmem [thread:$0]  %s7, 256, %s378, [#allocation5], 128, 128, 8
        $region40: #{dualfen_forward.5} parent=11 // pred_fallthru
          _
        // Predicated region
        $region41: #{dualfen_forward.5} parent=11 // pred_check
          %p384 = pneg %p216
        $region42: #{dualfen_forward.5} parent=11 // pred_check_branch
          %386 = sbr.rel (%p384) target = $region44
        $region43: #{dualfen_forward.5} parent=11 // pred_region
          %s388 = ssub.s32 16, 16
          %389 = vsyncadd [#allocation8], %s388
          %s391 = sshll.u32 [#allocation7], 4
          %s392 = int_to_ptr.vmem [resolvable:$true] %s391
          %394 = dma.hbm_to_vmem [thread:$0]  %s8, 16, %s392, [#allocation8]
        $region44: #{dualfen_forward.5} parent=11 // pred_fallthru
          _
      $region12: #{dualfen_forward.5} parent=5 // pred_fallthru
        _
      %p395 = scmp.lt.s32.totalorder %s22, 2
      // Predicated region
      $region45: #{dualfen_forward.5} parent=5 // pred_check
        %p396 = pneg %p395
      $region46: #{dualfen_forward.5} parent=5 // pred_check_branch
        %398 = sbr.rel (%p396) target = $region48
      $region47: #{dualfen_forward.5} parent=5 // pred_region
        // Predicated region
        $region49: #{dualfen_forward.5} parent=47 // pred_check
          %p399 = pneg %p42
        $region50: #{dualfen_forward.5} parent=47 // pred_check_branch
          %401 = sbr.rel (%p399) target = $region52
        $region51: #{dualfen_forward.5} parent=47 // pred_region
          %s402 = smul.u32 2, %s22
          %p403 = scmp.lt.s32.totalorder %s402, 3
          %s404 = scalar_select %p403, %s402, 3
          %s405 = smul.addr %s404, 8
          %s406 = scalar_lea.vmem %s0, %s405
          %s407 = smul.u32 2, %s22
        $region52: #{dualfen_forward.5} parent=47 // pred_fallthru
          _
      $region48: #{dualfen_forward.5} parent=5 // pred_fallthru
        _
      %p408 = scmp.le.s32.totalorder 1, %s22
      %p409 = scmp.lt.s32.totalorder %s22, 3
      %p410 = pnand %p408, %p409
      %p411 = pneg %p410
      // Predicated region
      $region53: #{dualfen_forward.5} parent=5 // pred_check
        _
      $region54: #{dualfen_forward.5} parent=5 // pred_check_branch
        %413 = sbr.rel (%p410) target = $region56
      $region55: #{dualfen_forward.5} parent=5 // pred_region
        %s414 = ssub.s32 %s22, 1
        // Predicated region
        $region57: #{dualfen_forward.5} parent=55 // pred_check
          %p415 = pneg %p153
        $region58: #{dualfen_forward.5} parent=55 // pred_check_branch
          %417 = sbr.rel (%p415) target = $region60
        $region59: #{dualfen_forward.5} parent=55 // pred_region
          %418 = dma.done [#allocation3], 256
        $region60: #{dualfen_forward.5} parent=55 // pred_fallthru
          _
        // Predicated region
        $region61: #{dualfen_forward.5} parent=55 // pred_check
          %p419 = pneg %p174
        $region62: #{dualfen_forward.5} parent=55 // pred_check_branch
          %421 = sbr.rel (%p419) target = $region64
        $region63: #{dualfen_forward.5} parent=55 // pred_region
          %422 = dma.done [#allocation5], 16
        $region64: #{dualfen_forward.5} parent=55 // pred_fallthru
          _
        // Predicated region
        $region65: #{dualfen_forward.5} parent=55 // pred_check
          %p423 = pneg %p195
        $region66: #{dualfen_forward.5} parent=55 // pred_check_branch
          %425 = sbr.rel (%p423) target = $region68
        $region67: #{dualfen_forward.5} parent=55 // pred_region
          %426 = dma.done [#allocation5], 256
        $region68: #{dualfen_forward.5} parent=55 // pred_fallthru
          _
        // Predicated region
        $region69: #{dualfen_forward.5} parent=55 // pred_check
          %p427 = pneg %p216
        $region70: #{dualfen_forward.5} parent=55 // pred_check_branch
          %429 = sbr.rel (%p427) target = $region72
        $region71: #{dualfen_forward.5} parent=55 // pred_region
          %430 = dma.done [#allocation8], 16
        $region72: #{dualfen_forward.5} parent=55 // pred_fallthru
          _
        %s431 = smul.u32 2, %s27
        %p432 = scmp.lt.s32.totalorder %s431, 3
        %s433 = scalar_select %p432, %s431, 3
        %s434 = smul.addr %s433, 8
        %s435 = scalar_lea.vmem %s0, %s434
        %p436 = pneg %p48
        %p437 = pneg %p45
        %p438 = pneg %p69
        %p439 = pneg %p66
        %p440 = pneg %p90
        %p441 = pneg %p87
        %p442 = pneg %p111
        %p443 = pneg %p108
        %p444 = pneg %p132
        %p445 = pneg %p129
        %p446 = pneg %p153
        %p447 = pneg %p150
        %p448 = pneg %p174
        %p449 = pneg %p171
        %p450 = pneg %p195
        %p451 = pneg %p192
        %p452 = pneg %p216
        %p453 = pneg %p213
        %p454 = pneg %p242
        %p455 = pneg %p239
        %s456 = smul.u32 2, %s27
        %p457 = scmp.lt.s32.totalorder %s456, 3
        %s458 = scalar_select %p457, %s456, 3
        %s459 = smul.addr %s458, 8
        %s460 = scalar_lea.vmem %s9, %s459
        %p461 = pneg %p268
        %p462 = pneg %p265
        %s463 = smul.u32 2, %s27
        %p464 = scmp.lt.s32.totalorder %s463, 3
        %s465 = scalar_select %p464, %s463, 3
        %s466 = smul.addr %s465, 8
        %s467 = scalar_lea.vmem %s10, %s466
        %p468 = pneg %p294
        %p469 = pneg %p291
        %s470 = smul.u32 2, %s27
        %p471 = scmp.lt.s32.totalorder %s470, 3
        %s472 = scalar_select %p471, %s470, 3
        %s473 = smul.addr %s472, 8
        %s474 = scalar_lea.vmem %s11, %s473
        %p475 = pneg %p320
        %p476 = pneg %p317
        %s477 = smul.u32 2, %s27
        %p478 = scmp.lt.s32.totalorder %s477, 3
        %s479 = scalar_select %p478, %s477, 3
        %s480 = smul.addr %s479, 8
        %s481 = scalar_lea.vmem %s12, %s480
        %s482 = smul.u32 2, %s27
        %p483 = scmp.lt.s32.totalorder %s482, 3
        %s484 = scalar_select %p483, %s482, 3
        %s485 = smul.addr %s484, 8
        %s486 = scalar_lea.vmem %s0, %s485
        %s487 = smul.u32 2, %s27
        %s488 = smul.u32 2, %s27
        %p489 = scmp.lt.s32.totalorder %s488, 3
        %s490 = scalar_select %p489, %s488, 3
        %s491 = smul.addr %s490, 8
        %s492 = scalar_lea.vmem %s9, %s491
        %s493 = smul.u32 2, %s27
        %s494 = smul.u32 2, %s27
        %p495 = scmp.lt.s32.totalorder %s494, 3
        %s496 = scalar_select %p495, %s494, 3
        %s497 = smul.addr %s496, 8
        %s498 = scalar_lea.vmem %s10, %s497
        %s499 = smul.u32 2, %s27
        %s500 = smul.u32 2, %s27
        %p501 = scmp.lt.s32.totalorder %s500, 3
        %s502 = scalar_select %p501, %s500, 3
        %s503 = smul.addr %s502, 8
        %s504 = scalar_lea.vmem %s11, %s503
        %s505 = smul.u32 2, %s27
        %s506 = smul.u32 2, %s27
        %p507 = scmp.lt.s32.totalorder %s506, 3
        %s508 = scalar_select %p507, %s506, 3
        %s509 = smul.addr %s508, 8
        %s510 = scalar_lea.vmem %s12, %s509
        %s511 = smul.u32 2, %s27
        %v513 = vld [vmem:[%s486] sm:$0xff]
        %v514 = vld [vmem:[%s486 + $0x8] sm:$0xff]
        %v515 = vld [vmem:[%s1] sm:$0xff]
        %v516 = vld [vmem:[%s1 + $0x8] sm:$0xff]
        %v517 = vpack.c.bf16 %v514, %v513
        %v518 = vpack.c.bf16 %v516, %v515
        %v519 = vld [vmem:[%s2] sm:$0x1]
        %v521 = vlaneseq
        %v522 = vshrl.u32 %v521, 7
        %v523 = vsub.s32 0, %v522
        %v524 = vrot.slane %v519, %v523
        %vm526 = vcmask 130048
        %v528 = vsel %vm526, %v517, 0
        %530 = vmatprep.subr.bf16.mxu0 0
        %531 = vmatpush1.bf16.msra.mxu0 %v518
        %532 = vmatprep.subr.bf16.mxu0 0
        %533 = vmatpush1.bf16.msra.mxu0 0
        %534 = vmatprep.subr.bf16.mxu0 0
        %535 = vmatpush1.bf16.msra.mxu0 0
        %536 = vmatprep.subr.bf16.mxu0 0
        %537 = vmatpush1.bf16.msra.mxu0 0
        %538 = vmatprep.subr.bf16.mxu0 0
        %539 = vmatpush1.bf16.msra.mxu0 0
        %540 = vmatprep.subr.bf16.mxu0 0
        %541 = vmatpush1.bf16.msra.mxu0 0
        %542 = vmatprep.subr.bf16.mxu0 0
        %543 = vmatpush1.bf16.msra.mxu0 0
        %544 = vmatprep.subr.bf16.mxu0 0
        %545 = vmatpush1.bf16.msra.mxu0 0
        %546 = vmatprep.subr.bf16.mxu0 0
        %547 = vmatpush1.bf16.msra.mxu0 0
        %548 = vmatprep.subr.bf16.mxu0 0
        %549 = vmatpush1.bf16.msra.mxu0 0
        %550 = vmatprep.subr.bf16.mxu0 0
        %551 = vmatpush1.bf16.msra.mxu0 0
        %552 = vmatprep.subr.bf16.mxu0 0
        %553 = vmatpush1.bf16.msra.mxu0 0
        %554 = vmatprep.subr.bf16.mxu0 0
        %555 = vmatpush1.bf16.msra.mxu0 0
        %556 = vmatprep.subr.bf16.mxu0 0
        %557 = vmatpush1.bf16.msra.mxu0 0
        %558 = vmatprep.subr.bf16.mxu0 0
        %559 = vmatpush1.bf16.msra.mxu0 0
        %560 = vmatprep.subr.bf16.mxu0 0
        %561 = vmatpush1.bf16.msra.mxu0 0
        %562 = vmatprep.mubr.bf16.mxu0 0
        %563 = vmatmul.mubr.bf16.gmra.mrb[0].mxu0 %v528
        %v564 = vpop.f32.mrb[0].mxu0
        %v565 = vadd.f32 %v524, %v564
        %v566 = vpop.f32.mrb[0].mxu0
        %v567 = vpop.f32.mrb[0].mxu0
        %v568 = vadd.f32 %v524, %v567
        %v569 = vpop.f32.mrb[0].mxu0
        %570 = vdwg.mxu0
        %vm571 = vcmask 523264
        %572 = vst.msk [vmem:[%s492] sm:$0xff] %vm571, %v565
        %573 = vst.msk [vmem:[%s492 + $0x8] sm:$0xff] %vm571, %v568
        %v574 = vld [vmem:[%s3] sm:$0xff]
        %v575 = vld [vmem:[%s3 + $0x8] sm:$0xff]
        %v576 = vpack.c.bf16 %v575, %v574
        %v577 = vld [vmem:[%s4] sm:$0x1]
        %v579 = vlaneseq
        %v580 = vshrl.u32 %v579, 7
        %v581 = vsub.s32 0, %v580
        %v582 = vrot.slane %v577, %v581
        %584 = vmatprep.subr.bf16.mxu0 0
        %585 = vmatpush1.bf16.msra.mxu0 %v576
        %586 = vmatprep.subr.bf16.mxu0 0
        %587 = vmatpush1.bf16.msra.mxu0 0
        %588 = vmatprep.subr.bf16.mxu0 0
        %589 = vmatpush1.bf16.msra.mxu0 0
        %590 = vmatprep.subr.bf16.mxu0 0
        %591 = vmatpush1.bf16.msra.mxu0 0
        %592 = vmatprep.subr.bf16.mxu0 0
        %593 = vmatpush1.bf16.msra.mxu0 0
        %594 = vmatprep.subr.bf16.mxu0 0
        %595 = vmatpush1.bf16.msra.mxu0 0
        %596 = vmatprep.subr.bf16.mxu0 0
        %597 = vmatpush1.bf16.msra.mxu0 0
        %598 = vmatprep.subr.bf16.mxu0 0
        %599 = vmatpush1.bf16.msra.mxu0 0
        %600 = vmatprep.subr.bf16.mxu0 0
        %601 = vmatpush1.bf16.msra.mxu0 0
        %602 = vmatprep.subr.bf16.mxu0 0
        %603 = vmatpush1.bf16.msra.mxu0 0
        %604 = vmatprep.subr.bf16.mxu0 0
        %605 = vmatpush1.bf16.msra.mxu0 0
        %606 = vmatprep.subr.bf16.mxu0 0
        %607 = vmatpush1.bf16.msra.mxu0 0
        %608 = vmatprep.subr.bf16.mxu0 0
        %609 = vmatpush1.bf16.msra.mxu0 0
        %610 = vmatprep.subr.bf16.mxu0 0
        %611 = vmatpush1.bf16.msra.mxu0 0
        %612 = vmatprep.subr.bf16.mxu0 0
        %613 = vmatpush1.bf16.msra.mxu0 0
        %614 = vmatprep.subr.bf16.mxu0 0
        %615 = vmatpush1.bf16.msra.mxu0 0
        %616 = vmatprep.mubr.bf16.mxu0 0
        %617 = vmatmul.mubr.bf16.gmra.mrb[0].mxu0 %v528
        %v618 = vpop.f32.mrb[0].mxu0
        %v619 = vadd.f32 %v582, %v618
        %v620 = vpop.f32.mrb[0].mxu0
        %v621 = vpop.f32.mrb[0].mxu0
        %v622 = vadd.f32 %v582, %v621
        %v623 = vpop.f32.mrb[0].mxu0
        %624 = vdwg.mxu0
        %625 = vst.msk [vmem:[%s498] sm:$0xff] %vm571, %v619
        %626 = vst.msk [vmem:[%s498 + $0x8] sm:$0xff] %vm571, %v622
        %v627 = vld [vmem:[#allocation2] sm:$0xff]
        %v628 = vld [vmem:[#allocation2 + $0x8] sm:$0xff]
        %v629 = vpack.c.bf16 %v628, %v627
        %v630 = vld [vmem:[#allocation4] sm:$0x1]
        %v632 = vlaneseq
        %v633 = vshrl.u32 %v632, 7
        %v634 = vsub.s32 0, %v633
        %v635 = vrot.slane %v630, %v634
        %637 = vmatprep.subr.bf16.mxu0 0
        %638 = vmatpush1.bf16.msra.mxu0 %v629
        %639 = vmatprep.subr.bf16.mxu0 0
        %640 = vmatpush1.bf16.msra.mxu0 0
        %641 = vmatprep.subr.bf16.mxu0 0
        %642 = vmatpush1.bf16.msra.mxu0 0
        %643 = vmatprep.subr.bf16.mxu0 0
        %644 = vmatpush1.bf16.msra.mxu0 0
        %645 = vmatprep.subr.bf16.mxu0 0
        %646 = vmatpush1.bf16.msra.mxu0 0
        %647 = vmatprep.subr.bf16.mxu0 0
        %648 = vmatpush1.bf16.msra.mxu0 0
        %649 = vmatprep.subr.bf16.mxu0 0
        %650 = vmatpush1.bf16.msra.mxu0 0
        %651 = vmatprep.subr.bf16.mxu0 0
        %652 = vmatpush1.bf16.msra.mxu0 0
        %653 = vmatprep.subr.bf16.mxu0 0
        %654 = vmatpush1.bf16.msra.mxu0 0
        %655 = vmatprep.subr.bf16.mxu0 0
        %656 = vmatpush1.bf16.msra.mxu0 0
        %657 = vmatprep.subr.bf16.mxu0 0
        %658 = vmatpush1.bf16.msra.mxu0 0
        %659 = vmatprep.subr.bf16.mxu0 0
        %660 = vmatpush1.bf16.msra.mxu0 0
        %661 = vmatprep.subr.bf16.mxu0 0
        %662 = vmatpush1.bf16.msra.mxu0 0
        %663 = vmatprep.subr.bf16.mxu0 0
        %664 = vmatpush1.bf16.msra.mxu0 0
        %665 = vmatprep.subr.bf16.mxu0 0
        %666 = vmatpush1.bf16.msra.mxu0 0
        %667 = vmatprep.subr.bf16.mxu0 0
        %668 = vmatpush1.bf16.msra.mxu0 0
        %669 = vmatprep.mubr.bf16.mxu0 0
        %670 = vmatmul.mubr.bf16.gmra.mrb[0].mxu0 %v528
        %v671 = vpop.f32.mrb[0].mxu0
        %v672 = vadd.f32 %v635, %v671
        %v673 = vpop.f32.mrb[0].mxu0
        %v674 = vpop.f32.mrb[0].mxu0
        %v675 = vadd.f32 %v635, %v674
        %v676 = vpop.f32.mrb[0].mxu0
        %677 = vdwg.mxu0
        %678 = vst.msk [vmem:[%s504] sm:$0xff] %vm571, %v672
        %679 = vst.msk [vmem:[%s504 + $0x8] sm:$0xff] %vm571, %v675
        %v680 = vld [vmem:[#allocation6] sm:$0xff]
        %v681 = vld [vmem:[#allocation6 + $0x8] sm:$0xff]
        %v682 = vpack.c.bf16 %v681, %v680
        %v683 = vld [vmem:[#allocation7] sm:$0x1]
        %v685 = vlaneseq
        %v686 = vshrl.u32 %v685, 7
        %v687 = vsub.s32 0, %v686
        %v688 = vrot.slane %v683, %v687
        %690 = vmatprep.subr.bf16.mxu0 0
        %691 = vmatpush1.bf16.msra.mxu0 %v682
        %692 = vmatprep.subr.bf16.mxu0 0
        %693 = vmatpush1.bf16.msra.mxu0 0
        %694 = vmatprep.subr.bf16.mxu0 0
        %695 = vmatpush1.bf16.msra.mxu0 0
        %696 = vmatprep.subr.bf16.mxu0 0
        %697 = vmatpush1.bf16.msra.mxu0 0
        %698 = vmatprep.subr.bf16.mxu0 0
        %699 = vmatpush1.bf16.msra.mxu0 0
        %700 = vmatprep.subr.bf16.mxu0 0
        %701 = vmatpush1.bf16.msra.mxu0 0
        %702 = vmatprep.subr.bf16.mxu0 0
        %703 = vmatpush1.bf16.msra.mxu0 0
        %704 = vmatprep.subr.bf16.mxu0 0
        %705 = vmatpush1.bf16.msra.mxu0 0
        %706 = vmatprep.subr.bf16.mxu0 0
        %707 = vmatpush1.bf16.msra.mxu0 0
        %708 = vmatprep.subr.bf16.mxu0 0
        %709 = vmatpush1.bf16.msra.mxu0 0
        %710 = vmatprep.subr.bf16.mxu0 0
        %711 = vmatpush1.bf16.msra.mxu0 0
        %712 = vmatprep.subr.bf16.mxu0 0
        %713 = vmatpush1.bf16.msra.mxu0 0
        %714 = vmatprep.subr.bf16.mxu0 0
        %715 = vmatpush1.bf16.msra.mxu0 0
        %716 = vmatprep.subr.bf16.mxu0 0
        %717 = vmatpush1.bf16.msra.mxu0 0
        %718 = vmatprep.subr.bf16.mxu0 0
        %719 = vmatpush1.bf16.msra.mxu0 0
        %720 = vmatprep.subr.bf16.mxu0 0
        %721 = vmatpush1.bf16.msra.mxu0 0
        %722 = vmatprep.mubr.bf16.mxu0 0
        %723 = vmatmul.mubr.bf16.gmra.mrb[0].mxu0 %v528
        %v724 = vpop.f32.mrb[0].mxu0
        %v725 = vadd.f32 %v688, %v724
        %v726 = vpop.f32.mrb[0].mxu0
        %v727 = vpop.f32.mrb[0].mxu0
        %v728 = vadd.f32 %v688, %v727
        %v729 = vpop.f32.mrb[0].mxu0
        %730 = vdwg.mxu0
        %731 = vst.msk [vmem:[%s510] sm:$0xff] %vm571, %v725
        %732 = vst.msk [vmem:[%s510 + $0x8] sm:$0xff] %vm571, %v728
        %s733 = smul.u32 2, %s27
        %p734 = scmp.lt.s32.totalorder %s733, 3
        %s735 = scalar_select %p734, %s733, 3
        %s736 = smul.addr %s735, 8
        %s737 = scalar_lea.vmem %s9, %s736
        %s738 = smul.u32 2, %s27
        %p739 = scmp.lt.s32.totalorder %s738, 3
        %s740 = scalar_select %p739, %s738, 3
        %s741 = smul.addr %s740, 8
        %s742 = scalar_lea.vmem %s10, %s741
        %s743 = smul.u32 2, %s27
        %p744 = scmp.lt.s32.totalorder %s743, 3
        %s745 = scalar_select %p744, %s743, 3
        %s746 = smul.addr %s745, 8
        %s747 = scalar_lea.vmem %s11, %s746
        %s748 = smul.u32 2, %s27
        %p749 = scmp.lt.s32.totalorder %s748, 3
        %s750 = scalar_select %p749, %s748, 3
        %s751 = smul.addr %s750, 8
        %s752 = scalar_lea.vmem %s12, %s751
        // Predicated region
        $region73: #{dualfen_forward.5} parent=55 // pred_check
          %p753 = pneg %p239
        $region74: #{dualfen_forward.5} parent=55 // pred_check_branch
          %755 = sbr.rel (%p753) target = $region76
        $region75: #{dualfen_forward.5} parent=55 // pred_region
          %s756 = smul.u32 2, %s27
        $region76: #{dualfen_forward.5} parent=55 // pred_fallthru
          _
        // Predicated region
        $region77: #{dualfen_forward.5} parent=55 // pred_check
          %p757 = pneg %p265
        $region78: #{dualfen_forward.5} parent=55 // pred_check_branch
          %759 = sbr.rel (%p757) target = $region80
        $region79: #{dualfen_forward.5} parent=55 // pred_region
          %s760 = smul.u32 2, %s27
        $region80: #{dualfen_forward.5} parent=55 // pred_fallthru
          _
        // Predicated region
        $region81: #{dualfen_forward.5} parent=55 // pred_check
          %p761 = pneg %p291
        $region82: #{dualfen_forward.5} parent=55 // pred_check_branch
          %763 = sbr.rel (%p761) target = $region84
        $region83: #{dualfen_forward.5} parent=55 // pred_region
          %s764 = smul.u32 2, %s27
        $region84: #{dualfen_forward.5} parent=55 // pred_fallthru
          _
        // Predicated region
        $region85: #{dualfen_forward.5} parent=55 // pred_check
          %p765 = pneg %p317
        $region86: #{dualfen_forward.5} parent=55 // pred_check_branch
          %767 = sbr.rel (%p765) target = $region88
        $region87: #{dualfen_forward.5} parent=55 // pred_region
          %s768 = smul.u32 2, %s27
        $region88: #{dualfen_forward.5} parent=55 // pred_fallthru
          _
      $region56: #{dualfen_forward.5} parent=5 // pred_fallthru
        _
      %p769 = scmp.le.s32.totalorder 2, %s22
      // Predicated region
      $region89: #{dualfen_forward.5} parent=5 // pred_check
        %p770 = pneg %p769
      $region90: #{dualfen_forward.5} parent=5 // pred_check_branch
        %772 = sbr.rel (%p770) target = $region92
      $region91: #{dualfen_forward.5} parent=5 // pred_region
        %s773 = ssub.s32 %s22, 2
        // Predicated region
        $region93: #{dualfen_forward.5} parent=91 // pred_check
          %p774 = pneg %p245
        $region94: #{dualfen_forward.5} parent=91 // pred_check_branch
          %776 = sbr.rel (%p774) target = $region96
        $region95: #{dualfen_forward.5} parent=91 // pred_region
          %s777 = smul.u32 2, %s28
          %p778 = scmp.lt.s32.totalorder %s777, 3
          %s779 = scalar_select %p778, %s777, 3
          %s780 = smul.addr %s779, 8
          %s781 = scalar_lea.vmem %s9, %s780
        $region96: #{dualfen_forward.5} parent=91 // pred_fallthru
          _
        // Predicated region
        $region97: #{dualfen_forward.5} parent=91 // pred_check
          %p782 = pneg %p271
        $region98: #{dualfen_forward.5} parent=91 // pred_check_branch
          %784 = sbr.rel (%p782) target = $region100
        $region99: #{dualfen_forward.5} parent=91 // pred_region
          %s785 = smul.u32 2, %s28
          %p786 = scmp.lt.s32.totalorder %s785, 3
          %s787 = scalar_select %p786, %s785, 3
          %s788 = smul.addr %s787, 8
          %s789 = scalar_lea.vmem %s10, %s788
        $region100: #{dualfen_forward.5} parent=91 // pred_fallthru
          _
        // Predicated region
        $region101: #{dualfen_forward.5} parent=91 // pred_check
          %p790 = pneg %p297
        $region102: #{dualfen_forward.5} parent=91 // pred_check_branch
          %792 = sbr.rel (%p790) target = $region104
        $region103: #{dualfen_forward.5} parent=91 // pred_region
          %s793 = smul.u32 2, %s28
          %p794 = scmp.lt.s32.totalorder %s793, 3
          %s795 = scalar_select %p794, %s793, 3
          %s796 = smul.addr %s795, 8
          %s797 = scalar_lea.vmem %s11, %s796
        $region104: #{dualfen_forward.5} parent=91 // pred_fallthru
          _
        // Predicated region
        $region105: #{dualfen_forward.5} parent=91 // pred_check
          %p798 = pneg %p323
        $region106: #{dualfen_forward.5} parent=91 // pred_check_branch
          %800 = sbr.rel (%p798) target = $region108
        $region107: #{dualfen_forward.5} parent=91 // pred_region
          %s801 = smul.u32 2, %s28
          %p802 = scmp.lt.s32.totalorder %s801, 3
          %s803 = scalar_select %p802, %s801, 3
          %s804 = smul.addr %s803, 8
          %s805 = scalar_lea.vmem %s12, %s804
        $region108: #{dualfen_forward.5} parent=91 // pred_fallthru
          _
      $region92: #{dualfen_forward.5} parent=5 // pred_fallthru
        _
    $region6: #{dualfen_forward.5} parent=1 // loop_footer
      %s26 = sadd.s32 1, %s22
    $region7: #{dualfen_forward.5} parent=1 // loop_footer_branch
      %21 = sbr.rel target = $region3
    $region8: #{dualfen_forward.5} parent=1 // loop_exit
      _
    %806 = vsyncpa [#allocation3], 1
    %s807 = scalar_lea.sflag [#allocation3], 1
    %808 = vsyncpa %s807, 1
    %809 = vsyncpa [#allocation5], 1
    %810 = vsyncpa [#allocation8], 1

// kernel: dualfen_forward.6
$region0: #{dualfen_forward.6}
  #allocation0 [shape = 'u32[]', space=smem, size = 0x4, offset = 0x4, fixed_abs, tag = 'smem constant byte address 0x4 - core index']
  #allocation1 [shape = 'u32[144,128]{1,0:T(1,128)}', space=vmem, size = 0x12000, scoped, tag = 'internal scratch']
  %s0 = inlined_call_operand.vmem [shape: f32[32,4,16], index: 0, kind: input, shape index: {}]
  %s1 = inlined_call_operand.vmem [shape: f32[32,4,16], index: 1, kind: input, shape index: {}]
  %s2 = inlined_call_operand.vmem [shape: f32[32,4,16], index: 2, kind: input, shape index: {}]
  %s3 = inlined_call_operand.vmem [shape: f32[32,4,16], index: 3, kind: input, shape index: {}]
  %s4 = inlined_call_operand.vmem [shape: f32[32,4,16], index: 4, kind: output, shape index: {}]
  %s5 = sld [smem:[#allocation0]]
  $region49: #{dualfen_forward.6} parent=0
    _
  %s7 = ssub.s32 1, %s5
  %s8 = scalar_select 0, %s7, %s5
  loop: start=0, step=1, limit=4
  $region2: #{dualfen_forward.6} parent=0 // loop_pre_header
    _
  $region3: #{dualfen_forward.6} parent=0 // loop_header
    %s10 = sphi 0, %s14
    %p11 = scmp.ge.s32.totalorder %s10, 4
    %s20 = sphi 0, %s22
    %s23 = sphi 0, %s20
    %s24 = sphi 0, %s23
    %s40 = sphi 0, %s24
    %s46 = sphi 0, %s48
    %s49 = sphi 0, %s46
    %s50 = sphi 0, %s49
    %s66 = sphi 0, %s50
    %s72 = sphi 0, %s74
    %s75 = sphi 0, %s72
    %s76 = sphi 0, %s75
    %s92 = sphi 0, %s76
    %s98 = sphi 0, %s100
    %s101 = sphi 0, %s98
    %s102 = sphi 0, %s101
    %s118 = sphi 0, %s102
    %s124 = sphi 0, %s126
    %s127 = sphi 0, %s124
    %s128 = sphi 0, %s127
    %s144 = sphi 0, %s128
  $region4: #{dualfen_forward.6} parent=0 // loop_header_branch
    %13 = sbr.rel (%p11) target = $region8
  $region5: #{dualfen_forward.6} parent=0 // loop_body
    %s15 = ssub.s32 %s10, 1
    %s16 = ssub.s32 %s10, 2
    %s17 = sadd.s32 %s10, 1
    %s18 = ssub.s32 %s10, %s17
    %p19 = scmp.eq.s32.totalorder %s18, 0
    %s21 = sadd.s32 %s20, 1
    %s22 = scalar_select %p19, %s20, %s21
    %p25 = pneg %p19
    %p26 = scmp.eq.s32.totalorder %s10, 1
    %p27 = por %p25, %p26
    %p28 = scmp.ne.s32.totalorder %s20, %s23
    %p29 = scmp.eq.s32.totalorder %s10, 0
    %p30 = por %p28, %p29
    %p31 = scmp.ne.s32.totalorder %s20, %s23
    %p32 = scmp.eq.s32.totalorder %s15, 1
    %p33 = por %p31, %p32
    %p34 = scmp.ne.s32.totalorder %s23, %s24
    %p35 = scmp.eq.s32.totalorder %s15, 0
    %p36 = por %p34, %p35
    %p37 = scmp.ne.s32.totalorder %s23, %s24
    %p38 = scmp.eq.s32.totalorder %s16, 1
    %p39 = por %p37, %p38
    %p41 = scmp.ne.s32.totalorder %s24, %s40
    %p42 = scmp.eq.s32.totalorder %s16, 0
    %p43 = por %p41, %p42
    %s44 = ssub.s32 %s10, %s17
    %p45 = scmp.eq.s32.totalorder %s44, 0
    %s47 = sadd.s32 %s46, 1
    %s48 = scalar_select %p45, %s46, %s47
    %p51 = pneg %p45
    %p52 = scmp.eq.s32.totalorder %s10, 1
    %p53 = por %p51, %p52
    %p54 = scmp.ne.s32.totalorder %s46, %s49
    %p55 = scmp.eq.s32.totalorder %s10, 0
    %p56 = por %p54, %p55
    %p57 = scmp.ne.s32.totalorder %s46, %s49
    %p58 = scmp.eq.s32.totalorder %s15, 1
    %p59 = por %p57, %p58
    %p60 = scmp.ne.s32.totalorder %s49, %s50
    %p61 = scmp.eq.s32.totalorder %s15, 0
    %p62 = por %p60, %p61
    %p63 = scmp.ne.s32.totalorder %s49, %s50
    %p64 = scmp.eq.s32.totalorder %s16, 1
    %p65 = por %p63, %p64
    %p67 = scmp.ne.s32.totalorder %s50, %s66
    %p68 = scmp.eq.s32.totalorder %s16, 0
    %p69 = por %p67, %p68
    %s70 = ssub.s32 %s10, %s17
    %p71 = scmp.eq.s32.totalorder %s70, 0
    %s73 = sadd.s32 %s72, 1
    %s74 = scalar_select %p71, %s72, %s73
    %p77 = pneg %p71
    %p78 = scmp.eq.s32.totalorder %s10, 1
    %p79 = por %p77, %p78
    %p80 = scmp.ne.s32.totalorder %s72, %s75
    %p81 = scmp.eq.s32.totalorder %s10, 0
    %p82 = por %p80, %p81
    %p83 = scmp.ne.s32.totalorder %s72, %s75
    %p84 = scmp.eq.s32.totalorder %s15, 1
    %p85 = por %p83, %p84
    %p86 = scmp.ne.s32.totalorder %s75, %s76
    %p87 = scmp.eq.s32.totalorder %s15, 0
    %p88 = por %p86, %p87
    %p89 = scmp.ne.s32.totalorder %s75, %s76
    %p90 = scmp.eq.s32.totalorder %s16, 1
    %p91 = por %p89, %p90
    %p93 = scmp.ne.s32.totalorder %s76, %s92
    %p94 = scmp.eq.s32.totalorder %s16, 0
    %p95 = por %p93, %p94
    %s96 = ssub.s32 %s10, %s17
    %p97 = scmp.eq.s32.totalorder %s96, 0
    %s99 = sadd.s32 %s98, 1
    %s100 = scalar_select %p97, %s98, %s99
    %p103 = pneg %p97
    %p104 = scmp.eq.s32.totalorder %s10, 1
    %p105 = por %p103, %p104
    %p106 = scmp.ne.s32.totalorder %s98, %s101
    %p107 = scmp.eq.s32.totalorder %s10, 0
    %p108 = por %p106, %p107
    %p109 = scmp.ne.s32.totalorder %s98, %s101
    %p110 = scmp.eq.s32.totalorder %s15, 1
    %p111 = por %p109, %p110
    %p112 = scmp.ne.s32.totalorder %s101, %s102
    %p113 = scmp.eq.s32.totalorder %s15, 0
    %p114 = por %p112, %p113
    %p115 = scmp.ne.s32.totalorder %s101, %s102
    %p116 = scmp.eq.s32.totalorder %s16, 1
    %p117 = por %p115, %p116
    %p119 = scmp.ne.s32.totalorder %s102, %s118
    %p120 = scmp.eq.s32.totalorder %s16, 0
    %p121 = por %p119, %p120
    %s122 = ssub.s32 %s10, %s17
    %p123 = scmp.eq.s32.totalorder %s122, 0
    %s125 = sadd.s32 %s124, 1
    %s126 = scalar_select %p123, %s124, %s125
    %p129 = pneg %p123
    %p130 = scmp.eq.s32.totalorder %s10, 1
    %p131 = por %p129, %p130
    %p132 = scmp.ne.s32.totalorder %s124, %s127
    %p133 = scmp.eq.s32.totalorder %s10, 0
    %p134 = por %p132, %p133
    %p135 = scmp.ne.s32.totalorder %s124, %s127
    %p136 = scmp.eq.s32.totalorder %s15, 1
    %p137 = por %p135, %p136
    %p138 = scmp.ne.s32.totalorder %s127, %s128
    %p139 = scmp.eq.s32.totalorder %s15, 0
    %p140 = por %p138, %p139
    %p141 = scmp.ne.s32.totalorder %s127, %s128
    %p142 = scmp.eq.s32.totalorder %s16, 1
    %p143 = por %p141, %p142
    %p145 = scmp.ne.s32.totalorder %s128, %s144
    %p146 = scmp.eq.s32.totalorder %s16, 0
    %p147 = por %p145, %p146
    %p148 = scmp.le.s32.totalorder 1, %s10
    %p149 = scmp.lt.s32.totalorder %s10, 3
    %p150 = pnand %p148, %p149
    %p151 = pneg %p150
    // Predicated region
    $region9: #{dualfen_forward.6} parent=5 // pred_check
      _
    $region10: #{dualfen_forward.6} parent=5 // pred_check_branch
      %153 = sbr.rel (%p150) target = $region12
    $region11: #{dualfen_forward.6} parent=5 // pred_region
      %s154 = ssub.s32 %s10, 1
    $region12: #{dualfen_forward.6} parent=5 // pred_fallthru
      _
    %p155 = scmp.lt.s32.totalorder %s10, 2
    // Predicated region
    $region13: #{dualfen_forward.6} parent=5 // pred_check
      %p156 = pneg %p155
    $region14: #{dualfen_forward.6} parent=5 // pred_check_branch
      %158 = sbr.rel (%p156) target = $region16
    $region15: #{dualfen_forward.6} parent=5 // pred_region
      // Predicated region
      $region17: #{dualfen_forward.6} parent=15 // pred_check
        %p159 = pneg %p30
      $region18: #{dualfen_forward.6} parent=15 // pred_check_branch
        %161 = sbr.rel (%p159) target = $region20
      $region19: #{dualfen_forward.6} parent=15 // pred_region
        %s162 = smul.u32 16, %s10
        %p163 = scmp.lt.s32.totalorder %s162, 31
        %s164 = scalar_select %p163, %s162, 31
        %s165 = smul.addr %s164, 4
        %s166 = scalar_lea.vmem %s0, %s165
        %s167 = smul.u32 16, %s10
      $region20: #{dualfen_forward.6} parent=15 // pred_fallthru
        _
      // Predicated region
      $region21: #{dualfen_forward.6} parent=15 // pred_check
        %p168 = pneg %p56
      $region22: #{dualfen_forward.6} parent=15 // pred_check_branch
        %170 = sbr.rel (%p168) target = $region24
      $region23: #{dualfen_forward.6} parent=15 // pred_region
        %s171 = smul.u32 16, %s10
        %p172 = scmp.lt.s32.totalorder %s171, 31
        %s173 = scalar_select %p172, %s171, 31
        %s174 = smul.addr %s173, 4
        %s175 = scalar_lea.vmem %s1, %s174
        %s176 = smul.u32 16, %s10
      $region24: #{dualfen_forward.6} parent=15 // pred_fallthru
        _
      // Predicated region
      $region25: #{dualfen_forward.6} parent=15 // pred_check
        %p177 = pneg %p82
      $region26: #{dualfen_forward.6} parent=15 // pred_check_branch
        %179 = sbr.rel (%p177) target = $region28
      $region27: #{dualfen_forward.6} parent=15 // pred_region
        %s180 = smul.u32 16, %s10
        %p181 = scmp.lt.s32.totalorder %s180, 31
        %s182 = scalar_select %p181, %s180, 31
        %s183 = smul.addr %s182, 4
        %s184 = scalar_lea.vmem %s2, %s183
        %s185 = smul.u32 16, %s10
      $region28: #{dualfen_forward.6} parent=15 // pred_fallthru
        _
      // Predicated region
      $region29: #{dualfen_forward.6} parent=15 // pred_check
        %p186 = pneg %p108
      $region30: #{dualfen_forward.6} parent=15 // pred_check_branch
        %188 = sbr.rel (%p186) target = $region32
      $region31: #{dualfen_forward.6} parent=15 // pred_region
        %s189 = smul.u32 16, %s10
        %p190 = scmp.lt.s32.totalorder %s189, 31
        %s191 = scalar_select %p190, %s189, 31
        %s192 = smul.addr %s191, 4
        %s193 = scalar_lea.vmem %s3, %s192
        %s194 = smul.u32 16, %s10
      $region32: #{dualfen_forward.6} parent=15 // pred_fallthru
        _
    $region16: #{dualfen_forward.6} parent=5 // pred_fallthru
      _
    %p195 = scmp.le.s32.totalorder 1, %s10
    %p196 = scmp.lt.s32.totalorder %s10, 3
    %p197 = pnand %p195, %p196
    %p198 = pneg %p197
    // Predicated region
    $region33: #{dualfen_forward.6} parent=5 // pred_check
      _
    $region34: #{dualfen_forward.6} parent=5 // pred_check_branch
      %200 = sbr.rel (%p197) target = $region36
    $region35: #{dualfen_forward.6} parent=5 // pred_region
      %s201 = ssub.s32 %s10, 1
      %s202 = smul.u32 16, %s15
      %p203 = scmp.lt.s32.totalorder %s202, 31
      %s204 = scalar_select %p203, %s202, 31
      %s205 = smul.addr %s204, 4
      %s206 = scalar_lea.vmem %s0, %s205
      %p207 = pneg %p36
      %p208 = pneg %p33
      %s209 = smul.u32 16, %s15
      %p210 = scmp.lt.s32.totalorder %s209, 31
      %s211 = scalar_select %p210, %s209, 31
      %s212 = smul.addr %s211, 4
      %s213 = scalar_lea.vmem %s1, %s212
      %p214 = pneg %p62
      %p215 = pneg %p59
      %s216 = smul.u32 16, %s15
      %p217 = scmp.lt.s32.totalorder %s216, 31
      %s218 = scalar_select %p217, %s216, 31
      %s219 = smul.addr %s218, 4
      %s220 = scalar_lea.vmem %s2, %s219
      %p221 = pneg %p88
      %p222 = pneg %p85
      %s223 = smul.u32 16, %s15
      %p224 = scmp.lt.s32.totalorder %s223, 31
      %s225 = scalar_select %p224, %s223, 31
      %s226 = smul.addr %s225, 4
      %s227 = scalar_lea.vmem %s3, %s226
      %p228 = pneg %p114
      %p229 = pneg %p111
      %p230 = pneg %p140
      %p231 = pneg %p137
      %s232 = smul.u32 16, %s15
      %p233 = scmp.lt.s32.totalorder %s232, 31
      %s234 = scalar_select %p233, %s232, 31
      %s235 = smul.addr %s234, 4
      %s236 = scalar_lea.vmem %s4, %s235
      %s237 = smul.u32 16, %s15
      %p238 = scmp.lt.s32.totalorder %s237, 31
      %s239 = scalar_select %p238, %s237, 31
      %s240 = smul.addr %s239, 4
      %s241 = scalar_lea.vmem %s0, %s240
      %s242 = smul.u32 16, %s15
      %s243 = smul.u32 16, %s15
      %p244 = scmp.lt.s32.totalorder %s243, 31
      %s245 = scalar_select %p244, %s243, 31
      %s246 = smul.addr %s245, 4
      %s247 = scalar_lea.vmem %s1, %s246
      %s248 = smul.u32 16, %s15
      %s249 = smul.u32 16, %s15
      %p250 = scmp.lt.s32.totalorder %s249, 31
      %s251 = scalar_select %p250, %s249, 31
      %s252 = smul.addr %s251, 4
      %s253 = scalar_lea.vmem %s2, %s252
      %s254 = smul.u32 16, %s15
      %s255 = smul.u32 16, %s15
      %p256 = scmp.lt.s32.totalorder %s255, 31
      %s257 = scalar_select %p256, %s255, 31
      %s258 = smul.addr %s257, 4
      %s259 = scalar_lea.vmem %s3, %s258
      %s260 = smul.u32 16, %s15
      %s261 = smul.u32 16, %s15
      %p262 = scmp.lt.s32.totalorder %s261, 31
      %s263 = scalar_select %p262, %s261, 31
      %s264 = smul.addr %s263, 4
      %s265 = scalar_lea.vmem %s4, %s264
      %s266 = smul.u32 16, %s15
      %v268 = vld [vmem:[%s241] sm:$0xf]
      %v269 = vld [vmem:[%s241 + $0x4] sm:$0xf]
      %v270 = vld [vmem:[%s241 + $0x8] sm:$0xf]
      %v271 = vld [vmem:[%s241 + $0xc] sm:$0xf]
      %v272 = vld [vmem:[%s241 + $0x10] sm:$0xf]
      %v273 = vld [vmem:[%s241 + $0x14] sm:$0xf]
      %v274 = vld [vmem:[%s241 + $0x18] sm:$0xf]
      %v275 = vld [vmem:[%s241 + $0x1c] sm:$0xf]
      %v276 = vld [vmem:[%s241 + $0x20] sm:$0xf]
      %v277 = vld [vmem:[%s241 + $0x24] sm:$0xf]
      %v278 = vld [vmem:[%s241 + $0x28] sm:$0xf]
      %v279 = vld [vmem:[%s241 + $0x2c] sm:$0xf]
      %v280 = vld [vmem:[%s241 + $0x30] sm:$0xf]
      %v281 = vld [vmem:[%s241 + $0x34] sm:$0xf]
      %v282 = vld [vmem:[%s241 + $0x38] sm:$0xf]
      %v283 = vld [vmem:[%s241 + $0x3c] sm:$0xf]
      %v284 = vpack.c.bf16 %v268, %v268
      %v285 = vpack.c.bf16 %v269, %v269
      %v286 = vpack.c.bf16 %v270, %v270
      %v287 = vpack.c.bf16 %v271, %v271
      %v288 = vpack.c.bf16 %v272, %v272
      %v289 = vpack.c.bf16 %v273, %v273
      %v290 = vpack.c.bf16 %v274, %v274
      %v291 = vpack.c.bf16 %v275, %v275
      %v292 = vpack.c.bf16 %v276, %v276
      %v293 = vpack.c.bf16 %v277, %v277
      %v294 = vpack.c.bf16 %v278, %v278
      %v295 = vpack.c.bf16 %v279, %v279
      %v296 = vpack.c.bf16 %v280, %v280
      %v297 = vpack.c.bf16 %v281, %v281
      %v298 = vpack.c.bf16 %v282, %v282
      %v299 = vpack.c.bf16 %v283, %v283
      %v300 = vld [vmem:[%s247] sm:$0xf]
      %v301 = vld [vmem:[%s247 + $0x4] sm:$0xf]
      %v302 = vld [vmem:[%s247 + $0x8] sm:$0xf]
      %v303 = vld [vmem:[%s247 + $0xc] sm:$0xf]
      %v304 = vld [vmem:[%s247 + $0x10] sm:$0xf]
      %v305 = vld [vmem:[%s247 + $0x14] sm:$0xf]
      %v306 = vld [vmem:[%s247 + $0x18] sm:$0xf]
      %v307 = vld [vmem:[%s247 + $0x1c] sm:$0xf]
      %v308 = vld [vmem:[%s247 + $0x20] sm:$0xf]
      %v309 = vld [vmem:[%s247 + $0x24] sm:$0xf]
      %v310 = vld [vmem:[%s247 + $0x28] sm:$0xf]
      %v311 = vld [vmem:[%s247 + $0x2c] sm:$0xf]
      %v312 = vld [vmem:[%s247 + $0x30] sm:$0xf]
      %v313 = vld [vmem:[%s247 + $0x34] sm:$0xf]
      %v314 = vld [vmem:[%s247 + $0x38] sm:$0xf]
      %v315 = vld [vmem:[%s247 + $0x3c] sm:$0xf]
      %v316 = vpack.c.bf16 %v300, %v300
      %v317 = vpack.c.bf16 %v301, %v301
      %v318 = vpack.c.bf16 %v302, %v302
      %v319 = vpack.c.bf16 %v303, %v303
      %v320 = vpack.c.bf16 %v304, %v304
      %v321 = vpack.c.bf16 %v305, %v305
      %v322 = vpack.c.bf16 %v306, %v306
      %v323 = vpack.c.bf16 %v307, %v307
      %v324 = vpack.c.bf16 %v308, %v308
      %v325 = vpack.c.bf16 %v309, %v309
      %v326 = vpack.c.bf16 %v310, %v310
      %v327 = vpack.c.bf16 %v311, %v311
      %v328 = vpack.c.bf16 %v312, %v312
      %v329 = vpack.c.bf16 %v313, %v313
      %v330 = vpack.c.bf16 %v314, %v314
      %v331 = vpack.c.bf16 %v315, %v315
      %vm332 = vcmask 130048
      %v334 = vsel %vm332, %v284, 0
      %v337 = vsel %vm332, %v316, 0
      %339 = vmatprep.subr.bf16.mxu0 0
      %340 = vmatpush1.bf16.xpose.msra.mxu0 %v337
      %341 = vmatprep.subr.bf16.mxu0 0
      %342 = vmatpush1.bf16.xpose.msra.mxu0 0
      %343 = vmatprep.subr.bf16.mxu0 0
      %344 = vmatpush1.bf16.xpose.msra.mxu0 0
      %345 = vmatprep.subr.bf16.mxu0 0
      %346 = vmatpush1.bf16.xpose.msra.mxu0 0
      %347 = vmatprep.subr.bf16.mxu0 0
      %348 = vmatpush1.bf16.xpose.msra.mxu0 0
      %349 = vmatprep.subr.bf16.mxu0 0
      %350 = vmatpush1.bf16.xpose.msra.mxu0 0
      %351 = vmatprep.subr.bf16.mxu0 0
      %352 = vmatpush1.bf16.xpose.msra.mxu0 0
      %353 = vmatprep.subr.bf16.mxu0 0
      %354 = vmatpush1.bf16.xpose.msra.mxu0 0
      %355 = vmatprep.subr.bf16.mxu0 0
      %356 = vmatpush1.bf16.xpose.msra.mxu0 0
      %357 = vmatprep.subr.bf16.mxu0 0
      %358 = vmatpush1.bf16.xpose.msra.mxu0 0
      %359 = vmatprep.subr.bf16.mxu0 0
      %360 = vmatpush1.bf16.xpose.msra.mxu0 0
      %361 = vmatprep.subr.bf16.mxu0 0
      %362 = vmatpush1.bf16.xpose.msra.mxu0 0
      %363 = vmatprep.subr.bf16.mxu0 0
      %364 = vmatpush1.bf16.xpose.msra.mxu0 0
      %365 = vmatprep.subr.bf16.mxu0 0
      %366 = vmatpush1.bf16.xpose.msra.mxu0 0
      %367 = vmatprep.subr.bf16.mxu0 0
      %368 = vmatpush1.bf16.xpose.msra.mxu0 0
      %369 = vmatprep.subr.bf16.mxu0 0
      %370 = vmatpush1.bf16.xpose.msra.mxu0 0
      %371 = vmatprep.mubr.bf16.mxu0 0
      %372 = vmatmul.mubr.bf16.gmra.mrb[0].mxu0 %v334
      %v373 = vpop.f32.mrb[0].mxu0
      %v374 = vadd.f32 0.0, %v373
      %v375 = vpop.f32.mrb[0].mxu0
      %v376 = vpop.f32.mrb[0].mxu0
      %v377 = vpop.f32.mrb[0].mxu0
      %378 = vdwg.mxu0
      %v380 = vsel %vm332, %v285, 0
      %v383 = vsel %vm332, %v317, 0
      %385 = vmatprep.subr.bf16.mxu0 0
      %386 = vmatpush1.bf16.xpose.msra.mxu0 %v383
      %387 = vmatprep.subr.bf16.mxu0 0
      %388 = vmatpush1.bf16.xpose.msra.mxu0 0
      %389 = vmatprep.subr.bf16.mxu0 0
      %390 = vmatpush1.bf16.xpose.msra.mxu0 0
      %391 = vmatprep.subr.bf16.mxu0 0
      %392 = vmatpush1.bf16.xpose.msra.mxu0 0
      %393 = vmatprep.subr.bf16.mxu0 0
      %394 = vmatpush1.bf16.xpose.msra.mxu0 0
      %395 = vmatprep.subr.bf16.mxu0 0
      %396 = vmatpush1.bf16.xpose.msra.mxu0 0
      %397 = vmatprep.subr.bf16.mxu0 0
      %398 = vmatpush1.bf16.xpose.msra.mxu0 0
      %399 = vmatprep.subr.bf16.mxu0 0
      %400 = vmatpush1.bf16.xpose.msra.mxu0 0
      %401 = vmatprep.subr.bf16.mxu0 0
      %402 = vmatpush1.bf16.xpose.msra.mxu0 0
      %403 = vmatprep.subr.bf16.mxu0 0
      %404 = vmatpush1.bf16.xpose.msra.mxu0 0
      %405 = vmatprep.subr.bf16.mxu0 0
      %406 = vmatpush1.bf16.xpose.msra.mxu0 0
      %407 = vmatprep.subr.bf16.mxu0 0
      %408 = vmatpush1.bf16.xpose.msra.mxu0 0
      %409 = vmatprep.subr.bf16.mxu0 0
      %410 = vmatpush1.bf16.xpose.msra.mxu0 0
      %411 = vmatprep.subr.bf16.mxu0 0
      %412 = vmatpush1.bf16.xpose.msra.mxu0 0
      %413 = vmatprep.subr.bf16.mxu0 0
      %414 = vmatpush1.bf16.xpose.msra.mxu0 0
      %415 = vmatprep.subr.bf16.mxu0 0
      %416 = vmatpush1.bf16.xpose.msra.mxu0 0
      %417 = vmatprep.mubr.bf16.mxu0 0
      %418 = vmatmul.mubr.bf16.gmra.mrb[0].mxu0 %v380
      %v419 = vpop.f32.mrb[0].mxu0
      %v420 = vadd.f32 0.0, %v419
      %v421 = vpop.f32.mrb[0].mxu0
      %v422 = vpop.f32.mrb[0].mxu0
      %v423 = vpop.f32.mrb[0].mxu0
      %424 = vdwg.mxu0
      %v426 = vsel %vm332, %v286, 0
      %v429 = vsel %vm332, %v318, 0
      %431 = vmatprep.subr.bf16.mxu0 0
      %432 = vmatpush1.bf16.xpose.msra.mxu0 %v429
      %433 = vmatprep.subr.bf16.mxu0 0
      %434 = vmatpush1.bf16.xpose.msra.mxu0 0
      %435 = vmatprep.subr.bf16.mxu0 0
      %436 = vmatpush1.bf16.xpose.msra.mxu0 0
      %437 = vmatprep.subr.bf16.mxu0 0
      %438 = vmatpush1.bf16.xpose.msra.mxu0 0
      %439 = vmatprep.subr.bf16.mxu0 0
      %440 = vmatpush1.bf16.xpose.msra.mxu0 0
      %441 = vmatprep.subr.bf16.mxu0 0
      %442 = vmatpush1.bf16.xpose.msra.mxu0 0
      %443 = vmatprep.subr.bf16.mxu0 0
      %444 = vmatpush1.bf16.xpose.msra.mxu0 0
      %445 = vmatprep.subr.bf16.mxu0 0
      %446 = vmatpush1.bf16.xpose.msra.mxu0 0
      %447 = vmatprep.subr.bf16.mxu0 0
      %448 = vmatpush1.bf16.xpose.msra.mxu0 0
      %449 = vmatprep.subr.bf16.mxu0 0
      %450 = vmatpush1.bf16.xpose.msra.mxu0 0
      %451 = vmatprep.subr.bf16.mxu0 0
      %452 = vmatpush1.bf16.xpose.msra.mxu0 0
      %453 = vmatprep.subr.bf16.mxu0 0
      %454 = vmatpush1.bf16.xpose.msra.mxu0 0
      %455 = vmatprep.subr.bf16.mxu0 0
      %456 = vmatpush1.bf16.xpose.msra.mxu0 0
      %457 = vmatprep.subr.bf16.mxu0 0
      %458 = vmatpush1.bf16.xpose.msra.mxu0 0
      %459 = vmatprep.subr.bf16.mxu0 0
      %460 = vmatpush1.bf16.xpose.msra.mxu0 0
      %461 = vmatprep.subr.bf16.mxu0 0
      %462 = vmatpush1.bf16.xpose.msra.mxu0 0
      %463 = vmatprep.mubr.bf16.mxu0 0
      %464 = vmatmul.mubr.bf16.gmra.mrb[0].mxu0 %v426
      %v465 = vpop.f32.mrb[0].mxu0
      %v466 = vadd.f32 0.0, %v465
      %v467 = vpop.f32.mrb[0].mxu0
      %v468 = vpop.f32.mrb[0].mxu0
      %v469 = vpop.f32.mrb[0].mxu0
      %470 = vdwg.mxu0
      %v472 = vsel %vm332, %v287, 0
      %v475 = vsel %vm332, %v319, 0
      %477 = vmatprep.subr.bf16.mxu0 0
      %478 = vmatpush1.bf16.xpose.msra.mxu0 %v475
      %479 = vmatprep.subr.bf16.mxu0 0
      %480 = vmatpush1.bf16.xpose.msra.mxu0 0
      %481 = vmatprep.subr.bf16.mxu0 0
      %482 = vmatpush1.bf16.xpose.msra.mxu0 0
      %483 = vmatprep.subr.bf16.mxu0 0
      %484 = vmatpush1.bf16.xpose.msra.mxu0 0
      %485 = vmatprep.subr.bf16.mxu0 0
      %486 = vmatpush1.bf16.xpose.msra.mxu0 0
      %487 = vmatprep.subr.bf16.mxu0 0
      %488 = vmatpush1.bf16.xpose.msra.mxu0 0
      %489 = vmatprep.subr.bf16.mxu0 0
      %490 = vmatpush1.bf16.xpose.msra.mxu0 0
      %491 = vmatprep.subr.bf16.mxu0 0
      %492 = vmatpush1.bf16.xpose.msra.mxu0 0
      %493 = vmatprep.subr.bf16.mxu0 0
      %494 = vmatpush1.bf16.xpose.msra.mxu0 0
      %495 = vmatprep.subr.bf16.mxu0 0
      %496 = vmatpush1.bf16.xpose.msra.mxu0 0
      %497 = vmatprep.subr.bf16.mxu0 0
      %498 = vmatpush1.bf16.xpose.msra.mxu0 0
      %499 = vmatprep.subr.bf16.mxu0 0
      %500 = vmatpush1.bf16.xpose.msra.mxu0 0
      %501 = vmatprep.subr.bf16.mxu0 0
      %502 = vmatpush1.bf16.xpose.msra.mxu0 0
      %503 = vmatprep.subr.bf16.mxu0 0
      %504 = vmatpush1.bf16.xpose.msra.mxu0 0
      %505 = vmatprep.subr.bf16.mxu0 0
      %506 = vmatpush1.bf16.xpose.msra.mxu0 0
      %507 = vmatprep.subr.bf16.mxu0 0
      %508 = vmatpush1.bf16.xpose.msra.mxu0 0
      %509 = vmatprep.mubr.bf16.mxu0 0
      %510 = vmatmul.mubr.bf16.gmra.mrb[0].mxu0 %v472
      %v511 = vpop.f32.mrb[0].mxu0
      %v512 = vadd.f32 0.0, %v511
      %v513 = vpop.f32.mrb[0].mxu0
      %v514 = vpop.f32.mrb[0].mxu0
      %v515 = vpop.f32.mrb[0].mxu0
      %516 = vdwg.mxu0
      %v518 = vsel %vm332, %v288, 0
      %v521 = vsel %vm332, %v320, 0
      %523 = vmatprep.subr.bf16.mxu0 0
      %524 = vmatpush1.bf16.xpose.msra.mxu0 %v521
      %525 = vmatprep.subr.bf16.mxu0 0
      %526 = vmatpush1.bf16.xpose.msra.mxu0 0
      %527 = vmatprep.subr.bf16.mxu0 0
      %528 = vmatpush1.bf16.xpose.msra.mxu0 0
      %529 = vmatprep.subr.bf16.mxu0 0
      %530 = vmatpush1.bf16.xpose.msra.mxu0 0
      %531 = vmatprep.subr.bf16.mxu0 0
      %532 = vmatpush1.bf16.xpose.msra.mxu0 0
      %533 = vmatprep.subr.bf16.mxu0 0
      %534 = vmatpush1.bf16.xpose.msra.mxu0 0
      %535 = vmatprep.subr.bf16.mxu0 0
      %536 = vmatpush1.bf16.xpose.msra.mxu0 0
      %537 = vmatprep.subr.bf16.mxu0 0
      %538 = vmatpush1.bf16.xpose.msra.mxu0 0
      %539 = vmatprep.subr.bf16.mxu0 0
      %540 = vmatpush1.bf16.xpose.msra.mxu0 0
      %541 = vmatprep.subr.bf16.mxu0 0
      %542 = vmatpush1.bf16.xpose.msra.mxu0 0
      %543 = vmatprep.subr.bf16.mxu0 0
      %544 = vmatpush1.bf16.xpose.msra.mxu0 0
      %545 = vmatprep.subr.bf16.mxu0 0
      %546 = vmatpush1.bf16.xpose.msra.mxu0 0
      %547 = vmatprep.subr.bf16.mxu0 0
      %548 = vmatpush1.bf16.xpose.msra.mxu0 0
      %549 = vmatprep.subr.bf16.mxu0 0
      %550 = vmatpush1.bf16.xpose.msra.mxu0 0
      %551 = vmatprep.subr.bf16.mxu0 0
      %552 = vmatpush1.bf16.xpose.msra.mxu0 0
      %553 = vmatprep.subr.bf16.mxu0 0
      %554 = vmatpush1.bf16.xpose.msra.mxu0 0
      %555 = vmatprep.mubr.bf16.mxu0 0
      %556 = vmatmul.mubr.bf16.gmra.mrb[0].mxu0 %v518
      %v557 = vpop.f32.mrb[0].mxu0
      %v558 = vadd.f32 0.0, %v557
      %v559 = vpop.f32.mrb[0].mxu0
      %v560 = vpop.f32.mrb[0].mxu0
      %v561 = vpop.f32.mrb[0].mxu0
      %562 = vdwg.mxu0
      %v564 = vsel %vm332, %v289, 0
      %v567 = vsel %vm332, %v321, 0
      %569 = vmatprep.subr.bf16.mxu0 0
      %570 = vmatpush1.bf16.xpose.msra.mxu0 %v567
      %571 = vmatprep.subr.bf16.mxu0 0
      %572 = vmatpush1.bf16.xpose.msra.mxu0 0
      %573 = vmatprep.subr.bf16.mxu0 0
      %574 = vmatpush1.bf16.xpose.msra.mxu0 0
      %575 = vmatprep.subr.bf16.mxu0 0
      %576 = vmatpush1.bf16.xpose.msra.mxu0 0
      %577 = vmatprep.subr.bf16.mxu0 0
      %578 = vmatpush1.bf16.xpose.msra.mxu0 0
      %579 = vmatprep.subr.bf16.mxu0 0
      %580 = vmatpush1.bf16.xpose.msra.mxu0 0
      %581 = vmatprep.subr.bf16.mxu0 0
      %582 = vmatpush1.bf16.xpose.msra.mxu0 0
      %583 = vmatprep.subr.bf16.mxu0 0
      %584 = vmatpush1.bf16.xpose.msra.mxu0 0
      %585 = vmatprep.subr.bf16.mxu0 0
      %586 = vmatpush1.bf16.xpose.msra.mxu0 0
      %587 = vmatprep.subr.bf16.mxu0 0
      %588 = vmatpush1.bf16.xpose.msra.mxu0 0
      %589 = vmatprep.subr.bf16.mxu0 0
      %590 = vmatpush1.bf16.xpose.msra.mxu0 0
      %591 = vmatprep.subr.bf16.mxu0 0
      %592 = vmatpush1.bf16.xpose.msra.mxu0 0
      %593 = vmatprep.subr.bf16.mxu0 0
      %594 = vmatpush1.bf16.xpose.msra.mxu0 0
      %595 = vmatprep.subr.bf16.mxu0 0
      %596 = vmatpush1.bf16.xpose.msra.mxu0 0
      %597 = vmatprep.subr.bf16.mxu0 0
      %598 = vmatpush1.bf16.xpose.msra.mxu0 0
      %599 = vmatprep.subr.bf16.mxu0 0
      %600 = vmatpush1.bf16.xpose.msra.mxu0 0
      %601 = vmatprep.mubr.bf16.mxu0 0
      %602 = vmatmul.mubr.bf16.gmra.mrb[0].mxu0 %v564
      %v603 = vpop.f32.mrb[0].mxu0
      %v604 = vadd.f32 0.0, %v603
      %v605 = vpop.f32.mrb[0].mxu0
      %v606 = vpop.f32.mrb[0].mxu0
      %v607 = vpop.f32.mrb[0].mxu0
      %608 = vdwg.mxu0
      %v610 = vsel %vm332, %v290, 0
      %v613 = vsel %vm332, %v322, 0
      %615 = vmatprep.subr.bf16.mxu0 0
      %616 = vmatpush1.bf16.xpose.msra.mxu0 %v613
      %617 = vmatprep.subr.bf16.mxu0 0
      %618 = vmatpush1.bf16.xpose.msra.mxu0 0
      %619 = vmatprep.subr.bf16.mxu0 0
      %620 = vmatpush1.bf16.xpose.msra.mxu0 0
      %621 = vmatprep.subr.bf16.mxu0 0
      %622 = vmatpush1.bf16.xpose.msra.mxu0 0
      %623 = vmatprep.subr.bf16.mxu0 0
      %624 = vmatpush1.bf16.xpose.msra.mxu0 0
      %625 = vmatprep.subr.bf16.mxu0 0
      %626 = vmatpush1.bf16.xpose.msra.mxu0 0
      %627 = vmatprep.subr.bf16.mxu0 0
      %628 = vmatpush1.bf16.xpose.msra.mxu0 0
      %629 = vmatprep.subr.bf16.mxu0 0
      %630 = vmatpush1.bf16.xpose.msra.mxu0 0
      %631 = vmatprep.subr.bf16.mxu0 0
      %632 = vmatpush1.bf16.xpose.msra.mxu0 0
      %633 = vmatprep.subr.bf16.mxu0 0
      %634 = vmatpush1.bf16.xpose.msra.mxu0 0
      %635 = vmatprep.subr.bf16.mxu0 0
      %636 = vmatpush1.bf16.xpose.msra.mxu0 0
      %637 = vmatprep.subr.bf16.mxu0 0
      %638 = vmatpush1.bf16.xpose.msra.mxu0 0
      %639 = vmatprep.subr.bf16.mxu0 0
      %640 = vmatpush1.bf16.xpose.msra.mxu0 0
      %641 = vmatprep.subr.bf16.mxu0 0
      %642 = vmatpush1.bf16.xpose.msra.mxu0 0
      %643 = vmatprep.subr.bf16.mxu0 0
      %644 = vmatpush1.bf16.xpose.msra.mxu0 0
      %645 = vmatprep.subr.bf16.mxu0 0
      %646 = vmatpush1.bf16.xpose.msra.mxu0 0
      %647 = vmatprep.mubr.bf16.mxu0 0
      %648 = vmatmul.mubr.bf16.gmra.mrb[0].mxu0 %v610
      %v649 = vpop.f32.mrb[0].mxu0
      %v650 = vadd.f32 0.0, %v649
      %v651 = vpop.f32.mrb[0].mxu0
      %v652 = vpop.f32.mrb[0].mxu0
      %v653 = vpop.f32.mrb[0].mxu0
      %654 = vdwg.mxu0
      %v656 = vsel %vm332, %v291, 0
      %v659 = vsel %vm332, %v323, 0
      %661 = vmatprep.subr.bf16.mxu0 0
      %662 = vmatpush1.bf16.xpose.msra.mxu0 %v659
      %663 = vmatprep.subr.bf16.mxu0 0
      %664 = vmatpush1.bf16.xpose.msra.mxu0 0
      %665 = vmatprep.subr.bf16.mxu0 0
      %666 = vmatpush1.bf16.xpose.msra.mxu0 0
      %667 = vmatprep.subr.bf16.mxu0 0
      %668 = vmatpush1.bf16.xpose.msra.mxu0 0
      %669 = vmatprep.subr.bf16.mxu0 0
      %670 = vmatpush1.bf16.xpose.msra.mxu0 0
      %671 = vmatprep.subr.bf16.mxu0 0
      %672 = vmatpush1.bf16.xpose.msra.mxu0 0
      %673 = vmatprep.subr.bf16.mxu0 0
      %674 = vmatpush1.bf16.xpose.msra.mxu0 0
      %675 = vmatprep.subr.bf16.mxu0 0
      %676 = vmatpush1.bf16.xpose.msra.mxu0 0
      %677 = vmatprep.subr.bf16.mxu0 0
      %678 = vmatpush1.bf16.xpose.msra.mxu0 0
      %679 = vmatprep.subr.bf16.mxu0 0
      %680 = vmatpush1.bf16.xpose.msra.mxu0 0
      %681 = vmatprep.subr.bf16.mxu0 0
      %682 = vmatpush1.bf16.xpose.msra.mxu0 0
      %683 = vmatprep.subr.bf16.mxu0 0
      %684 = vmatpush1.bf16.xpose.msra.mxu0 0
      %685 = vmatprep.subr.bf16.mxu0 0
      %686 = vmatpush1.bf16.xpose.msra.mxu0 0
      %687 = vmatprep.subr.bf16.mxu0 0
      %688 = vmatpush1.bf16.xpose.msra.mxu0 0
      %689 = vmatprep.subr.bf16.mxu0 0
      %690 = vmatpush1.bf16.xpose.msra.mxu0 0
      %691 = vmatprep.subr.bf16.mxu0 0
      %692 = vmatpush1.bf16.xpose.msra.mxu0 0
      %693 = vmatprep.mubr.bf16.mxu0 0
      %694 = vmatmul.mubr.bf16.gmra.mrb[0].mxu0 %v656
      %v695 = vpop.f32.mrb[0].mxu0
      %v696 = vadd.f32 0.0, %v695
      %v697 = vpop.f32.mrb[0].mxu0
      %v698 = vpop.f32.mrb[0].mxu0
      %v699 = vpop.f32.mrb[0].mxu0
      %700 = vdwg.mxu0
      %v702 = vsel %vm332, %v292, 0
      %v705 = vsel %vm332, %v324, 0
      %707 = vmatprep.subr.bf16.mxu0 0
      %708 = vmatpush1.bf16.xpose.msra.mxu0 %v705
      %709 = vmatprep.subr.bf16.mxu0 0
      %710 = vmatpush1.bf16.xpose.msra.mxu0 0
      %711 = vmatprep.subr.bf16.mxu0 0
      %712 = vmatpush1.bf16.xpose.msra.mxu0 0
      %713 = vmatprep.subr.bf16.mxu0 0
      %714 = vmatpush1.bf16.xpose.msra.mxu0 0
      %715 = vmatprep.subr.bf16.mxu0 0
      %716 = vmatpush1.bf16.xpose.msra.mxu0 0
      %717 = vmatprep.subr.bf16.mxu0 0
      %718 = vmatpush1.bf16.xpose.msra.mxu0 0
      %719 = vmatprep.subr.bf16.mxu0 0
      %720 = vmatpush1.bf16.xpose.msra.mxu0 0
      %721 = vmatprep.subr.bf16.mxu0 0
      %722 = vmatpush1.bf16.xpose.msra.mxu0 0
      %723 = vmatprep.subr.bf16.mxu0 0
      %724 = vmatpush1.bf16.xpose.msra.mxu0 0
      %725 = vmatprep.subr.bf16.mxu0 0
      %726 = vmatpush1.bf16.xpose.msra.mxu0 0
      %727 = vmatprep.subr.bf16.mxu0 0
      %728 = vmatpush1.bf16.xpose.msra.mxu0 0
      %729 = vmatprep.subr.bf16.mxu0 0
      %730 = vmatpush1.bf16.xpose.msra.mxu0 0
      %731 = vmatprep.subr.bf16.mxu0 0
      %732 = vmatpush1.bf16.xpose.msra.mxu0 0
      %733 = vmatprep.subr.bf16.mxu0 0
      %734 = vmatpush1.bf16.xpose.msra.mxu0 0
      %735 = vmatprep.subr.bf16.mxu0 0
      %736 = vmatpush1.bf16.xpose.msra.mxu0 0
      %737 = vmatprep.subr.bf16.mxu0 0
      %738 = vmatpush1.bf16.xpose.msra.mxu0 0
      %739 = vmatprep.mubr.bf16.mxu0 0
      %740 = vmatmul.mubr.bf16.gmra.mrb[0].mxu0 %v702
      %v741 = vpop.f32.mrb[0].mxu0
      %v742 = vadd.f32 0.0, %v741
      %v743 = vpop.f32.mrb[0].mxu0
      %v744 = vpop.f32.mrb[0].mxu0
      %v745 = vpop.f32.mrb[0].mxu0
      %746 = vdwg.mxu0
      %v748 = vsel %vm332, %v293, 0
      %v751 = vsel %vm332, %v325, 0
      %753 = vmatprep.subr.bf16.mxu0 0
      %754 = vmatpush1.bf16.xpose.msra.mxu0 %v751
      %755 = vmatprep.subr.bf16.mxu0 0
      %756 = vmatpush1.bf16.xpose.msra.mxu0 0
      %757 = vmatprep.subr.bf16.mxu0 0
      %758 = vmatpush1.bf16.xpose.msra.mxu0 0
      %759 = vmatprep.subr.bf16.mxu0 0
      %760 = vmatpush1.bf16.xpose.msra.mxu0 0
      %761 = vmatprep.subr.bf16.mxu0 0
      %762 = vmatpush1.bf16.xpose.msra.mxu0 0
      %763 = vmatprep.subr.bf16.mxu0 0
      %764 = vmatpush1.bf16.xpose.msra.mxu0 0
      %765 = vmatprep.subr.bf16.mxu0 0
      %766 = vmatpush1.bf16.xpose.msra.mxu0 0
      %767 = vmatprep.subr.bf16.mxu0 0
      %768 = vmatpush1.bf16.xpose.msra.mxu0 0
      %769 = vmatprep.subr.bf16.mxu0 0
      %770 = vmatpush1.bf16.xpose.msra.mxu0 0
      %771 = vmatprep.subr.bf16.mxu0 0
      %772 = vmatpush1.bf16.xpose.msra.mxu0 0
      %773 = vmatprep.subr.bf16.mxu0 0
      %774 = vmatpush1.bf16.xpose.msra.mxu0 0
      %775 = vmatprep.subr.bf16.mxu0 0
      %776 = vmatpush1.bf16.xpose.msra.mxu0 0
      %777 = vmatprep.subr.bf16.mxu0 0
      %778 = vmatpush1.bf16.xpose.msra.mxu0 0
      %779 = vmatprep.subr.bf16.mxu0 0
      %780 = vmatpush1.bf16.xpose.msra.mxu0 0
      %781 = vmatprep.subr.bf16.mxu0 0
      %782 = vmatpush1.bf16.xpose.msra.mxu0 0
      %783 = vmatprep.subr.bf16.mxu0 0
      %784 = vmatpush1.bf16.xpose.msra.mxu0 0
      %785 = vmatprep.mubr.bf16.mxu0 0
      %786 = vmatmul.mubr.bf16.gmra.mrb[0].mxu0 %v748
      %v787 = vpop.f32.mrb[0].mxu0
      %v788 = vadd.f32 0.0, %v787
      %v789 = vpop.f32.mrb[0].mxu0
      %v790 = vpop.f32.mrb[0].mxu0
      %v791 = vpop.f32.mrb[0].mxu0
      %792 = vdwg.mxu0
      %v794 = vsel %vm332, %v294, 0
      %v797 = vsel %vm332, %v326, 0
      %799 = vmatprep.subr.bf16.mxu0 0
      %800 = vmatpush1.bf16.xpose.msra.mxu0 %v797
      %801 = vmatprep.subr.bf16.mxu0 0
      %802 = vmatpush1.bf16.xpose.msra.mxu0 0
      %803 = vmatprep.subr.bf16.mxu0 0
      %804 = vmatpush1.bf16.xpose.msra.mxu0 0
      %805 = vmatprep.subr.bf16.mxu0 0
      %806 = vmatpush1.bf16.xpose.msra.mxu0 0
      %807 = vmatprep.subr.bf16.mxu0 0
      %808 = vmatpush1.bf16.xpose.msra.mxu0 0
      %809 = vmatprep.subr.bf16.mxu0 0
      %810 = vmatpush1.bf16.xpose.msra.mxu0 0
      %811 = vmatprep.subr.bf16.mxu0 0
      %812 = vmatpush1.bf16.xpose.msra.mxu0 0
      %813 = vmatprep.subr.bf16.mxu0 0
      %814 = vmatpush1.bf16.xpose.msra.mxu0 0
      %815 = vmatprep.subr.bf16.mxu0 0
      %816 = vmatpush1.bf16.xpose.msra.mxu0 0
      %817 = vmatprep.subr.bf16.mxu0 0
      %818 = vmatpush1.bf16.xpose.msra.mxu0 0
      %819 = vmatprep.subr.bf16.mxu0 0
      %820 = vmatpush1.bf16.xpose.msra.mxu0 0
      %821 = vmatprep.subr.bf16.mxu0 0
      %822 = vmatpush1.bf16.xpose.msra.mxu0 0
      %823 = vmatprep.subr.bf16.mxu0 0
      %824 = vmatpush1.bf16.xpose.msra.mxu0 0
      %825 = vmatprep.subr.bf16.mxu0 0
      %826 = vmatpush1.bf16.xpose.msra.mxu0 0
      %827 = vmatprep.subr.bf16.mxu0 0
      %828 = vmatpush1.bf16.xpose.msra.mxu0 0
      %829 = vmatprep.subr.bf16.mxu0 0
      %830 = vmatpush1.bf16.xpose.msra.mxu0 0
      %831 = vmatprep.mubr.bf16.mxu0 0
      %832 = vmatmul.mubr.bf16.gmra.mrb[0].mxu0 %v794
      %v833 = vpop.f32.mrb[0].mxu0
      %v834 = vadd.f32 0.0, %v833
      %v835 = vpop.f32.mrb[0].mxu0
      %v836 = vpop.f32.mrb[0].mxu0
      %v837 = vpop.f32.mrb[0].mxu0
      %838 = vdwg.mxu0
      %v840 = vsel %vm332, %v295, 0
      %v843 = vsel %vm332, %v327, 0
      %845 = vmatprep.subr.bf16.mxu0 0
      %846 = vmatpush1.bf16.xpose.msra.mxu0 %v843
      %847 = vmatprep.subr.bf16.mxu0 0
      %848 = vmatpush1.bf16.xpose.msra.mxu0 0
      %849 = vmatprep.subr.bf16.mxu0 0
      %850 = vmatpush1.bf16.xpose.msra.mxu0 0
      %851 = vmatprep.subr.bf16.mxu0 0
      %852 = vmatpush1.bf16.xpose.msra.mxu0 0
      %853 = vmatprep.subr.bf16.mxu0 0
      %854 = vmatpush1.bf16.xpose.msra.mxu0 0
      %855 = vmatprep.subr.bf16.mxu0 0
      %856 = vmatpush1.bf16.xpose.msra.mxu0 0
      %857 = vmatprep.subr.bf16.mxu0 0
      %858 = vmatpush1.bf16.xpose.msra.mxu0 0
      %859 = vmatprep.subr.bf16.mxu0 0
      %860 = vmatpush1.bf16.xpose.msra.mxu0 0
      %861 = vmatprep.subr.bf16.mxu0 0
      %862 = vmatpush1.bf16.xpose.msra.mxu0 0
      %863 = vmatprep.subr.bf16.mxu0 0
      %864 = vmatpush1.bf16.xpose.msra.mxu0 0
      %865 = vmatprep.subr.bf16.mxu0 0
      %866 = vmatpush1.bf16.xpose.msra.mxu0 0
      %867 = vmatprep.subr.bf16.mxu0 0
      %868 = vmatpush1.bf16.xpose.msra.mxu0 0
      %869 = vmatprep.subr.bf16.mxu0 0
      %870 = vmatpush1.bf16.xpose.msra.mxu0 0
      %871 = vmatprep.subr.bf16.mxu0 0
      %872 = vmatpush1.bf16.xpose.msra.mxu0 0
      %873 = vmatprep.subr.bf16.mxu0 0
      %874 = vmatpush1.bf16.xpose.msra.mxu0 0
      %875 = vmatprep.subr.bf16.mxu0 0
      %876 = vmatpush1.bf16.xpose.msra.mxu0 0
      %877 = vmatprep.mubr.bf16.mxu0 0
      %878 = vmatmul.mubr.bf16.gmra.mrb[0].mxu0 %v840
      %v879 = vpop.f32.mrb[0].mxu0
      %v880 = vadd.f32 0.0, %v879
      %v881 = vpop.f32.mrb[0].mxu0
      %v882 = vpop.f32.mrb[0].mxu0
      %v883 = vpop.f32.mrb[0].mxu0
      %884 = vdwg.mxu0
      %v886 = vsel %vm332, %v296, 0
      %v889 = vsel %vm332, %v328, 0
      %891 = vmatprep.subr.bf16.mxu0 0
      %892 = vmatpush1.bf16.xpose.msra.mxu0 %v889
      %893 = vmatprep.subr.bf16.mxu0 0
      %894 = vmatpush1.bf16.xpose.msra.mxu0 0
      %895 = vmatprep.subr.bf16.mxu0 0
      %896 = vmatpush1.bf16.xpose.msra.mxu0 0
      %897 = vmatprep.subr.bf16.mxu0 0
      %898 = vmatpush1.bf16.xpose.msra.mxu0 0
      %899 = vmatprep.subr.bf16.mxu0 0
      %900 = vmatpush1.bf16.xpose.msra.mxu0 0
      %901 = vmatprep.subr.bf16.mxu0 0
      %902 = vmatpush1.bf16.xpose.msra.mxu0 0
      %903 = vmatprep.subr.bf16.mxu0 0
      %904 = vmatpush1.bf16.xpose.msra.mxu0 0
      %905 = vmatprep.subr.bf16.mxu0 0
      %906 = vmatpush1.bf16.xpose.msra.mxu0 0
      %907 = vmatprep.subr.bf16.mxu0 0
      %908 = vmatpush1.bf16.xpose.msra.mxu0 0
      %909 = vmatprep.subr.bf16.mxu0 0
      %910 = vmatpush1.bf16.xpose.msra.mxu0 0
      %911 = vmatprep.subr.bf16.mxu0 0
      %912 = vmatpush1.bf16.xpose.msra.mxu0 0
      %913 = vmatprep.subr.bf16.mxu0 0
      %914 = vmatpush1.bf16.xpose.msra.mxu0 0
      %915 = vmatprep.subr.bf16.mxu0 0
      %916 = vmatpush1.bf16.xpose.msra.mxu0 0
      %917 = vmatprep.subr.bf16.mxu0 0
      %918 = vmatpush1.bf16.xpose.msra.mxu0 0
      %919 = vmatprep.subr.bf16.mxu0 0
      %920 = vmatpush1.bf16.xpose.msra.mxu0 0
      %921 = vmatprep.subr.bf16.mxu0 0
      %922 = vmatpush1.bf16.xpose.msra.mxu0 0
      %923 = vmatprep.mubr.bf16.mxu0 0
      %924 = vmatmul.mubr.bf16.gmra.mrb[0].mxu0 %v886
      %v925 = vpop.f32.mrb[0].mxu0
      %v926 = vadd.f32 0.0, %v925
      %v927 = vpop.f32.mrb[0].mxu0
      %v928 = vpop.f32.mrb[0].mxu0
      %v929 = vpop.f32.mrb[0].mxu0
      %930 = vdwg.mxu0
      %v932 = vsel %vm332, %v297, 0
      %v935 = vsel %vm332, %v329, 0
      %937 = vmatprep.subr.bf16.mxu0 0
      %938 = vmatpush1.bf16.xpose.msra.mxu0 %v935
      %939 = vmatprep.subr.bf16.mxu0 0
      %940 = vmatpush1.bf16.xpose.msra.mxu0 0
      %941 = vmatprep.subr.bf16.mxu0 0
      %942 = vmatpush1.bf16.xpose.msra.mxu0 0
      %943 = vmatprep.subr.bf16.mxu0 0
      %944 = vmatpush1.bf16.xpose.msra.mxu0 0
      %945 = vmatprep.subr.bf16.mxu0 0
      %946 = vmatpush1.bf16.xpose.msra.mxu0 0
      %947 = vmatprep.subr.bf16.mxu0 0
      %948 = vmatpush1.bf16.xpose.msra.mxu0 0
      %949 = vmatprep.subr.bf16.mxu0 0
      %950 = vmatpush1.bf16.xpose.msra.mxu0 0
      %951 = vmatprep.subr.bf16.mxu0 0
      %952 = vmatpush1.bf16.xpose.msra.mxu0 0
      %953 = vmatprep.subr.bf16.mxu0 0
      %954 = vmatpush1.bf16.xpose.msra.mxu0 0
      %955 = vmatprep.subr.bf16.mxu0 0
      %956 = vmatpush1.bf16.xpose.msra.mxu0 0
      %957 = vmatprep.subr.bf16.mxu0 0
      %958 = vmatpush1.bf16.xpose.msra.mxu0 0
      %959 = vmatprep.subr.bf16.mxu0 0
      %960 = vmatpush1.bf16.xpose.msra.mxu0 0
      %961 = vmatprep.subr.bf16.mxu0 0
      %962 = vmatpush1.bf16.xpose.msra.mxu0 0
      %963 = vmatprep.subr.bf16.mxu0 0
      %964 = vmatpush1.bf16.xpose.msra.mxu0 0
      %965 = vmatprep.subr.bf16.mxu0 0
      %966 = vmatpush1.bf16.xpose.msra.mxu0 0
      %967 = vmatprep.subr.bf16.mxu0 0
      %968 = vmatpush1.bf16.xpose.msra.mxu0 0
      %969 = vmatprep.mubr.bf16.mxu0 0
      %970 = vmatmul.mubr.bf16.gmra.mrb[0].mxu0 %v932
      %v971 = vpop.f32.mrb[0].mxu0
      %v972 = vadd.f32 0.0, %v971
      %v973 = vpop.f32.mrb[0].mxu0
      %v974 = vpop.f32.mrb[0].mxu0
      %v975 = vpop.f32.mrb[0].mxu0
      %976 = vdwg.mxu0
      %v978 = vsel %vm332, %v298, 0
      %v981 = vsel %vm332, %v330, 0
      %983 = vmatprep.subr.bf16.mxu0 0
      %984 = vmatpush1.bf16.xpose.msra.mxu0 %v981
      %985 = vmatprep.subr.bf16.mxu0 0
      %986 = vmatpush1.bf16.xpose.msra.mxu0 0
      %987 = vmatprep.subr.bf16.mxu0 0
      %988 = vmatpush1.bf16.xpose.msra.mxu0 0
      %989 = vmatprep.subr.bf16.mxu0 0
      %990 = vmatpush1.bf16.xpose.msra.mxu0 0
      %991 = vmatprep.subr.bf16.mxu0 0
      %992 = vmatpush1.bf16.xpose.msra.mxu0 0
      %993 = vmatprep.subr.bf16.mxu0 0
      %994 = vmatpush1.bf16.xpose.msra.mxu0 0
      %995 = vmatprep.subr.bf16.mxu0 0
      %996 = vmatpush1.bf16.xpose.msra.mxu0 0
      %997 = vmatprep.subr.bf16.mxu0 0
      %998 = vmatpush1.bf16.xpose.msra.mxu0 0
      %999 = vmatprep.subr.bf16.mxu0 0
      %1000 = vmatpush1.bf16.xpose.msra.mxu0 0
      %1001 = vmatprep.subr.bf16.mxu0 0
      %1002 = vmatpush1.bf16.xpose.msra.mxu0 0
      %1003 = vmatprep.subr.bf16.mxu0 0
      %1004 = vmatpush1.bf16.xpose.msra.mxu0 0
      %1005 = vmatprep.subr.bf16.mxu0 0
      %1006 = vmatpush1.bf16.xpose.msra.mxu0 0
      %1007 = vmatprep.subr.bf16.mxu0 0
      %1008 = vmatpush1.bf16.xpose.msra.mxu0 0
      %1009 = vmatprep.subr.bf16.mxu0 0
      %1010 = vmatpush1.bf16.xpose.msra.mxu0 0
      %1011 = vmatprep.subr.bf16.mxu0 0
      %1012 = vmatpush1.bf16.xpose.msra.mxu0 0
      %1013 = vmatprep.subr.bf16.mxu0 0
      %1014 = vmatpush1.bf16.xpose.msra.mxu0 0
      %1015 = vmatprep.mubr.bf16.mxu0 0
      %1016 = vmatmul.mubr.bf16.gmra.mrb[0].mxu0 %v978
      %v1017 = vpop.f32.mrb[0].mxu0
      %v1018 = vadd.f32 0.0, %v1017
      %v1019 = vpop.f32.mrb[0].mxu0
      %v1020 = vpop.f32.mrb[0].mxu0
      %v1021 = vpop.f32.mrb[0].mxu0
      %1022 = vdwg.mxu0
      %v1024 = vsel %vm332, %v299, 0
      %v1027 = vsel %vm332, %v331, 0
      %1029 = vmatprep.subr.bf16.mxu0 0
      %1030 = vmatpush1.bf16.xpose.msra.mxu0 %v1027
      %1031 = vmatprep.subr.bf16.mxu0 0
      %1032 = vmatpush1.bf16.xpose.msra.mxu0 0
      %1033 = vmatprep.subr.bf16.mxu0 0
      %1034 = vmatpush1.bf16.xpose.msra.mxu0 0
      %1035 = vmatprep.subr.bf16.mxu0 0
      %1036 = vmatpush1.bf16.xpose.msra.mxu0 0
      %1037 = vmatprep.subr.bf16.mxu0 0
      %1038 = vmatpush1.bf16.xpose.msra.mxu0 0
      %1039 = vmatprep.subr.bf16.mxu0 0
      %1040 = vmatpush1.bf16.xpose.msra.mxu0 0
      %1041 = vmatprep.subr.bf16.mxu0 0
      %1042 = vmatpush1.bf16.xpose.msra.mxu0 0
      %1043 = vmatprep.subr.bf16.mxu0 0
      %1044 = vmatpush1.bf16.xpose.msra.mxu0 0
      %1045 = vmatprep.subr.bf16.mxu0 0
      %1046 = vmatpush1.bf16.xpose.msra.mxu0 0
      %1047 = vmatprep.subr.bf16.mxu0 0
      %1048 = vmatpush1.bf16.xpose.msra.mxu0 0
      %1049 = vmatprep.subr.bf16.mxu0 0
      %1050 = vmatpush1.bf16.xpose.msra.mxu0 0
      %1051 = vmatprep.subr.bf16.mxu0 0
      %1052 = vmatpush1.bf16.xpose.msra.mxu0 0
      %1053 = vmatprep.subr.bf16.mxu0 0
      %1054 = vmatpush1.bf16.xpose.msra.mxu0 0
      %1055 = vmatprep.subr.bf16.mxu0 0
      %1056 = vmatpush1.bf16.xpose.msra.mxu0 0
      %1057 = vmatprep.subr.bf16.mxu0 0
      %1058 = vmatpush1.bf16.xpose.msra.mxu0 0
      %1059 = vmatprep.subr.bf16.mxu0 0
      %1060 = vmatpush1.bf16.xpose.msra.mxu0 0
      %1061 = vmatprep.mubr.bf16.mxu0 0
      %1062 = vmatmul.mubr.bf16.gmra.mrb[0].mxu0 %v1024
      %v1063 = vpop.f32.mrb[0].mxu0
      %v1064 = vadd.f32 0.0, %v1063
      %v1065 = vpop.f32.mrb[0].mxu0
      %v1066 = vpop.f32.mrb[0].mxu0
      %v1067 = vpop.f32.mrb[0].mxu0
      %1068 = vdwg.mxu0
      %v1069 = vmul.f32 %v374, 0.5
      %v1070 = vmul.f32 %v420, 0.5
      %v1071 = vmul.f32 %v466, 0.5
      %v1072 = vmul.f32 %v512, 0.5
      %v1073 = vmul.f32 %v558, 0.5
      %v1074 = vmul.f32 %v604, 0.5
      %v1075 = vmul.f32 %v650, 0.5
      %v1076 = vmul.f32 %v696, 0.5
      %v1077 = vmul.f32 %v742, 0.5
      %v1078 = vmul.f32 %v788, 0.5
      %v1079 = vmul.f32 %v834, 0.5
      %v1080 = vmul.f32 %v880, 0.5
      %v1081 = vmul.f32 %v926, 0.5
      %v1082 = vmul.f32 %v972, 0.5
      %v1083 = vmul.f32 %v1018, 0.5
      %v1084 = vmul.f32 %v1064, 0.5
      %vm1085 = vcmask 27648
      %v1086 = vsel %vm1085, %v1069, -inf
      %1087 = vmax.xlane.f32.xlu0 %v1086
      %v1088 = vpop.xlane.xlu0 %1087
      %v1089 = vsel %vm1085, %v1070, -inf
      %1090 = vmax.xlane.f32.xlu0 %v1089
      %v1091 = vpop.xlane.xlu0 %1090
      %v1092 = vsel %vm1085, %v1071, -inf
      %1093 = vmax.xlane.f32.xlu0 %v1092
      %v1094 = vpop.xlane.xlu0 %1093
      %v1095 = vsel %vm1085, %v1072, -inf
      %1096 = vmax.xlane.f32.xlu0 %v1095
      %v1097 = vpop.xlane.xlu0 %1096
      %v1098 = vsel %vm1085, %v1073, -inf
      %1099 = vmax.xlane.f32.xlu0 %v1098
      %v1100 = vpop.xlane.xlu0 %1099
      %v1101 = vsel %vm1085, %v1074, -inf
      %1102 = vmax.xlane.f32.xlu0 %v1101
      %v1103 = vpop.xlane.xlu0 %1102
      %v1104 = vsel %vm1085, %v1075, -inf
      %1105 = vmax.xlane.f32.xlu0 %v1104
      %v1106 = vpop.xlane.xlu0 %1105
      %v1107 = vsel %vm1085, %v1076, -inf
      %1108 = vmax.xlane.f32.xlu0 %v1107
      %v1109 = vpop.xlane.xlu0 %1108
      %v1110 = vsel %vm1085, %v1077, -inf
      %1111 = vmax.xlane.f32.xlu0 %v1110
      %v1112 = vpop.xlane.xlu0 %1111
      %v1113 = vsel %vm1085, %v1078, -inf
      %1114 = vmax.xlane.f32.xlu0 %v1113
      %v1115 = vpop.xlane.xlu0 %1114
      %v1116 = vsel %vm1085, %v1079, -inf
      %1117 = vmax.xlane.f32.xlu0 %v1116
      %v1118 = vpop.xlane.xlu0 %1117
      %v1119 = vsel %vm1085, %v1080, -inf
      %1120 = vmax.xlane.f32.xlu0 %v1119
      %v1121 = vpop.xlane.xlu0 %1120
      %v1122 = vsel %vm1085, %v1081, -inf
      %1123 = vmax.xlane.f32.xlu0 %v1122
      %v1124 = vpop.xlane.xlu0 %1123
      %v1125 = vsel %vm1085, %v1082, -inf
      %1126 = vmax.xlane.f32.xlu0 %v1125
      %v1127 = vpop.xlane.xlu0 %1126
      %v1128 = vsel %vm1085, %v1083, -inf
      %1129 = vmax.xlane.f32.xlu0 %v1128
      %v1130 = vpop.xlane.xlu0 %1129
      %v1131 = vsel %vm1085, %v1084, -inf
      %1132 = vmax.xlane.f32.xlu0 %v1131
      %v1133 = vpop.xlane.xlu0 %1132
      %v1134 = vsub.f32 %v1069, %v1088
      %v1135 = vsub.f32 %v1070, %v1091
      %v1136 = vsub.f32 %v1071, %v1094
      %v1137 = vsub.f32 %v1072, %v1097
      %v1138 = vsub.f32 %v1073, %v1100
      %v1139 = vsub.f32 %v1074, %v1103
      %v1140 = vsub.f32 %v1075, %v1106
      %v1141 = vsub.f32 %v1076, %v1109
      %v1142 = vsub.f32 %v1077, %v1112
      %v1143 = vsub.f32 %v1078, %v1115
      %v1144 = vsub.f32 %v1079, %v1118
      %v1145 = vsub.f32 %v1080, %v1121
      %v1146 = vsub.f32 %v1081, %v1124
      %v1147 = vsub.f32 %v1082, %v1127
      %v1148 = vsub.f32 %v1083, %v1130
      %v1149 = vsub.f32 %v1084, %v1133
      %v1150 = vmul.f32 %v1134, 1.442695
      %v1151 = vpow.pop %v1150
      %v1152 = vmul.f32 %v1135, 1.442695
      %v1153 = vpow.pop %v1152
      %v1154 = vmul.f32 %v1136, 1.442695
      %v1155 = vpow.pop %v1154
      %v1156 = vmul.f32 %v1137, 1.442695
      %v1157 = vpow.pop %v1156
      %v1158 = vmul.f32 %v1138, 1.442695
      %v1159 = vpow.pop %v1158
      %v1160 = vmul.f32 %v1139, 1.442695
      %v1161 = vpow.pop %v1160
      %v1162 = vmul.f32 %v1140, 1.442695
      %v1163 = vpow.pop %v1162
      %v1164 = vmul.f32 %v1141, 1.442695
      %v1165 = vpow.pop %v1164
      %v1166 = vmul.f32 %v1142, 1.442695
      %v1167 = vpow.pop %v1166
      %v1168 = vmul.f32 %v1143, 1.442695
      %v1169 = vpow.pop %v1168
      %v1170 = vmul.f32 %v1144, 1.442695
      %v1171 = vpow.pop %v1170
      %v1172 = vmul.f32 %v1145, 1.442695
      %v1173 = vpow.pop %v1172
      %v1174 = vmul.f32 %v1146, 1.442695
      %v1175 = vpow.pop %v1174
      %v1176 = vmul.f32 %v1147, 1.442695
      %v1177 = vpow.pop %v1176
      %v1178 = vmul.f32 %v1148, 1.442695
      %v1179 = vpow.pop %v1178
      %v1180 = vmul.f32 %v1149, 1.442695
      %v1181 = vpow.pop %v1180
      %v1182 = vsel %vm1085, %v1151, 0.0
      %1183 = vadd.xlane.f32.xlu0 %v1182
      %v1184 = vpop.xlane.xlu0 %1183
      %v1185 = vsel %vm1085, %v1153, 0.0
      %1186 = vadd.xlane.f32.xlu0 %v1185
      %v1187 = vpop.xlane.xlu0 %1186
      %v1188 = vsel %vm1085, %v1155, 0.0
      %1189 = vadd.xlane.f32.xlu0 %v1188
      %v1190 = vpop.xlane.xlu0 %1189
      %v1191 = vsel %vm1085, %v1157, 0.0
      %1192 = vadd.xlane.f32.xlu0 %v1191
      %v1193 = vpop.xlane.xlu0 %1192
      %v1194 = vsel %vm1085, %v1159, 0.0
      %1195 = vadd.xlane.f32.xlu0 %v1194
      %v1196 = vpop.xlane.xlu0 %1195
      %v1197 = vsel %vm1085, %v1161, 0.0
      %1198 = vadd.xlane.f32.xlu0 %v1197
      %v1199 = vpop.xlane.xlu0 %1198
      %v1200 = vsel %vm1085, %v1163, 0.0
      %1201 = vadd.xlane.f32.xlu0 %v1200
      %v1202 = vpop.xlane.xlu0 %1201
      %v1203 = vsel %vm1085, %v1165, 0.0
      %1204 = vadd.xlane.f32.xlu0 %v1203
      %v1205 = vpop.xlane.xlu0 %1204
      %v1206 = vsel %vm1085, %v1167, 0.0
      %1207 = vadd.xlane.f32.xlu0 %v1206
      %v1208 = vpop.xlane.xlu0 %1207
      %v1209 = vsel %vm1085, %v1169, 0.0
      %1210 = vadd.xlane.f32.xlu0 %v1209
      %v1211 = vpop.xlane.xlu0 %1210
      %v1212 = vsel %vm1085, %v1171, 0.0
      %1213 = vadd.xlane.f32.xlu0 %v1212
      %v1214 = vpop.xlane.xlu0 %1213
      %v1215 = vsel %vm1085, %v1173, 0.0
      %1216 = vadd.xlane.f32.xlu0 %v1215
      %v1217 = vpop.xlane.xlu0 %1216
      %v1218 = vsel %vm1085, %v1175, 0.0
      %1219 = vadd.xlane.f32.xlu0 %v1218
      %v1220 = vpop.xlane.xlu0 %1219
      %v1221 = vsel %vm1085, %v1177, 0.0
      %1222 = vadd.xlane.f32.xlu0 %v1221
      %v1223 = vpop.xlane.xlu0 %1222
      %v1224 = vsel %vm1085, %v1179, 0.0
      %1225 = vadd.xlane.f32.xlu0 %v1224
      %v1226 = vpop.xlane.xlu0 %1225
      %v1227 = vsel %vm1085, %v1181, 0.0
      %1228 = vadd.xlane.f32.xlu0 %v1227
      %v1229 = vpop.xlane.xlu0 %1228
      %v1230 = vrcp.pop %v1184
      %v1231 = vrcp.pop %v1187
      %v1232 = vrcp.pop %v1190
      %v1233 = vrcp.pop %v1193
      %v1234 = vrcp.pop %v1196
      %v1235 = vrcp.pop %v1199
      %v1236 = vrcp.pop %v1202
      %v1237 = vrcp.pop %v1205
      %v1238 = vrcp.pop %v1208
      %v1239 = vrcp.pop %v1211
      %v1240 = vrcp.pop %v1214
      %v1241 = vrcp.pop %v1217
      %v1242 = vrcp.pop %v1220
      %v1243 = vrcp.pop %v1223
      %v1244 = vrcp.pop %v1226
      %v1245 = vrcp.pop %v1229
      %v1246 = vmul.f32 %v1151, %v1230
      %v1247 = vmul.f32 %v1153, %v1231
      %v1248 = vmul.f32 %v1155, %v1232
      %v1249 = vmul.f32 %v1157, %v1233
      %v1250 = vmul.f32 %v1159, %v1234
      %v1251 = vmul.f32 %v1161, %v1235
      %v1252 = vmul.f32 %v1163, %v1236
      %v1253 = vmul.f32 %v1165, %v1237
      %v1254 = vmul.f32 %v1167, %v1238
      %v1255 = vmul.f32 %v1169, %v1239
      %v1256 = vmul.f32 %v1171, %v1240
      %v1257 = vmul.f32 %v1173, %v1241
      %v1258 = vmul.f32 %v1175, %v1242
      %v1259 = vmul.f32 %v1177, %v1243
      %v1260 = vmul.f32 %v1179, %v1244
      %v1261 = vmul.f32 %v1181, %v1245
      %v1262 = vpack.c.bf16 %v1246, %v1246
      %v1263 = vpack.c.bf16 %v1247, %v1247
      %v1264 = vpack.c.bf16 %v1248, %v1248
      %v1265 = vpack.c.bf16 %v1249, %v1249
      %v1266 = vpack.c.bf16 %v1250, %v1250
      %v1267 = vpack.c.bf16 %v1251, %v1251
      %v1268 = vpack.c.bf16 %v1252, %v1252
      %v1269 = vpack.c.bf16 %v1253, %v1253
      %v1270 = vpack.c.bf16 %v1254, %v1254
      %v1271 = vpack.c.bf16 %v1255, %v1255
      %v1272 = vpack.c.bf16 %v1256, %v1256
      %v1273 = vpack.c.bf16 %v1257, %v1257
      %v1274 = vpack.c.bf16 %v1258, %v1258
      %v1275 = vpack.c.bf16 %v1259, %v1259
      %v1276 = vpack.c.bf16 %v1260, %v1260
      %v1277 = vpack.c.bf16 %v1261, %v1261
      %v1278 = vld [vmem:[%s253] sm:$0xf]
      %v1279 = vld [vmem:[%s253 + $0x4] sm:$0xf]
      %v1280 = vld [vmem:[%s253 + $0x8] sm:$0xf]
      %v1281 = vld [vmem:[%s253 + $0xc] sm:$0xf]
      %v1282 = vld [vmem:[%s253 + $0x10] sm:$0xf]
      %v1283 = vld [vmem:[%s253 + $0x14] sm:$0xf]
      %v1284 = vld [vmem:[%s253 + $0x18] sm:$0xf]
      %v1285 = vld [vmem:[%s253 + $0x1c] sm:$0xf]
      %v1286 = vld [vmem:[%s253 + $0x20] sm:$0xf]
      %v1287 = vld [vmem:[%s253 + $0x24] sm:$0xf]
      %v1288 = vld [vmem:[%s253 + $0x28] sm:$0xf]
      %v1289 = vld [vmem:[%s253 + $0x2c] sm:$0xf]
      %v1290 = vld [vmem:[%s253 + $0x30] sm:$0xf]
      %v1291 = vld [vmem:[%s253 + $0x34] sm:$0xf]
      %v1292 = vld [vmem:[%s253 + $0x38] sm:$0xf]
      %v1293 = vld [vmem:[%s253 + $0x3c] sm:$0xf]
      %v1294 = vpack.c.bf16 %v1278, %v1278
      %v1295 = vpack.c.bf16 %v1279, %v1279
      %v1296 = vpack.c.bf16 %v1280, %v1280
      %v1297 = vpack.c.bf16 %v1281, %v1281
      %v1298 = vpack.c.bf16 %v1282, %v1282
      %v1299 = vpack.c.bf16 %v1283, %v1283
      %v1300 = vpack.c.bf16 %v1284, %v1284
      %v1301 = vpack.c.bf16 %v1285, %v1285
      %v1302 = vpack.c.bf16 %v1286, %v1286
      %v1303 = vpack.c.bf16 %v1287, %v1287
      %v1304 = vpack.c.bf16 %v1288, %v1288
      %v1305 = vpack.c.bf16 %v1289, %v1289
      %v1306 = vpack.c.bf16 %v1290, %v1290
      %v1307 = vpack.c.bf16 %v1291, %v1291
      %v1308 = vpack.c.bf16 %v1292, %v1292
      %v1309 = vpack.c.bf16 %v1293, %v1293
      %vm1310 = vcmask 31744
      %v1312 = vsel %vm1310, %v1262, 0
      %vm1314 = vcmask 1041408
      %v1316 = vsel %vm1314, %v1294, 0
      %1318 = vmatprep.subr.bf16.mxu0 0
      %1319 = vmatpush1.bf16.msra.mxu0 %v1316
      %1320 = vmatprep.subr.bf16.mxu0 0
      %1321 = vmatpush1.bf16.msra.mxu0 0
      %1322 = vmatprep.subr.bf16.mxu0 0
      %1323 = vmatpush1.bf16.msra.mxu0 0
      %1324 = vmatprep.subr.bf16.mxu0 0
      %1325 = vmatpush1.bf16.msra.mxu0 0
      %1326 = vmatprep.subr.bf16.mxu0 0
      %1327 = vmatpush1.bf16.msra.mxu0 0
      %1328 = vmatprep.subr.bf16.mxu0 0
      %1329 = vmatpush1.bf16.msra.mxu0 0
      %1330 = vmatprep.subr.bf16.mxu0 0
      %1331 = vmatpush1.bf16.msra.mxu0 0
      %1332 = vmatprep.subr.bf16.mxu0 0
      %1333 = vmatpush1.bf16.msra.mxu0 0
      %1334 = vmatprep.subr.bf16.mxu0 0
      %1335 = vmatpush1.bf16.msra.mxu0 0
      %1336 = vmatprep.subr.bf16.mxu0 0
      %1337 = vmatpush1.bf16.msra.mxu0 0
      %1338 = vmatprep.subr.bf16.mxu0 0
      %1339 = vmatpush1.bf16.msra.mxu0 0
      %1340 = vmatprep.subr.bf16.mxu0 0
      %1341 = vmatpush1.bf16.msra.mxu0 0
      %1342 = vmatprep.subr.bf16.mxu0 0
      %1343 = vmatpush1.bf16.msra.mxu0 0
      %1344 = vmatprep.subr.bf16.mxu0 0
      %1345 = vmatpush1.bf16.msra.mxu0 0
      %1346 = vmatprep.subr.bf16.mxu0 0
      %1347 = vmatpush1.bf16.msra.mxu0 0
      %1348 = vmatprep.subr.bf16.mxu0 0
      %1349 = vmatpush1.bf16.msra.mxu0 0
      %1350 = vmatprep.mubr.bf16.mxu0 0
      %1351 = vmatmul.mubr.bf16.gmra.mrb[0].mxu0 %v1312
      %v1352 = vpop.f32.mrb[0].mxu0
      %v1353 = vadd.f32 0.0, %v1352
      %v1354 = vpop.f32.mrb[0].mxu0
      %v1355 = vpop.f32.mrb[0].mxu0
      %v1356 = vpop.f32.mrb[0].mxu0
      %1357 = vdwg.mxu0
      %v1359 = vsel %vm1310, %v1263, 0
      %v1362 = vsel %vm1314, %v1295, 0
      %1364 = vmatprep.subr.bf16.mxu0 0
      %1365 = vmatpush1.bf16.msra.mxu0 %v1362
      %1366 = vmatprep.subr.bf16.mxu0 0
      %1367 = vmatpush1.bf16.msra.mxu0 0
      %1368 = vmatprep.subr.bf16.mxu0 0
      %1369 = vmatpush1.bf16.msra.mxu0 0
      %1370 = vmatprep.subr.bf16.mxu0 0
      %1371 = vmatpush1.bf16.msra.mxu0 0
      %1372 = vmatprep.subr.bf16.mxu0 0
      %1373 = vmatpush1.bf16.msra.mxu0 0
      %1374 = vmatprep.subr.bf16.mxu0 0
      %1375 = vmatpush1.bf16.msra.mxu0 0
      %1376 = vmatprep.subr.bf16.mxu0 0
      %1377 = vmatpush1.bf16.msra.mxu0 0
      %1378 = vmatprep.subr.bf16.mxu0 0
      %1379 = vmatpush1.bf16.msra.mxu0 0
      %1380 = vmatprep.subr.bf16.mxu0 0
      %1381 = vmatpush1.bf16.msra.mxu0 0
      %1382 = vmatprep.subr.bf16.mxu0 0
      %1383 = vmatpush1.bf16.msra.mxu0 0
      %1384 = vmatprep.subr.bf16.mxu0 0
      %1385 = vmatpush1.bf16.msra.mxu0 0
      %1386 = vmatprep.subr.bf16.mxu0 0
      %1387 = vmatpush1.bf16.msra.mxu0 0
      %1388 = vmatprep.subr.bf16.mxu0 0
      %1389 = vmatpush1.bf16.msra.mxu0 0
      %1390 = vmatprep.subr.bf16.mxu0 0
      %1391 = vmatpush1.bf16.msra.mxu0 0
      %1392 = vmatprep.subr.bf16.mxu0 0
      %1393 = vmatpush1.bf16.msra.mxu0 0
      %1394 = vmatprep.subr.bf16.mxu0 0
      %1395 = vmatpush1.bf16.msra.mxu0 0
      %1396 = vmatprep.mubr.bf16.mxu0 0
      %1397 = vmatmul.mubr.bf16.gmra.mrb[0].mxu0 %v1359
      %v1398 = vpop.f32.mrb[0].mxu0
      %v1399 = vadd.f32 0.0, %v1398
      %v1400 = vpop.f32.mrb[0].mxu0
      %v1401 = vpop.f32.mrb[0].mxu0
      %v1402 = vpop.f32.mrb[0].mxu0
      %1403 = vdwg.mxu0
      %v1405 = vsel %vm1310, %v1264, 0
      %v1408 = vsel %vm1314, %v1296, 0
      %1410 = vmatprep.subr.bf16.mxu0 0
      %1411 = vmatpush1.bf16.msra.mxu0 %v1408
      %1412 = vmatprep.subr.bf16.mxu0 0
      %1413 = vmatpush1.bf16.msra.mxu0 0
      %1414 = vmatprep.subr.bf16.mxu0 0
      %1415 = vmatpush1.bf16.msra.mxu0 0
      %1416 = vmatprep.subr.bf16.mxu0 0
      %1417 = vmatpush1.bf16.msra.mxu0 0
      %1418 = vmatprep.subr.bf16.mxu0 0
      %1419 = vmatpush1.bf16.msra.mxu0 0
      %1420 = vmatprep.subr.bf16.mxu0 0
      %1421 = vmatpush1.bf16.msra.mxu0 0
      %1422 = vmatprep.subr.bf16.mxu0 0
      %1423 = vmatpush1.bf16.msra.mxu0 0
      %1424 = vmatprep.subr.bf16.mxu0 0
      %1425 = vmatpush1.bf16.msra.mxu0 0
      %1426 = vmatprep.subr.bf16.mxu0 0
      %1427 = vmatpush1.bf16.msra.mxu0 0
      %1428 = vmatprep.subr.bf16.mxu0 0
      %1429 = vmatpush1.bf16.msra.mxu0 0
      %1430 = vmatprep.subr.bf16.mxu0 0
      %1431 = vmatpush1.bf16.msra.mxu0 0
      %1432 = vmatprep.subr.bf16.mxu0 0
      %1433 = vmatpush1.bf16.msra.mxu0 0
      %1434 = vmatprep.subr.bf16.mxu0 0
      %1435 = vmatpush1.bf16.msra.mxu0 0
      %1436 = vmatprep.subr.bf16.mxu0 0
      %1437 = vmatpush1.bf16.msra.mxu0 0
      %1438 = vmatprep.subr.bf16.mxu0 0
      %1439 = vmatpush1.bf16.msra.mxu0 0
      %1440 = vmatprep.subr.bf16.mxu0 0
      %1441 = vmatpush1.bf16.msra.mxu0 0
      %1442 = vmatprep.mubr.bf16.mxu0 0
      %1443 = vmatmul.mubr.bf16.gmra.mrb[0].mxu0 %v1405
      %v1444 = vpop.f32.mrb[0].mxu0
      %v1445 = vadd.f32 0.0, %v1444
      %v1446 = vpop.f32.mrb[0].mxu0
      %v1447 = vpop.f32.mrb[0].mxu0
      %v1448 = vpop.f32.mrb[0].mxu0
      %1449 = vdwg.mxu0
      %v1451 = vsel %vm1310, %v1265, 0
      %v1454 = vsel %vm1314, %v1297, 0
      %1456 = vmatprep.subr.bf16.mxu0 0
      %1457 = vmatpush1.bf16.msra.mxu0 %v1454
      %1458 = vmatprep.subr.bf16.mxu0 0
      %1459 = vmatpush1.bf16.msra.mxu0 0
      %1460 = vmatprep.subr.bf16.mxu0 0
      %1461 = vmatpush1.bf16.msra.mxu0 0
      %1462 = vmatprep.subr.bf16.mxu0 0
      %1463 = vmatpush1.bf16.msra.mxu0 0
      %1464 = vmatprep.subr.bf16.mxu0 0
      %1465 = vmatpush1.bf16.msra.mxu0 0
      %1466 = vmatprep.subr.bf16.mxu0 0
      %1467 = vmatpush1.bf16.msra.mxu0 0
      %1468 = vmatprep.subr.bf16.mxu0 0
      %1469 = vmatpush1.bf16.msra.mxu0 0
      %1470 = vmatprep.subr.bf16.mxu0 0
      %1471 = vmatpush1.bf16.msra.mxu0 0
      %1472 = vmatprep.subr.bf16.mxu0 0
      %1473 = vmatpush1.bf16.msra.mxu0 0
      %1474 = vmatprep.subr.bf16.mxu0 0
      %1475 = vmatpush1.bf16.msra.mxu0 0
      %1476 = vmatprep.subr.bf16.mxu0 0
      %1477 = vmatpush1.bf16.msra.mxu0 0
      %1478 = vmatprep.subr.bf16.mxu0 0
      %1479 = vmatpush1.bf16.msra.mxu0 0
      %1480 = vmatprep.subr.bf16.mxu0 0
      %1481 = vmatpush1.bf16.msra.mxu0 0
      %1482 = vmatprep.subr.bf16.mxu0 0
      %1483 = vmatpush1.bf16.msra.mxu0 0
      %1484 = vmatprep.subr.bf16.mxu0 0
      %1485 = vmatpush1.bf16.msra.mxu0 0
      %1486 = vmatprep.subr.bf16.mxu0 0
      %1487 = vmatpush1.bf16.msra.mxu0 0
      %1488 = vmatprep.mubr.bf16.mxu0 0
      %1489 = vmatmul.mubr.bf16.gmra.mrb[0].mxu0 %v1451
      %v1490 = vpop.f32.mrb[0].mxu0
      %v1491 = vadd.f32 0.0, %v1490
      %v1492 = vpop.f32.mrb[0].mxu0
      %v1493 = vpop.f32.mrb[0].mxu0
      %v1494 = vpop.f32.mrb[0].mxu0
      %1495 = vdwg.mxu0
      %v1497 = vsel %vm1310, %v1266, 0
      %v1500 = vsel %vm1314, %v1298, 0
      %1502 = vmatprep.subr.bf16.mxu0 0
      %1503 = vmatpush1.bf16.msra.mxu0 %v1500
      %1504 = vmatprep.subr.bf16.mxu0 0
      %1505 = vmatpush1.bf16.msra.mxu0 0
      %1506 = vmatprep.subr.bf16.mxu0 0
      %1507 = vmatpush1.bf16.msra.mxu0 0
      %1508 = vmatprep.subr.bf16.mxu0 0
      %1509 = vmatpush1.bf16.msra.mxu0 0
      %1510 = vmatprep.subr.bf16.mxu0 0
      %1511 = vmatpush1.bf16.msra.mxu0 0
      %1512 = vmatprep.subr.bf16.mxu0 0
      %1513 = vmatpush1.bf16.msra.mxu0 0
      %1514 = vmatprep.subr.bf16.mxu0 0
      %1515 = vmatpush1.bf16.msra.mxu0 0
      %1516 = vmatprep.subr.bf16.mxu0 0
      %1517 = vmatpush1.bf16.msra.mxu0 0
      %1518 = vmatprep.subr.bf16.mxu0 0
      %1519 = vmatpush1.bf16.msra.mxu0 0
      %1520 = vmatprep.subr.bf16.mxu0 0
      %1521 = vmatpush1.bf16.msra.mxu0 0
      %1522 = vmatprep.subr.bf16.mxu0 0
      %1523 = vmatpush1.bf16.msra.mxu0 0
      %1524 = vmatprep.subr.bf16.mxu0 0
      %1525 = vmatpush1.bf16.msra.mxu0 0
      %1526 = vmatprep.subr.bf16.mxu0 0
      %1527 = vmatpush1.bf16.msra.mxu0 0
      %1528 = vmatprep.subr.bf16.mxu0 0
      %1529 = vmatpush1.bf16.msra.mxu0 0
      %1530 = vmatprep.subr.bf16.mxu0 0
      %1531 = vmatpush1.bf16.msra.mxu0 0
      %1532 = vmatprep.subr.bf16.mxu0 0
      %1533 = vmatpush1.bf16.msra.mxu0 0
      %1534 = vmatprep.mubr.bf16.mxu0 0
      %1535 = vmatmul.mubr.bf16.gmra.mrb[0].mxu0 %v1497
      %v1536 = vpop.f32.mrb[0].mxu0
      %v1537 = vadd.f32 0.0, %v1536
      %v1538 = vpop.f32.mrb[0].mxu0
      %v1539 = vpop.f32.mrb[0].mxu0
      %v1540 = vpop.f32.mrb[0].mxu0
      %1541 = vdwg.mxu0
      %v1543 = vsel %vm1310, %v1267, 0
      %v1546 = vsel %vm1314, %v1299, 0
      %1548 = vmatprep.subr.bf16.mxu0 0
      %1549 = vmatpush1.bf16.msra.mxu0 %v1546
      %1550 = vmatprep.subr.bf16.mxu0 0
      %1551 = vmatpush1.bf16.msra.mxu0 0
      %1552 = vmatprep.subr.bf16.mxu0 0
      %1553 = vmatpush1.bf16.msra.mxu0 0
      %1554 = vmatprep.subr.bf16.mxu0 0
      %1555 = vmatpush1.bf16.msra.mxu0 0
      %1556 = vmatprep.subr.bf16.mxu0 0
      %1557 = vmatpush1.bf16.msra.mxu0 0
      %1558 = vmatprep.subr.bf16.mxu0 0
      %1559 = vmatpush1.bf16.msra.mxu0 0
      %1560 = vmatprep.subr.bf16.mxu0 0
      %1561 = vmatpush1.bf16.msra.mxu0 0
      %1562 = vmatprep.subr.bf16.mxu0 0
      %1563 = vmatpush1.bf16.msra.mxu0 0
      %1564 = vmatprep.subr.bf16.mxu0 0
      %1565 = vmatpush1.bf16.msra.mxu0 0
      %1566 = vmatprep.subr.bf16.mxu0 0
      %1567 = vmatpush1.bf16.msra.mxu0 0
      %1568 = vmatprep.subr.bf16.mxu0 0
      %1569 = vmatpush1.bf16.msra.mxu0 0
      %1570 = vmatprep.subr.bf16.mxu0 0
      %1571 = vmatpush1.bf16.msra.mxu0 0
      %1572 = vmatprep.subr.bf16.mxu0 0
      %1573 = vmatpush1.bf16.msra.mxu0 0
      %1574 = vmatprep.subr.bf16.mxu0 0
      %1575 = vmatpush1.bf16.msra.mxu0 0
      %1576 = vmatprep.subr.bf16.mxu0 0
      %1577 = vmatpush1.bf16.msra.mxu0 0
      %1578 = vmatprep.subr.bf16.mxu0 0
      %1579 = vmatpush1.bf16.msra.mxu0 0
      %1580 = vmatprep.mubr.bf16.mxu0 0
      %1581 = vmatmul.mubr.bf16.gmra.mrb[0].mxu0 %v1543
      %v1582 = vpop.f32.mrb[0].mxu0
      %v1583 = vadd.f32 0.0, %v1582
      %v1584 = vpop.f32.mrb[0].mxu0
      %v1585 = vpop.f32.mrb[0].mxu0
      %v1586 = vpop.f32.mrb[0].mxu0
      %1587 = vdwg.mxu0
      %v1589 = vsel %vm1310, %v1268, 0
      %v1592 = vsel %vm1314, %v1300, 0
      %1594 = vmatprep.subr.bf16.mxu0 0
      %1595 = vmatpush1.bf16.msra.mxu0 %v1592
      %1596 = vmatprep.subr.bf16.mxu0 0
      %1597 = vmatpush1.bf16.msra.mxu0 0
      %1598 = vmatprep.subr.bf16.mxu0 0
      %1599 = vmatpush1.bf16.msra.mxu0 0
      %1600 = vmatprep.subr.bf16.mxu0 0
      %1601 = vmatpush1.bf16.msra.mxu0 0
      %1602 = vmatprep.subr.bf16.mxu0 0
      %1603 = vmatpush1.bf16.msra.mxu0 0
      %1604 = vmatprep.subr.bf16.mxu0 0
      %1605 = vmatpush1.bf16.msra.mxu0 0
      %1606 = vmatprep.subr.bf16.mxu0 0
      %1607 = vmatpush1.bf16.msra.mxu0 0
      %1608 = vmatprep.subr.bf16.mxu0 0
      %1609 = vmatpush1.bf16.msra.mxu0 0
      %1610 = vmatprep.subr.bf16.mxu0 0
      %1611 = vmatpush1.bf16.msra.mxu0 0
      %1612 = vmatprep.subr.bf16.mxu0 0
      %1613 = vmatpush1.bf16.msra.mxu0 0
      %1614 = vmatprep.subr.bf16.mxu0 0
      %1615 = vmatpush1.bf16.msra.mxu0 0
      %1616 = vmatprep.subr.bf16.mxu0 0
      %1617 = vmatpush1.bf16.msra.mxu0 0
      %1618 = vmatprep.subr.bf16.mxu0 0
      %1619 = vmatpush1.bf16.msra.mxu0 0
      %1620 = vmatprep.subr.bf16.mxu0 0
      %1621 = vmatpush1.bf16.msra.mxu0 0
      %1622 = vmatprep.subr.bf16.mxu0 0
      %1623 = vmatpush1.bf16.msra.mxu0 0
      %1624 = vmatprep.subr.bf16.mxu0 0
      %1625 = vmatpush1.bf16.msra.mxu0 0
      %1626 = vmatprep.mubr.bf16.mxu0 0
      %1627 = vmatmul.mubr.bf16.gmra.mrb[0].mxu0 %v1589
      %v1628 = vpop.f32.mrb[0].mxu0
      %v1629 = vadd.f32 0.0, %v1628
      %v1630 = vpop.f32.mrb[0].mxu0
      %v1631 = vpop.f32.mrb[0].mxu0
      %v1632 = vpop.f32.mrb[0].mxu0
      %1633 = vdwg.mxu0
      %v1635 = vsel %vm1310, %v1269, 0
      %v1638 = vsel %vm1314, %v1301, 0
      %1640 = vmatprep.subr.bf16.mxu0 0
      %1641 = vmatpush1.bf16.msra.mxu0 %v1638
      %1642 = vmatprep.subr.bf16.mxu0 0
      %1643 = vmatpush1.bf16.msra.mxu0 0
      %1644 = vmatprep.subr.bf16.mxu0 0
      %1645 = vmatpush1.bf16.msra.mxu0 0
      %1646 = vmatprep.subr.bf16.mxu0 0
      %1647 = vmatpush1.bf16.msra.mxu0 0
      %1648 = vmatprep.subr.bf16.mxu0 0
      %1649 = vmatpush1.bf16.msra.mxu0 0
      %1650 = vmatprep.subr.bf16.mxu0 0
      %1651 = vmatpush1.bf16.msra.mxu0 0
      %1652 = vmatprep.subr.bf16.mxu0 0
      %1653 = vmatpush1.bf16.msra.mxu0 0
      %1654 = vmatprep.subr.bf16.mxu0 0
      %1655 = vmatpush1.bf16.msra.mxu0 0
      %1656 = vmatprep.subr.bf16.mxu0 0
      %1657 = vmatpush1.bf16.msra.mxu0 0
      %1658 = vmatprep.subr.bf16.mxu0 0
      %1659 = vmatpush1.bf16.msra.mxu0 0
      %1660 = vmatprep.subr.bf16.mxu0 0
      %1661 = vmatpush1.bf16.msra.mxu0 0
      %1662 = vmatprep.subr.bf16.mxu0 0
      %1663 = vmatpush1.bf16.msra.mxu0 0
      %1664 = vmatprep.subr.bf16.mxu0 0
      %1665 = vmatpush1.bf16.msra.mxu0 0
      %1666 = vmatprep.subr.bf16.mxu0 0
      %1667 = vmatpush1.bf16.msra.mxu0 0
      %1668 = vmatprep.subr.bf16.mxu0 0
      %1669 = vmatpush1.bf16.msra.mxu0 0
      %1670 = vmatprep.subr.bf16.mxu0 0
      %1671 = vmatpush1.bf16.msra.mxu0 0
      %1672 = vmatprep.mubr.bf16.mxu0 0
      %1673 = vmatmul.mubr.bf16.gmra.mrb[0].mxu0 %v1635
      %v1674 = vpop.f32.mrb[0].mxu0
      %v1675 = vadd.f32 0.0, %v1674
      %v1676 = vpop.f32.mrb[0].mxu0
      %v1677 = vpop.f32.mrb[0].mxu0
      %v1678 = vpop.f32.mrb[0].mxu0
      %1679 = vdwg.mxu0
      %v1681 = vsel %vm1310, %v1270, 0
      %v1684 = vsel %vm1314, %v1302, 0
      %1686 = vmatprep.subr.bf16.mxu0 0
      %1687 = vmatpush1.bf16.msra.mxu0 %v1684
      %1688 = vmatprep.subr.bf16.mxu0 0
      %1689 = vmatpush1.bf16.msra.mxu0 0
      %1690 = vmatprep.subr.bf16.mxu0 0
      %1691 = vmatpush1.bf16.msra.mxu0 0
      %1692 = vmatprep.subr.bf16.mxu0 0
      %1693 = vmatpush1.bf16.msra.mxu0 0
      %1694 = vmatprep.subr.bf16.mxu0 0
      %1695 = vmatpush1.bf16.msra.mxu0 0
      %1696 = vmatprep.subr.bf16.mxu0 0
      %1697 = vmatpush1.bf16.msra.mxu0 0
      %1698 = vmatprep.subr.bf16.mxu0 0
      %1699 = vmatpush1.bf16.msra.mxu0 0
      %1700 = vmatprep.subr.bf16.mxu0 0
      %1701 = vmatpush1.bf16.msra.mxu0 0
      %1702 = vmatprep.subr.bf16.mxu0 0
      %1703 = vmatpush1.bf16.msra.mxu0 0
      %1704 = vmatprep.subr.bf16.mxu0 0
      %1705 = vmatpush1.bf16.msra.mxu0 0
      %1706 = vmatprep.subr.bf16.mxu0 0
      %1707 = vmatpush1.bf16.msra.mxu0 0
      %1708 = vmatprep.subr.bf16.mxu0 0
      %1709 = vmatpush1.bf16.msra.mxu0 0
      %1710 = vmatprep.subr.bf16.mxu0 0
      %1711 = vmatpush1.bf16.msra.mxu0 0
      %1712 = vmatprep.subr.bf16.mxu0 0
      %1713 = vmatpush1.bf16.msra.mxu0 0
      %1714 = vmatprep.subr.bf16.mxu0 0
      %1715 = vmatpush1.bf16.msra.mxu0 0
      %1716 = vmatprep.subr.bf16.mxu0 0
      %1717 = vmatpush1.bf16.msra.mxu0 0
      %1718 = vmatprep.mubr.bf16.mxu0 0
      %1719 = vmatmul.mubr.bf16.gmra.mrb[0].mxu0 %v1681
      %v1720 = vpop.f32.mrb[0].mxu0
      %v1721 = vadd.f32 0.0, %v1720
      %v1722 = vpop.f32.mrb[0].mxu0
      %v1723 = vpop.f32.mrb[0].mxu0
      %v1724 = vpop.f32.mrb[0].mxu0
      %1725 = vdwg.mxu0
      %v1727 = vsel %vm1310, %v1271, 0
      %v1730 = vsel %vm1314, %v1303, 0
      %1732 = vmatprep.subr.bf16.mxu0 0
      %1733 = vmatpush1.bf16.msra.mxu0 %v1730
      %1734 = vmatprep.subr.bf16.mxu0 0
      %1735 = vmatpush1.bf16.msra.mxu0 0
      %1736 = vmatprep.subr.bf16.mxu0 0
      %1737 = vmatpush1.bf16.msra.mxu0 0
      %1738 = vmatprep.subr.bf16.mxu0 0
      %1739 = vmatpush1.bf16.msra.mxu0 0
      %1740 = vmatprep.subr.bf16.mxu0 0
      %1741 = vmatpush1.bf16.msra.mxu0 0
      %1742 = vmatprep.subr.bf16.mxu0 0
      %1743 = vmatpush1.bf16.msra.mxu0 0
      %1744 = vmatprep.subr.bf16.mxu0 0
      %1745 = vmatpush1.bf16.msra.mxu0 0
      %1746 = vmatprep.subr.bf16.mxu0 0
      %1747 = vmatpush1.bf16.msra.mxu0 0
      %1748 = vmatprep.subr.bf16.mxu0 0
      %1749 = vmatpush1.bf16.msra.mxu0 0
      %1750 = vmatprep.subr.bf16.mxu0 0
      %1751 = vmatpush1.bf16.msra.mxu0 0
      %1752 = vmatprep.subr.bf16.mxu0 0
      %1753 = vmatpush1.bf16.msra.mxu0 0
      %1754 = vmatprep.subr.bf16.mxu0 0
      %1755 = vmatpush1.bf16.msra.mxu0 0
      %1756 = vmatprep.subr.bf16.mxu0 0
      %1757 = vmatpush1.bf16.msra.mxu0 0
      %1758 = vmatprep.subr.bf16.mxu0 0
      %1759 = vmatpush1.bf16.msra.mxu0 0
      %1760 = vmatprep.subr.bf16.mxu0 0
      %1761 = vmatpush1.bf16.msra.mxu0 0
      %1762 = vmatprep.subr.bf16.mxu0 0
      %1763 = vmatpush1.bf16.msra.mxu0 0
      %1764 = vmatprep.mubr.bf16.mxu0 0
      %1765 = vmatmul.mubr.bf16.gmra.mrb[0].mxu0 %v1727
      %v1766 = vpop.f32.mrb[0].mxu0
      %v1767 = vadd.f32 0.0, %v1766
      %v1768 = vpop.f32.mrb[0].mxu0
      %v1769 = vpop.f32.mrb[0].mxu0
      %v1770 = vpop.f32.mrb[0].mxu0
      %1771 = vdwg.mxu0
      %v1773 = vsel %vm1310, %v1272, 0
      %v1776 = vsel %vm1314, %v1304, 0
      %1778 = vmatprep.subr.bf16.mxu0 0
      %1779 = vmatpush1.bf16.msra.mxu0 %v1776
      %1780 = vmatprep.subr.bf16.mxu0 0
      %1781 = vmatpush1.bf16.msra.mxu0 0
      %1782 = vmatprep.subr.bf16.mxu0 0
      %1783 = vmatpush1.bf16.msra.mxu0 0
      %1784 = vmatprep.subr.bf16.mxu0 0
      %1785 = vmatpush1.bf16.msra.mxu0 0
      %1786 = vmatprep.subr.bf16.mxu0 0
      %1787 = vmatpush1.bf16.msra.mxu0 0
      %1788 = vmatprep.subr.bf16.mxu0 0
      %1789 = vmatpush1.bf16.msra.mxu0 0
      %1790 = vmatprep.subr.bf16.mxu0 0
      %1791 = vmatpush1.bf16.msra.mxu0 0
      %1792 = vmatprep.subr.bf16.mxu0 0
      %1793 = vmatpush1.bf16.msra.mxu0 0
      %1794 = vmatprep.subr.bf16.mxu0 0
      %1795 = vmatpush1.bf16.msra.mxu0 0
      %1796 = vmatprep.subr.bf16.mxu0 0
      %1797 = vmatpush1.bf16.msra.mxu0 0
      %1798 = vmatprep.subr.bf16.mxu0 0
      %1799 = vmatpush1.bf16.msra.mxu0 0
      %1800 = vmatprep.subr.bf16.mxu0 0
      %1801 = vmatpush1.bf16.msra.mxu0 0
      %1802 = vmatprep.subr.bf16.mxu0 0
      %1803 = vmatpush1.bf16.msra.mxu0 0
      %1804 = vmatprep.subr.bf16.mxu0 0
      %1805 = vmatpush1.bf16.msra.mxu0 0
      %1806 = vmatprep.subr.bf16.mxu0 0
      %1807 = vmatpush1.bf16.msra.mxu0 0
      %1808 = vmatprep.subr.bf16.mxu0 0
      %1809 = vmatpush1.bf16.msra.mxu0 0
      %1810 = vmatprep.mubr.bf16.mxu0 0
      %1811 = vmatmul.mubr.bf16.gmra.mrb[0].mxu0 %v1773
      %v1812 = vpop.f32.mrb[0].mxu0
      %v1813 = vadd.f32 0.0, %v1812
      %v1814 = vpop.f32.mrb[0].mxu0
      %v1815 = vpop.f32.mrb[0].mxu0
      %v1816 = vpop.f32.mrb[0].mxu0
      %1817 = vdwg.mxu0
      %v1819 = vsel %vm1310, %v1273, 0
      %v1822 = vsel %vm1314, %v1305, 0
      %1824 = vmatprep.subr.bf16.mxu0 0
      %1825 = vmatpush1.bf16.msra.mxu0 %v1822
      %1826 = vmatprep.subr.bf16.mxu0 0
      %1827 = vmatpush1.bf16.msra.mxu0 0
      %1828 = vmatprep.subr.bf16.mxu0 0
      %1829 = vmatpush1.bf16.msra.mxu0 0
      %1830 = vmatprep.subr.bf16.mxu0 0
      %1831 = vmatpush1.bf16.msra.mxu0 0
      %1832 = vmatprep.subr.bf16.mxu0 0
      %1833 = vmatpush1.bf16.msra.mxu0 0
      %1834 = vmatprep.subr.bf16.mxu0 0
      %1835 = vmatpush1.bf16.msra.mxu0 0
      %1836 = vmatprep.subr.bf16.mxu0 0
      %1837 = vmatpush1.bf16.msra.mxu0 0
      %1838 = vmatprep.subr.bf16.mxu0 0
      %1839 = vmatpush1.bf16.msra.mxu0 0
      %1840 = vmatprep.subr.bf16.mxu0 0
      %1841 = vmatpush1.bf16.msra.mxu0 0
      %1842 = vmatprep.subr.bf16.mxu0 0
      %1843 = vmatpush1.bf16.msra.mxu0 0
      %1844 = vmatprep.subr.bf16.mxu0 0
      %1845 = vmatpush1.bf16.msra.mxu0 0
      %1846 = vmatprep.subr.bf16.mxu0 0
      %1847 = vmatpush1.bf16.msra.mxu0 0
      %1848 = vmatprep.subr.bf16.mxu0 0
      %1849 = vmatpush1.bf16.msra.mxu0 0
      %1850 = vmatprep.subr.bf16.mxu0 0
      %1851 = vmatpush1.bf16.msra.mxu0 0
      %1852 = vmatprep.subr.bf16.mxu0 0
      %1853 = vmatpush1.bf16.msra.mxu0 0
      %1854 = vmatprep.subr.bf16.mxu0 0
      %1855 = vmatpush1.bf16.msra.mxu0 0
      %1856 = vmatprep.mubr.bf16.mxu0 0
      %1857 = vmatmul.mubr.bf16.gmra.mrb[0].mxu0 %v1819
      %v1858 = vpop.f32.mrb[0].mxu0
      %v1859 = vadd.f32 0.0, %v1858
      %v1860 = vpop.f32.mrb[0].mxu0
      %v1861 = vpop.f32.mrb[0].mxu0
      %v1862 = vpop.f32.mrb[0].mxu0
      %1863 = vdwg.mxu0
      %v1865 = vsel %vm1310, %v1274, 0
      %v1868 = vsel %vm1314, %v1306, 0
      %1870 = vmatprep.subr.bf16.mxu0 0
      %1871 = vmatpush1.bf16.msra.mxu0 %v1868
      %1872 = vmatprep.subr.bf16.mxu0 0
      %1873 = vmatpush1.bf16.msra.mxu0 0
      %1874 = vmatprep.subr.bf16.mxu0 0
      %1875 = vmatpush1.bf16.msra.mxu0 0
      %1876 = vmatprep.subr.bf16.mxu0 0
      %1877 = vmatpush1.bf16.msra.mxu0 0
      %1878 = vmatprep.subr.bf16.mxu0 0
      %1879 = vmatpush1.bf16.msra.mxu0 0
      %1880 = vmatprep.subr.bf16.mxu0 0
      %1881 = vmatpush1.bf16.msra.mxu0 0
      %1882 = vmatprep.subr.bf16.mxu0 0
      %1883 = vmatpush1.bf16.msra.mxu0 0
      %1884 = vmatprep.subr.bf16.mxu0 0
      %1885 = vmatpush1.bf16.msra.mxu0 0
      %1886 = vmatprep.subr.bf16.mxu0 0
      %1887 = vmatpush1.bf16.msra.mxu0 0
      %1888 = vmatprep.subr.bf16.mxu0 0
      %1889 = vmatpush1.bf16.msra.mxu0 0
      %1890 = vmatprep.subr.bf16.mxu0 0
      %1891 = vmatpush1.bf16.msra.mxu0 0
      %1892 = vmatprep.subr.bf16.mxu0 0
      %1893 = vmatpush1.bf16.msra.mxu0 0
      %1894 = vmatprep.subr.bf16.mxu0 0
      %1895 = vmatpush1.bf16.msra.mxu0 0
      %1896 = vmatprep.subr.bf16.mxu0 0
      %1897 = vmatpush1.bf16.msra.mxu0 0
      %1898 = vmatprep.subr.bf16.mxu0 0
      %1899 = vmatpush1.bf16.msra.mxu0 0
      %1900 = vmatprep.subr.bf16.mxu0 0
      %1901 = vmatpush1.bf16.msra.mxu0 0
      %1902 = vmatprep.mubr.bf16.mxu0 0
      %1903 = vmatmul.mubr.bf16.gmra.mrb[0].mxu0 %v1865
      %v1904 = vpop.f32.mrb[0].mxu0
      %v1905 = vadd.f32 0.0, %v1904
      %v1906 = vpop.f32.mrb[0].mxu0
      %v1907 = vpop.f32.mrb[0].mxu0
      %v1908 = vpop.f32.mrb[0].mxu0
      %1909 = vdwg.mxu0
      %v1911 = vsel %vm1310, %v1275, 0
      %v1914 = vsel %vm1314, %v1307, 0
      %1916 = vmatprep.subr.bf16.mxu0 0
      %1917 = vmatpush1.bf16.msra.mxu0 %v1914
      %1918 = vmatprep.subr.bf16.mxu0 0
      %1919 = vmatpush1.bf16.msra.mxu0 0
      %1920 = vmatprep.subr.bf16.mxu0 0
      %1921 = vmatpush1.bf16.msra.mxu0 0
      %1922 = vmatprep.subr.bf16.mxu0 0
      %1923 = vmatpush1.bf16.msra.mxu0 0
      %1924 = vmatprep.subr.bf16.mxu0 0
      %1925 = vmatpush1.bf16.msra.mxu0 0
      %1926 = vmatprep.subr.bf16.mxu0 0
      %1927 = vmatpush1.bf16.msra.mxu0 0
      %1928 = vmatprep.subr.bf16.mxu0 0
      %1929 = vmatpush1.bf16.msra.mxu0 0
      %1930 = vmatprep.subr.bf16.mxu0 0
      %1931 = vmatpush1.bf16.msra.mxu0 0
      %1932 = vmatprep.subr.bf16.mxu0 0
      %1933 = vmatpush1.bf16.msra.mxu0 0
      %1934 = vmatprep.subr.bf16.mxu0 0
      %1935 = vmatpush1.bf16.msra.mxu0 0
      %1936 = vmatprep.subr.bf16.mxu0 0
      %1937 = vmatpush1.bf16.msra.mxu0 0
      %1938 = vmatprep.subr.bf16.mxu0 0
      %1939 = vmatpush1.bf16.msra.mxu0 0
      %1940 = vmatprep.subr.bf16.mxu0 0
      %1941 = vmatpush1.bf16.msra.mxu0 0
      %1942 = vmatprep.subr.bf16.mxu0 0
      %1943 = vmatpush1.bf16.msra.mxu0 0
      %1944 = vmatprep.subr.bf16.mxu0 0
      %1945 = vmatpush1.bf16.msra.mxu0 0
      %1946 = vmatprep.subr.bf16.mxu0 0
      %1947 = vmatpush1.bf16.msra.mxu0 0
      %1948 = vmatprep.mubr.bf16.mxu0 0
      %1949 = vmatmul.mubr.bf16.gmra.mrb[0].mxu0 %v1911
      %v1950 = vpop.f32.mrb[0].mxu0
      %v1951 = vadd.f32 0.0, %v1950
      %v1952 = vpop.f32.mrb[0].mxu0
      %v1953 = vpop.f32.mrb[0].mxu0
      %v1954 = vpop.f32.mrb[0].mxu0
      %1955 = vdwg.mxu0
      %v1957 = vsel %vm1310, %v1276, 0
      %v1960 = vsel %vm1314, %v1308, 0
      %1962 = vmatprep.subr.bf16.mxu0 0
      %1963 = vmatpush1.bf16.msra.mxu0 %v1960
      %1964 = vmatprep.subr.bf16.mxu0 0
      %1965 = vmatpush1.bf16.msra.mxu0 0
      %1966 = vmatprep.subr.bf16.mxu0 0
      %1967 = vmatpush1.bf16.msra.mxu0 0
      %1968 = vmatprep.subr.bf16.mxu0 0
      %1969 = vmatpush1.bf16.msra.mxu0 0
      %1970 = vmatprep.subr.bf16.mxu0 0
      %1971 = vmatpush1.bf16.msra.mxu0 0
      %1972 = vmatprep.subr.bf16.mxu0 0
      %1973 = vmatpush1.bf16.msra.mxu0 0
      %1974 = vmatprep.subr.bf16.mxu0 0
      %1975 = vmatpush1.bf16.msra.mxu0 0
      %1976 = vmatprep.subr.bf16.mxu0 0
      %1977 = vmatpush1.bf16.msra.mxu0 0
      %1978 = vmatprep.subr.bf16.mxu0 0
      %1979 = vmatpush1.bf16.msra.mxu0 0
      %1980 = vmatprep.subr.bf16.mxu0 0
      %1981 = vmatpush1.bf16.msra.mxu0 0
      %1982 = vmatprep.subr.bf16.mxu0 0
      %1983 = vmatpush1.bf16.msra.mxu0 0
      %1984 = vmatprep.subr.bf16.mxu0 0
      %1985 = vmatpush1.bf16.msra.mxu0 0
      %1986 = vmatprep.subr.bf16.mxu0 0
      %1987 = vmatpush1.bf16.msra.mxu0 0
      %1988 = vmatprep.subr.bf16.mxu0 0
      %1989 = vmatpush1.bf16.msra.mxu0 0
      %1990 = vmatprep.subr.bf16.mxu0 0
      %1991 = vmatpush1.bf16.msra.mxu0 0
      %1992 = vmatprep.subr.bf16.mxu0 0
      %1993 = vmatpush1.bf16.msra.mxu0 0
      %1994 = vmatprep.mubr.bf16.mxu0 0
      %1995 = vmatmul.mubr.bf16.gmra.mrb[0].mxu0 %v1957
      %v1996 = vpop.f32.mrb[0].mxu0
      %v1997 = vadd.f32 0.0, %v1996
      %v1998 = vpop.f32.mrb[0].mxu0
      %v1999 = vpop.f32.mrb[0].mxu0
      %v2000 = vpop.f32.mrb[0].mxu0
      %2001 = vdwg.mxu0
      %v2003 = vsel %vm1310, %v1277, 0
      %v2006 = vsel %vm1314, %v1309, 0
      %2008 = vmatprep.subr.bf16.mxu0 0
      %2009 = vmatpush1.bf16.msra.mxu0 %v2006
      %2010 = vmatprep.subr.bf16.mxu0 0
      %2011 = vmatpush1.bf16.msra.mxu0 0
      %2012 = vmatprep.subr.bf16.mxu0 0
      %2013 = vmatpush1.bf16.msra.mxu0 0
      %2014 = vmatprep.subr.bf16.mxu0 0
      %2015 = vmatpush1.bf16.msra.mxu0 0
      %2016 = vmatprep.subr.bf16.mxu0 0
      %2017 = vmatpush1.bf16.msra.mxu0 0
      %2018 = vmatprep.subr.bf16.mxu0 0
      %2019 = vmatpush1.bf16.msra.mxu0 0
      %2020 = vmatprep.subr.bf16.mxu0 0
      %2021 = vmatpush1.bf16.msra.mxu0 0
      %2022 = vmatprep.subr.bf16.mxu0 0
      %2023 = vmatpush1.bf16.msra.mxu0 0
      %2024 = vmatprep.subr.bf16.mxu0 0
      %2025 = vmatpush1.bf16.msra.mxu0 0
      %2026 = vmatprep.subr.bf16.mxu0 0
      %2027 = vmatpush1.bf16.msra.mxu0 0
      %2028 = vmatprep.subr.bf16.mxu0 0
      %2029 = vmatpush1.bf16.msra.mxu0 0
      %2030 = vmatprep.subr.bf16.mxu0 0
      %2031 = vmatpush1.bf16.msra.mxu0 0
      %2032 = vmatprep.subr.bf16.mxu0 0
      %2033 = vmatpush1.bf16.msra.mxu0 0
      %2034 = vmatprep.subr.bf16.mxu0 0
      %2035 = vmatpush1.bf16.msra.mxu0 0
      %2036 = vmatprep.subr.bf16.mxu0 0
      %2037 = vmatpush1.bf16.msra.mxu0 0
      %2038 = vmatprep.subr.bf16.mxu0 0
      %2039 = vmatpush1.bf16.msra.mxu0 0
      %2040 = vmatprep.mubr.bf16.mxu0 0
      %2041 = vmatmul.mubr.bf16.gmra.mrb[0].mxu0 %v2003
      %v2042 = vpop.f32.mrb[0].mxu0
      %v2043 = vadd.f32 0.0, %v2042
      %v2044 = vpop.f32.mrb[0].mxu0
      %v2045 = vpop.f32.mrb[0].mxu0
      %v2046 = vpop.f32.mrb[0].mxu0
      %2047 = vdwg.mxu0
      %v2048 = vld [vmem:[%s259] sm:$0xf]
      %v2049 = vld [vmem:[%s259 + $0x4] sm:$0xf]
      %v2050 = vld [vmem:[%s259 + $0x8] sm:$0xf]
      %v2051 = vld [vmem:[%s259 + $0xc] sm:$0xf]
      %v2052 = vld [vmem:[%s259 + $0x10] sm:$0xf]
      %v2053 = vld [vmem:[%s259 + $0x14] sm:$0xf]
      %v2054 = vld [vmem:[%s259 + $0x18] sm:$0xf]
      %v2055 = vld [vmem:[%s259 + $0x1c] sm:$0xf]
      %v2056 = vld [vmem:[%s259 + $0x20] sm:$0xf]
      %v2057 = vld [vmem:[%s259 + $0x24] sm:$0xf]
      %v2058 = vld [vmem:[%s259 + $0x28] sm:$0xf]
      %v2059 = vld [vmem:[%s259 + $0x2c] sm:$0xf]
      %v2060 = vld [vmem:[%s259 + $0x30] sm:$0xf]
      %v2061 = vld [vmem:[%s259 + $0x34] sm:$0xf]
      %v2062 = vld [vmem:[%s259 + $0x38] sm:$0xf]
      %v2063 = vld [vmem:[%s259 + $0x3c] sm:$0xf]
      %v2064 = vadd.f32 %v2048, %v1353
      %v2065 = vadd.f32 %v2049, %v1399
      %v2066 = vadd.f32 %v2050, %v1445
      %v2067 = vadd.f32 %v2051, %v1491
      %v2068 = vadd.f32 %v2052, %v1537
      %v2069 = vadd.f32 %v2053, %v1583
      %v2070 = vadd.f32 %v2054, %v1629
      %v2071 = vadd.f32 %v2055, %v1675
      %v2072 = vadd.f32 %v2056, %v1721
      %v2073 = vadd.f32 %v2057, %v1767
      %v2074 = vadd.f32 %v2058, %v1813
      %v2075 = vadd.f32 %v2059, %v1859
      %v2076 = vadd.f32 %v2060, %v1905
      %v2077 = vadd.f32 %v2061, %v1951
      %v2078 = vadd.f32 %v2062, %v1997
      %v2079 = vadd.f32 %v2063, %v2043
      %v2080 = vmax.f32 %v2064, 0.0
      %v2081 = vmax.f32 %v2065, 0.0
      %v2082 = vmax.f32 %v2066, 0.0
      %v2083 = vmax.f32 %v2067, 0.0
      %v2084 = vmax.f32 %v2068, 0.0
      %v2085 = vmax.f32 %v2069, 0.0
      %v2086 = vmax.f32 %v2070, 0.0
      %v2087 = vmax.f32 %v2071, 0.0
      %v2088 = vmax.f32 %v2072, 0.0
      %v2089 = vmax.f32 %v2073, 0.0
      %v2090 = vmax.f32 %v2074, 0.0
      %v2091 = vmax.f32 %v2075, 0.0
      %v2092 = vmax.f32 %v2076, 0.0
      %v2093 = vmax.f32 %v2077, 0.0
      %v2094 = vmax.f32 %v2078, 0.0
      %v2095 = vmax.f32 %v2079, 0.0
      %vm2096 = vcmask 125952
      %2097 = vst.msk [vmem:[%s265] sm:$0xf] %vm2096, %v2080
      %2098 = vst.msk [vmem:[%s265 + $0x4] sm:$0xf] %vm2096, %v2081
      %2099 = vst.msk [vmem:[%s265 + $0x8] sm:$0xf] %vm2096, %v2082
      %2100 = vst.msk [vmem:[%s265 + $0xc] sm:$0xf] %vm2096, %v2083
      %2101 = vst.msk [vmem:[%s265 + $0x10] sm:$0xf] %vm2096, %v2084
      %2102 = vst.msk [vmem:[%s265 + $0x14] sm:$0xf] %vm2096, %v2085
      %2103 = vst.msk [vmem:[%s265 + $0x18] sm:$0xf] %vm2096, %v2086
      %2104 = vst.msk [vmem:[%s265 + $0x1c] sm:$0xf] %vm2096, %v2087
      %2105 = vst.msk [vmem:[%s265 + $0x20] sm:$0xf] %vm2096, %v2088
      %2106 = vst.msk [vmem:[%s265 + $0x24] sm:$0xf] %vm2096, %v2089
      %2107 = vst.msk [vmem:[%s265 + $0x28] sm:$0xf] %vm2096, %v2090
      %2108 = vst.msk [vmem:[%s265 + $0x2c] sm:$0xf] %vm2096, %v2091
      %2109 = vst.msk [vmem:[%s265 + $0x30] sm:$0xf] %vm2096, %v2092
      %2110 = vst.msk [vmem:[%s265 + $0x34] sm:$0xf] %vm2096, %v2093
      %2111 = vst.msk [vmem:[%s265 + $0x38] sm:$0xf] %vm2096, %v2094
      %2112 = vst.msk [vmem:[%s265 + $0x3c] sm:$0xf] %vm2096, %v2095
      %s2113 = smul.u32 16, %s15
      %p2114 = scmp.lt.s32.totalorder %s2113, 31
      %s2115 = scalar_select %p2114, %s2113, 31
      %s2116 = smul.addr %s2115, 4
      %s2117 = scalar_lea.vmem %s4, %s2116
      // Predicated region
      $region37: #{dualfen_forward.6} parent=35 // pred_check
        %p2118 = pneg %p137
      $region38: #{dualfen_forward.6} parent=35 // pred_check_branch
        %2120 = sbr.rel (%p2118) target = $region40
      $region39: #{dualfen_forward.6} parent=35 // pred_region
        %s2121 = smul.u32 16, %s15
      $region40: #{dualfen_forward.6} parent=35 // pred_fallthru
        _
    $region36: #{dualfen_forward.6} parent=5 // pred_fallthru
      _
    %p2122 = scmp.le.s32.totalorder 2, %s10
    // Predicated region
    $region41: #{dualfen_forward.6} parent=5 // pred_check
      %p2123 = pneg %p2122
    $region42: #{dualfen_forward.6} parent=5 // pred_check_branch
      %2125 = sbr.rel (%p2123) target = $region44
    $region43: #{dualfen_forward.6} parent=5 // pred_region
      %s2126 = ssub.s32 %s10, 2
      // Predicated region
      $region45: #{dualfen_forward.6} parent=43 // pred_check
        %p2127 = pneg %p143
      $region46: #{dualfen_forward.6} parent=43 // pred_check_branch
        %2129 = sbr.rel (%p2127) target = $region48
      $region47: #{dualfen_forward.6} parent=43 // pred_region
        %s2130 = smul.u32 16, %s16
        %p2131 = scmp.lt.s32.totalorder %s2130, 31
        %s2132 = scalar_select %p2131, %s2130, 31
        %s2133 = smul.addr %s2132, 4
        %s2134 = scalar_lea.vmem %s4, %s2133
      $region48: #{dualfen_forward.6} parent=43 // pred_fallthru
        _
    $region44: #{dualfen_forward.6} parent=5 // pred_fallthru
      _
  $region6: #{dualfen_forward.6} parent=0 // loop_footer
    %s14 = sadd.s32 1, %s10
  $region7: #{dualfen_forward.6} parent=0 // loop_footer_branch
    %9 = sbr.rel target = $region3
  $region8: #{dualfen_forward.6} parent=0 // loop_exit
    _

// kernel: dualfen_forward.4
$region0: #{dualfen_forward.4}
  #allocation0 [shape = 'u32[]', space=smem, size = 0x4, offset = 0x4, fixed_abs, tag = 'smem constant byte address 0x4 - core index']
  #allocation1 [shape = 'u32[144,128]{1,0:T(1,128)}', space=vmem, size = 0x12000, scoped, tag = 'internal scratch']
  %s0 = inlined_call_operand.vmem [shape: f32[8,64], index: 0, kind: input, shape index: {}]
  %s1 = inlined_call_operand.vmem [shape: f32[64,32], index: 1, kind: input, shape index: {}]
  %s2 = inlined_call_operand.vmem [shape: f32[1,32], index: 2, kind: input, shape index: {}]
  %s3 = inlined_call_operand.vmem [shape: f32[1,32], index: 3, kind: input, shape index: {}]
  %s4 = inlined_call_operand.vmem [shape: f32[1,32], index: 4, kind: input, shape index: {}]
  %s5 = inlined_call_operand.vmem [shape: f32[32,32], index: 5, kind: input, shape index: {}]
  %s6 = inlined_call_operand.vmem [shape: f32[1,32], index: 6, kind: input, shape index: {}]
  %s7 = inlined_call_operand.vmem [shape: f32[1,32], index: 7, kind: input, shape index: {}]
  %s8 = inlined_call_operand.vmem [shape: f32[1,32], index: 8, kind: input, shape index: {}]
  %s9 = inlined_call_operand.vmem [shape: f32[32,32], index: 9, kind: input, shape index: {}]
  %s10 = inlined_call_operand.vmem [shape: f32[1,32], index: 10, kind: input, shape index: {}]
  %s11 = inlined_call_operand.vmem [shape: f32[1,32], index: 11, kind: input, shape index: {}]
  %s12 = inlined_call_operand.vmem [shape: f32[1,32], index: 12, kind: input, shape index: {}]
  %s13 = inlined_call_operand.vmem [shape: f32[32,4], index: 13, kind: input, shape index: {}]
  %s14 = inlined_call_operand.vmem [shape: f32[8,4], index: 14, kind: output, shape index: {}]
  %s15 = sld [smem:[#allocation0]]
  $region66: #{dualfen_forward.4} parent=0
    _
  %s17 = ssub.s32 1, %s15
  %s18 = scalar_select 0, %s17, %s15
  // Predicated region
  $region2: #{dualfen_forward.4} parent=0 // pred_check
    _
  $region3: #{dualfen_forward.4} parent=0 // pred_check_branch
    %20 = sbr.rel (0) target = $region5
  $region4: #{dualfen_forward.4} parent=0 // pred_region
    _
  $region5: #{dualfen_forward.4} parent=0 // pred_fallthru
    _
  // Predicated region
  $region6: #{dualfen_forward.4} parent=0 // pred_check
    _
  $region7: #{dualfen_forward.4} parent=0 // pred_check_branch
    %22 = sbr.rel (0) target = $region9
  $region8: #{dualfen_forward.4} parent=0 // pred_region
    _
  $region9: #{dualfen_forward.4} parent=0 // pred_fallthru
    _
  // Predicated region
  $region10: #{dualfen_forward.4} parent=0 // pred_check
    _
  $region11: #{dualfen_forward.4} parent=0 // pred_check_branch
    %24 = sbr.rel (0) target = $region13
  $region12: #{dualfen_forward.4} parent=0 // pred_region
    _
  $region13: #{dualfen_forward.4} parent=0 // pred_fallthru
    _
  // Predicated region
  $region14: #{dualfen_forward.4} parent=0 // pred_check
    _
  $region15: #{dualfen_forward.4} parent=0 // pred_check_branch
    %26 = sbr.rel (0) target = $region17
  $region16: #{dualfen_forward.4} parent=0 // pred_region
    _
  $region17: #{dualfen_forward.4} parent=0 // pred_fallthru
    _
  // Predicated region
  $region18: #{dualfen_forward.4} parent=0 // pred_check
    _
  $region19: #{dualfen_forward.4} parent=0 // pred_check_branch
    %28 = sbr.rel (0) target = $region21
  $region20: #{dualfen_forward.4} parent=0 // pred_region
    _
  $region21: #{dualfen_forward.4} parent=0 // pred_fallthru
    _
  // Predicated region
  $region22: #{dualfen_forward.4} parent=0 // pred_check
    _
  $region23: #{dualfen_forward.4} parent=0 // pred_check_branch
    %30 = sbr.rel (0) target = $region25
  $region24: #{dualfen_forward.4} parent=0 // pred_region
    _
  $region25: #{dualfen_forward.4} parent=0 // pred_fallthru
    _
  // Predicated region
  $region26: #{dualfen_forward.4} parent=0 // pred_check
    _
  $region27: #{dualfen_forward.4} parent=0 // pred_check_branch
    %32 = sbr.rel (0) target = $region29
  $region28: #{dualfen_forward.4} parent=0 // pred_region
    _
  $region29: #{dualfen_forward.4} parent=0 // pred_fallthru
    _
  // Predicated region
  $region30: #{dualfen_forward.4} parent=0 // pred_check
    _
  $region31: #{dualfen_forward.4} parent=0 // pred_check_branch
    %34 = sbr.rel (0) target = $region33
  $region32: #{dualfen_forward.4} parent=0 // pred_region
    _
  $region33: #{dualfen_forward.4} parent=0 // pred_fallthru
    _
  // Predicated region
  $region34: #{dualfen_forward.4} parent=0 // pred_check
    _
  $region35: #{dualfen_forward.4} parent=0 // pred_check_branch
    %36 = sbr.rel (0) target = $region37
  $region36: #{dualfen_forward.4} parent=0 // pred_region
    _
  $region37: #{dualfen_forward.4} parent=0 // pred_fallthru
    _
  // Predicated region
  $region38: #{dualfen_forward.4} parent=0 // pred_check
    _
  $region39: #{dualfen_forward.4} parent=0 // pred_check_branch
    %38 = sbr.rel (0) target = $region41
  $region40: #{dualfen_forward.4} parent=0 // pred_region
    _
  $region41: #{dualfen_forward.4} parent=0 // pred_fallthru
    _
  // Predicated region
  $region42: #{dualfen_forward.4} parent=0 // pred_check
    _
  $region43: #{dualfen_forward.4} parent=0 // pred_check_branch
    %40 = sbr.rel (0) target = $region45
  $region44: #{dualfen_forward.4} parent=0 // pred_region
    _
  $region45: #{dualfen_forward.4} parent=0 // pred_fallthru
    _
  // Predicated region
  $region46: #{dualfen_forward.4} parent=0 // pred_check
    _
  $region47: #{dualfen_forward.4} parent=0 // pred_check_branch
    %42 = sbr.rel (0) target = $region49
  $region48: #{dualfen_forward.4} parent=0 // pred_region
    _
  $region49: #{dualfen_forward.4} parent=0 // pred_fallthru
    _
  // Predicated region
  $region50: #{dualfen_forward.4} parent=0 // pred_check
    _
  $region51: #{dualfen_forward.4} parent=0 // pred_check_branch
    %44 = sbr.rel (0) target = $region53
  $region52: #{dualfen_forward.4} parent=0 // pred_region
    _
  $region53: #{dualfen_forward.4} parent=0 // pred_fallthru
    _
  // Predicated region
  $region54: #{dualfen_forward.4} parent=0 // pred_check
    _
  $region55: #{dualfen_forward.4} parent=0 // pred_check_branch
    %46 = sbr.rel (0) target = $region57
  $region56: #{dualfen_forward.4} parent=0 // pred_region
    _
  $region57: #{dualfen_forward.4} parent=0 // pred_fallthru
    _
  %v48 = vld [vmem:[%s0] sm:$0xff]
  %v49 = vld [vmem:[%s1] sm:$0xff]
  %v50 = vld [vmem:[%s1 + $0x8] sm:$0xff]
  %v51 = vld [vmem:[%s1 + $0x10] sm:$0xff]
  %v52 = vld [vmem:[%s1 + $0x18] sm:$0xff]
  %v53 = vld [vmem:[%s1 + $0x20] sm:$0xff]
  %v54 = vld [vmem:[%s1 + $0x28] sm:$0xff]
  %v55 = vld [vmem:[%s1 + $0x30] sm:$0xff]
  %v56 = vld [vmem:[%s1 + $0x38] sm:$0xff]
  %v57 = vpack.c.bf16 %v48, %v48
  %v58 = vpack.c.bf16 %v50, %v49
  %v59 = vpack.c.bf16 %v52, %v51
  %v60 = vpack.c.bf16 %v54, %v53
  %v61 = vpack.c.bf16 %v56, %v55
  %v62 = vld [vmem:[%s2] sm:$0x1]
  %v64 = vlaneseq
  %v65 = vshrl.u32 %v64, 7
  %v66 = vsub.s32 0, %v65
  %v67 = vrot.slane %v62, %v66
  %vm69 = vcmask 523264
  %v71 = vsel %vm69, %v57, 0
  %73 = vmatprep.subr.bf16.mxu0 0
  %74 = vmatpush1.bf16.msra.mxu0 %v58
  %75 = vmatprep.subr.bf16.mxu0 0
  %76 = vmatpush1.bf16.msra.mxu0 %v59
  %77 = vmatprep.subr.bf16.mxu0 0
  %78 = vmatpush1.bf16.msra.mxu0 %v60
  %79 = vmatprep.subr.bf16.mxu0 0
  %80 = vmatpush1.bf16.msra.mxu0 %v61
  %81 = vmatprep.subr.bf16.mxu0 0
  %82 = vmatpush1.bf16.msra.mxu0 0
  %83 = vmatprep.subr.bf16.mxu0 0
  %84 = vmatpush1.bf16.msra.mxu0 0
  %85 = vmatprep.subr.bf16.mxu0 0
  %86 = vmatpush1.bf16.msra.mxu0 0
  %87 = vmatprep.subr.bf16.mxu0 0
  %88 = vmatpush1.bf16.msra.mxu0 0
  %89 = vmatprep.subr.bf16.mxu0 0
  %90 = vmatpush1.bf16.msra.mxu0 0
  %91 = vmatprep.subr.bf16.mxu0 0
  %92 = vmatpush1.bf16.msra.mxu0 0
  %93 = vmatprep.subr.bf16.mxu0 0
  %94 = vmatpush1.bf16.msra.mxu0 0
  %95 = vmatprep.subr.bf16.mxu0 0
  %96 = vmatpush1.bf16.msra.mxu0 0
  %97 = vmatprep.subr.bf16.mxu0 0
  %98 = vmatpush1.bf16.msra.mxu0 0
  %99 = vmatprep.subr.bf16.mxu0 0
  %100 = vmatpush1.bf16.msra.mxu0 0
  %101 = vmatprep.subr.bf16.mxu0 0
  %102 = vmatpush1.bf16.msra.mxu0 0
  %103 = vmatprep.subr.bf16.mxu0 0
  %104 = vmatpush1.bf16.msra.mxu0 0
  %105 = vmatprep.mubr.bf16.mxu0 0
  %106 = vmatmul.mubr.bf16.gmra.mrb[0].mxu0 %v71
  %v107 = vpop.f32.mrb[0].mxu0
  %v108 = vadd.f32 %v67, %v107
  %v109 = vpop.f32.mrb[0].mxu0
  %v110 = vpop.f32.mrb[0].mxu0
  %v111 = vpop.f32.mrb[0].mxu0
  %112 = vdwg.mxu0
  %vm113 = vcmask 261120
  %v114 = vsel %vm113, %v108, 0.0
  %v115 = vrot.slane %v114, 4
  %v116 = vadd.f32 %v114, %v115
  %v117 = vrot.slane %v116, 2
  %v118 = vadd.f32 %v116, %v117
  %v119 = vrot.slane %v118, 1
  %v120 = vadd.f32 %v118, %v119
  %v121 = vrcp.pop 8.0
  %v122 = vmul.f32 %v120, %v121
  %v123 = vsub.f32 %v108, %v122
  %v124 = vmul.f32 %v123, %v123
  %v125 = vsel %vm113, %v124, 0.0
  %v126 = vrot.slane %v125, 4
  %v127 = vadd.f32 %v125, %v126
  %v128 = vrot.slane %v127, 2
  %v129 = vadd.f32 %v127, %v128
  %v130 = vrot.slane %v129, 1
  %v131 = vadd.f32 %v129, %v130
  %v132 = vmul.f32 %v131, %v121
  %v133 = vld [vmem:[%s3] sm:$0x1]
  %v134 = vadd.f32 %v132, 1e-05
  %v135 = vrsqrt.pop %v134
  %v136 = vmul.f32 %v133, %v135
  %v137 = vld [vmem:[%s4] sm:$0x1]
  %v138 = vmul.f32 %v122, %v136
  %v139 = vsub.f32 %v137, %v138
  %v141 = vlaneseq
  %v142 = vshrl.u32 %v141, 7
  %v143 = vsub.s32 0, %v142
  %v144 = vrot.slane %v136, %v143
  %v146 = vmul.f32 %v108, %v144
  %v148 = vlaneseq
  %v149 = vshrl.u32 %v148, 7
  %v150 = vsub.s32 0, %v149
  %v151 = vrot.slane %v139, %v150
  %v153 = vadd.f32 %v146, %v151
  %v154 = vmax.f32 %v153, 0.0
  %v155 = vld [vmem:[%s5] sm:$0xff]
  %v156 = vld [vmem:[%s5 + $0x8] sm:$0xff]
  %v157 = vld [vmem:[%s5 + $0x10] sm:$0xff]
  %v158 = vld [vmem:[%s5 + $0x18] sm:$0xff]
  %v159 = vpack.c.bf16 %v154, %v154
  %v160 = vpack.c.bf16 %v156, %v155
  %v161 = vpack.c.bf16 %v158, %v157
  %v162 = vld [vmem:[%s6] sm:$0x1]
  %v164 = vlaneseq
  %v165 = vshrl.u32 %v164, 7
  %v166 = vsub.s32 0, %v165
  %v167 = vrot.slane %v162, %v166
  %v170 = vsel %vm113, %v159, 0
  %172 = vmatprep.subr.bf16.mxu0 0
  %173 = vmatpush1.bf16.msra.mxu0 %v160
  %174 = vmatprep.subr.bf16.mxu0 0
  %175 = vmatpush1.bf16.msra.mxu0 %v161
  %176 = vmatprep.subr.bf16.mxu0 0
  %177 = vmatpush1.bf16.msra.mxu0 0
  %178 = vmatprep.subr.bf16.mxu0 0
  %179 = vmatpush1.bf16.msra.mxu0 0
  %180 = vmatprep.subr.bf16.mxu0 0
  %181 = vmatpush1.bf16.msra.mxu0 0
  %182 = vmatprep.subr.bf16.mxu0 0
  %183 = vmatpush1.bf16.msra.mxu0 0
  %184 = vmatprep.subr.bf16.mxu0 0
  %185 = vmatpush1.bf16.msra.mxu0 0
  %186 = vmatprep.subr.bf16.mxu0 0
  %187 = vmatpush1.bf16.msra.mxu0 0
  %188 = vmatprep.subr.bf16.mxu0 0
  %189 = vmatpush1.bf16.msra.mxu0 0
  %190 = vmatprep.subr.bf16.mxu0 0
  %191 = vmatpush1.bf16.msra.mxu0 0
  %192 = vmatprep.subr.bf16.mxu0 0
  %193 = vmatpush1.bf16.msra.mxu0 0
  %194 = vmatprep.subr.bf16.mxu0 0
  %195 = vmatpush1.bf16.msra.mxu0 0
  %196 = vmatprep.subr.bf16.mxu0 0
  %197 = vmatpush1.bf16.msra.mxu0 0
  %198 = vmatprep.subr.bf16.mxu0 0
  %199 = vmatpush1.bf16.msra.mxu0 0
  %200 = vmatprep.subr.bf16.mxu0 0
  %201 = vmatpush1.bf16.msra.mxu0 0
  %202 = vmatprep.subr.bf16.mxu0 0
  %203 = vmatpush1.bf16.msra.mxu0 0
  %204 = vmatprep.mubr.bf16.mxu0 0
  %205 = vmatmul.mubr.bf16.gmra.mrb[0].mxu0 %v170
  %v206 = vpop.f32.mrb[0].mxu0
  %v207 = vadd.f32 %v167, %v206
  %v208 = vpop.f32.mrb[0].mxu0
  %v209 = vpop.f32.mrb[0].mxu0
  %v210 = vpop.f32.mrb[0].mxu0
  %211 = vdwg.mxu0
  %v212 = vsel %vm113, %v207, 0.0
  %v213 = vrot.slane %v212, 4
  %v214 = vadd.f32 %v212, %v213
  %v215 = vrot.slane %v214, 2
  %v216 = vadd.f32 %v214, %v215
  %v217 = vrot.slane %v216, 1
  %v218 = vadd.f32 %v216, %v217
  %v219 = vmul.f32 %v218, %v121
  %v220 = vsub.f32 %v207, %v219
  %v221 = vmul.f32 %v220, %v220
  %v222 = vsel %vm113, %v221, 0.0
  %v223 = vrot.slane %v222, 4
  %v224 = vadd.f32 %v222, %v223
  %v225 = vrot.slane %v224, 2
  %v226 = vadd.f32 %v224, %v225
  %v227 = vrot.slane %v226, 1
  %v228 = vadd.f32 %v226, %v227
  %v229 = vmul.f32 %v228, %v121
  %v230 = vld [vmem:[%s7] sm:$0x1]
  %v231 = vadd.f32 %v229, 1e-05
  %v232 = vrsqrt.pop %v231
  %v233 = vmul.f32 %v230, %v232
  %v234 = vld [vmem:[%s8] sm:$0x1]
  %v235 = vmul.f32 %v219, %v233
  %v236 = vsub.f32 %v234, %v235
  %v238 = vlaneseq
  %v239 = vshrl.u32 %v238, 7
  %v240 = vsub.s32 0, %v239
  %v241 = vrot.slane %v233, %v240
  %v243 = vmul.f32 %v207, %v241
  %v245 = vlaneseq
  %v246 = vshrl.u32 %v245, 7
  %v247 = vsub.s32 0, %v246
  %v248 = vrot.slane %v236, %v247
  %v250 = vadd.f32 %v243, %v248
  %v251 = vmax.f32 %v250, 0.0
  %v252 = vld [vmem:[%s9] sm:$0xff]
  %v253 = vld [vmem:[%s9 + $0x8] sm:$0xff]
  %v254 = vld [vmem:[%s9 + $0x10] sm:$0xff]
  %v255 = vld [vmem:[%s9 + $0x18] sm:$0xff]
  %v256 = vpack.c.bf16 %v251, %v251
  %v257 = vpack.c.bf16 %v253, %v252
  %v258 = vpack.c.bf16 %v255, %v254
  %v259 = vld [vmem:[%s10] sm:$0x1]
  %v261 = vlaneseq
  %v262 = vshrl.u32 %v261, 7
  %v263 = vsub.s32 0, %v262
  %v264 = vrot.slane %v259, %v263
  %v267 = vsel %vm113, %v256, 0
  %269 = vmatprep.subr.bf16.mxu0 0
  %270 = vmatpush1.bf16.msra.mxu0 %v257
  %271 = vmatprep.subr.bf16.mxu0 0
  %272 = vmatpush1.bf16.msra.mxu0 %v258
  %273 = vmatprep.subr.bf16.mxu0 0
  %274 = vmatpush1.bf16.msra.mxu0 0
  %275 = vmatprep.subr.bf16.mxu0 0
  %276 = vmatpush1.bf16.msra.mxu0 0
  %277 = vmatprep.subr.bf16.mxu0 0
  %278 = vmatpush1.bf16.msra.mxu0 0
  %279 = vmatprep.subr.bf16.mxu0 0
  %280 = vmatpush1.bf16.msra.mxu0 0
  %281 = vmatprep.subr.bf16.mxu0 0
  %282 = vmatpush1.bf16.msra.mxu0 0
  %283 = vmatprep.subr.bf16.mxu0 0
  %284 = vmatpush1.bf16.msra.mxu0 0
  %285 = vmatprep.subr.bf16.mxu0 0
  %286 = vmatpush1.bf16.msra.mxu0 0
  %287 = vmatprep.subr.bf16.mxu0 0
  %288 = vmatpush1.bf16.msra.mxu0 0
  %289 = vmatprep.subr.bf16.mxu0 0
  %290 = vmatpush1.bf16.msra.mxu0 0
  %291 = vmatprep.subr.bf16.mxu0 0
  %292 = vmatpush1.bf16.msra.mxu0 0
  %293 = vmatprep.subr.bf16.mxu0 0
  %294 = vmatpush1.bf16.msra.mxu0 0
  %295 = vmatprep.subr.bf16.mxu0 0
  %296 = vmatpush1.bf16.msra.mxu0 0
  %297 = vmatprep.subr.bf16.mxu0 0
  %298 = vmatpush1.bf16.msra.mxu0 0
  %299 = vmatprep.subr.bf16.mxu0 0
  %300 = vmatpush1.bf16.msra.mxu0 0
  %301 = vmatprep.mubr.bf16.mxu0 0
  %302 = vmatmul.mubr.bf16.gmra.mrb[0].mxu0 %v267
  %v303 = vpop.f32.mrb[0].mxu0
  %v304 = vadd.f32 %v264, %v303
  %v305 = vpop.f32.mrb[0].mxu0
  %v306 = vpop.f32.mrb[0].mxu0
  %v307 = vpop.f32.mrb[0].mxu0
  %308 = vdwg.mxu0
  %v309 = vsel %vm113, %v304, 0.0
  %v310 = vrot.slane %v309, 4
  %v311 = vadd.f32 %v309, %v310
  %v312 = vrot.slane %v311, 2
  %v313 = vadd.f32 %v311, %v312
  %v314 = vrot.slane %v313, 1
  %v315 = vadd.f32 %v313, %v314
  %v316 = vmul.f32 %v315, %v121
  %v317 = vsub.f32 %v304, %v316
  %v318 = vmul.f32 %v317, %v317
  %v319 = vsel %vm113, %v318, 0.0
  %v320 = vrot.slane %v319, 4
  %v321 = vadd.f32 %v319, %v320
  %v322 = vrot.slane %v321, 2
  %v323 = vadd.f32 %v321, %v322
  %v324 = vrot.slane %v323, 1
  %v325 = vadd.f32 %v323, %v324
  %v326 = vmul.f32 %v325, %v121
  %v327 = vld [vmem:[%s11] sm:$0x1]
  %v328 = vadd.f32 %v326, 1e-05
  %v329 = vrsqrt.pop %v328
  %v330 = vmul.f32 %v327, %v329
  %v331 = vld [vmem:[%s12] sm:$0x1]
  %v332 = vmul.f32 %v316, %v330
  %v333 = vsub.f32 %v331, %v332
  %v335 = vlaneseq
  %v336 = vshrl.u32 %v335, 7
  %v337 = vsub.s32 0, %v336
  %v338 = vrot.slane %v330, %v337
  %v340 = vmul.f32 %v304, %v338
  %v342 = vlaneseq
  %v343 = vshrl.u32 %v342, 7
  %v344 = vsub.s32 0, %v343
  %v345 = vrot.slane %v333, %v344
  %v347 = vadd.f32 %v340, %v345
  %v348 = vmax.f32 %v347, 0.0
  %v349 = vld [vmem:[%s13] sm:$0xff]
  %v350 = vld [vmem:[%s13 + $0x8] sm:$0xff]
  %v351 = vld [vmem:[%s13 + $0x10] sm:$0xff]
  %v352 = vld [vmem:[%s13 + $0x18] sm:$0xff]
  %v353 = vpack.c.bf16 %v348, %v348
  %v354 = vpack.c.bf16 %v350, %v349
  %v355 = vpack.c.bf16 %v352, %v351
  %v357 = vsel %vm113, %v353, 0
  %359 = vmatprep.subr.bf16.mxu0 0
  %360 = vmatpush1.bf16.msra.mxu0 %v354
  %361 = vmatprep.subr.bf16.mxu0 0
  %362 = vmatpush1.bf16.msra.mxu0 %v355
  %363 = vmatprep.subr.bf16.mxu0 0
  %364 = vmatpush1.bf16.msra.mxu0 0
  %365 = vmatprep.subr.bf16.mxu0 0
  %366 = vmatpush1.bf16.msra.mxu0 0
  %367 = vmatprep.subr.bf16.mxu0 0
  %368 = vmatpush1.bf16.msra.mxu0 0
  %369 = vmatprep.subr.bf16.mxu0 0
  %370 = vmatpush1.bf16.msra.mxu0 0
  %371 = vmatprep.subr.bf16.mxu0 0
  %372 = vmatpush1.bf16.msra.mxu0 0
  %373 = vmatprep.subr.bf16.mxu0 0
  %374 = vmatpush1.bf16.msra.mxu0 0
  %375 = vmatprep.subr.bf16.mxu0 0
  %376 = vmatpush1.bf16.msra.mxu0 0
  %377 = vmatprep.subr.bf16.mxu0 0
  %378 = vmatpush1.bf16.msra.mxu0 0
  %379 = vmatprep.subr.bf16.mxu0 0
  %380 = vmatpush1.bf16.msra.mxu0 0
  %381 = vmatprep.subr.bf16.mxu0 0
  %382 = vmatpush1.bf16.msra.mxu0 0
  %383 = vmatprep.subr.bf16.mxu0 0
  %384 = vmatpush1.bf16.msra.mxu0 0
  %385 = vmatprep.subr.bf16.mxu0 0
  %386 = vmatpush1.bf16.msra.mxu0 0
  %387 = vmatprep.subr.bf16.mxu0 0
  %388 = vmatpush1.bf16.msra.mxu0 0
  %389 = vmatprep.subr.bf16.mxu0 0
  %390 = vmatpush1.bf16.msra.mxu0 0
  %391 = vmatprep.mubr.bf16.mxu0 0
  %392 = vmatmul.mubr.bf16.gmra.mrb[0].mxu0 %v357
  %v393 = vpop.f32.mrb[0].mxu0
  %v394 = vadd.f32 0.0, %v393
  %v395 = vpop.f32.mrb[0].mxu0
  %v396 = vpop.f32.mrb[0].mxu0
  %v397 = vpop.f32.mrb[0].mxu0
  %398 = vdwg.mxu0
  %vm399 = vcmask 31744
  %400 = vst.msk [vmem:[%s14] sm:$0xff] %vm399, %v394
  // Predicated region
  $region58: #{dualfen_forward.4} parent=0 // pred_check
    _
  $region59: #{dualfen_forward.4} parent=0 // pred_check_branch
    %402 = sbr.rel (0) target = $region61
  $region60: #{dualfen_forward.4} parent=0 // pred_region
    _
  $region61: #{dualfen_forward.4} parent=0 // pred_fallthru
    _
  // Predicated region
  $region62: #{dualfen_forward.4} parent=0 // pred_check
    _
  $region63: #{dualfen_forward.4} parent=0 // pred_check_branch
    %404 = sbr.rel (0) target = $region65
  $region64: #{dualfen_forward.4} parent=0 // pred_region
    _
  $region65: #{dualfen_forward.4} parent=0 // pred_fallthru
    _

// kernel: dualfen_forward.7
$region0: #{dualfen_forward.7}
  #allocation0 [shape = 'u32[]', space=smem, size = 0x4, offset = 0x4, fixed_abs, tag = 'smem constant byte address 0x4 - core index']
  #allocation1 [shape = 'u32[144,128]{1,0:T(1,128)}', space=vmem, size = 0x12000, scoped, tag = 'internal scratch']
  %s0 = inlined_call_operand.vmem [shape: f32[8,256], index: 0, kind: input, shape index: {}]
  %s1 = inlined_call_operand.vmem [shape: f32[256,4], index: 1, kind: input, shape index: {}]
  %s2 = inlined_call_operand.vmem [shape: f32[8,4], index: 2, kind: input, shape index: {}]
  %s3 = inlined_call_operand.vmem [shape: f32[8,64], index: 3, kind: input, shape index: {}]
  %s4 = inlined_call_operand.vmem [shape: f32[4,64], index: 4, kind: input, shape index: {}]
  %s5 = inlined_call_operand.vmem [shape: f32[8,4], index: 5, kind: output, shape index: {0}]
  %s6 = inlined_call_operand.vmem [shape: f32[8,64], index: 6, kind: output, shape index: {1}]
  %7 = xla_tuple %s5, %s6
  %s8 = sld [smem:[#allocation0]]
  $region38: #{dualfen_forward.7} parent=0
    _
  %s10 = ssub.s32 1, %s8
  %s11 = scalar_select 0, %s10, %s8
  // Predicated region
  $region2: #{dualfen_forward.7} parent=0 // pred_check
    _
  $region3: #{dualfen_forward.7} parent=0 // pred_check_branch
    %13 = sbr.rel (0) target = $region5
  $region4: #{dualfen_forward.7} parent=0 // pred_region
    _
  $region5: #{dualfen_forward.7} parent=0 // pred_fallthru
    _
  // Predicated region
  $region6: #{dualfen_forward.7} parent=0 // pred_check
    _
  $region7: #{dualfen_forward.7} parent=0 // pred_check_branch
    %15 = sbr.rel (0) target = $region9
  $region8: #{dualfen_forward.7} parent=0 // pred_region
    _
  $region9: #{dualfen_forward.7} parent=0 // pred_fallthru
    _
  // Predicated region
  $region10: #{dualfen_forward.7} parent=0 // pred_check
    _
  $region11: #{dualfen_forward.7} parent=0 // pred_check_branch
    %17 = sbr.rel (0) target = $region13
  $region12: #{dualfen_forward.7} parent=0 // pred_region
    _
  $region13: #{dualfen_forward.7} parent=0 // pred_fallthru
    _
  // Predicated region
  $region14: #{dualfen_forward.7} parent=0 // pred_check
    _
  $region15: #{dualfen_forward.7} parent=0 // pred_check_branch
    %19 = sbr.rel (0) target = $region17
  $region16: #{dualfen_forward.7} parent=0 // pred_region
    _
  $region17: #{dualfen_forward.7} parent=0 // pred_fallthru
    _
  // Predicated region
  $region18: #{dualfen_forward.7} parent=0 // pred_check
    _
  $region19: #{dualfen_forward.7} parent=0 // pred_check_branch
    %21 = sbr.rel (0) target = $region21
  $region20: #{dualfen_forward.7} parent=0 // pred_region
    _
  $region21: #{dualfen_forward.7} parent=0 // pred_fallthru
    _
  %v23 = vld [vmem:[%s0] sm:$0xff]
  %v24 = vld [vmem:[%s0 + $0x8] sm:$0xff]
  %v25 = vld [vmem:[%s1] sm:$0xff]
  %v26 = vld [vmem:[%s1 + $0x8] sm:$0xff]
  %v27 = vld [vmem:[%s1 + $0x10] sm:$0xff]
  %v28 = vld [vmem:[%s1 + $0x18] sm:$0xff]
  %v29 = vld [vmem:[%s1 + $0x20] sm:$0xff]
  %v30 = vld [vmem:[%s1 + $0x28] sm:$0xff]
  %v31 = vld [vmem:[%s1 + $0x30] sm:$0xff]
  %v32 = vld [vmem:[%s1 + $0x38] sm:$0xff]
  %v33 = vld [vmem:[%s1 + $0x40] sm:$0xff]
  %v34 = vld [vmem:[%s1 + $0x48] sm:$0xff]
  %v35 = vld [vmem:[%s1 + $0x50] sm:$0xff]
  %v36 = vld [vmem:[%s1 + $0x58] sm:$0xff]
  %v37 = vld [vmem:[%s1 + $0x60] sm:$0xff]
  %v38 = vld [vmem:[%s1 + $0x68] sm:$0xff]
  %v39 = vld [vmem:[%s1 + $0x70] sm:$0xff]
  %v40 = vld [vmem:[%s1 + $0x78] sm:$0xff]
  %v41 = vld [vmem:[%s1 + $0x80] sm:$0xff]
  %v42 = vld [vmem:[%s1 + $0x88] sm:$0xff]
  %v43 = vld [vmem:[%s1 + $0x90] sm:$0xff]
  %v44 = vld [vmem:[%s1 + $0x98] sm:$0xff]
  %v45 = vld [vmem:[%s1 + $0xa0] sm:$0xff]
  %v46 = vld [vmem:[%s1 + $0xa8] sm:$0xff]
  %v47 = vld [vmem:[%s1 + $0xb0] sm:$0xff]
  %v48 = vld [vmem:[%s1 + $0xb8] sm:$0xff]
  %v49 = vld [vmem:[%s1 + $0xc0] sm:$0xff]
  %v50 = vld [vmem:[%s1 + $0xc8] sm:$0xff]
  %v51 = vld [vmem:[%s1 + $0xd0] sm:$0xff]
  %v52 = vld [vmem:[%s1 + $0xd8] sm:$0xff]
  %v53 = vld [vmem:[%s1 + $0xe0] sm:$0xff]
  %v54 = vld [vmem:[%s1 + $0xe8] sm:$0xff]
  %v55 = vld [vmem:[%s1 + $0xf0] sm:$0xff]
  %v56 = vld [vmem:[%s1 + $0xf8] sm:$0xff]
  %v57 = vpack.c.bf16 %v23, %v23
  %v58 = vpack.c.bf16 %v24, %v24
  %v59 = vpack.c.bf16 %v26, %v25
  %v60 = vpack.c.bf16 %v28, %v27
  %v61 = vpack.c.bf16 %v30, %v29
  %v62 = vpack.c.bf16 %v32, %v31
  %v63 = vpack.c.bf16 %v34, %v33
  %v64 = vpack.c.bf16 %v36, %v35
  %v65 = vpack.c.bf16 %v38, %v37
  %v66 = vpack.c.bf16 %v40, %v39
  %v67 = vpack.c.bf16 %v42, %v41
  %v68 = vpack.c.bf16 %v44, %v43
  %v69 = vpack.c.bf16 %v46, %v45
  %v70 = vpack.c.bf16 %v48, %v47
  %v71 = vpack.c.bf16 %v50, %v49
  %v72 = vpack.c.bf16 %v52, %v51
  %v73 = vpack.c.bf16 %v54, %v53
  %v74 = vpack.c.bf16 %v56, %v55
  %75 = vmatprep.subr.bf16.mxu0 0
  %76 = vmatpush1.bf16.msra.mxu0 %v59
  %77 = vmatprep.subr.bf16.mxu0 0
  %78 = vmatpush1.bf16.msra.mxu0 %v60
  %79 = vmatprep.subr.bf16.mxu0 0
  %80 = vmatpush1.bf16.msra.mxu0 %v61
  %81 = vmatprep.subr.bf16.mxu0 0
  %82 = vmatpush1.bf16.msra.mxu0 %v62
  %83 = vmatprep.subr.bf16.mxu0 0
  %84 = vmatpush1.bf16.msra.mxu0 %v63
  %85 = vmatprep.subr.bf16.mxu0 0
  %86 = vmatpush1.bf16.msra.mxu0 %v64
  %87 = vmatprep.subr.bf16.mxu0 0
  %88 = vmatpush1.bf16.msra.mxu0 %v65
  %89 = vmatprep.subr.bf16.mxu0 0
  %90 = vmatpush1.bf16.msra.mxu0 %v66
  %91 = vmatprep.subr.bf16.mxu0 0
  %92 = vmatpush1.bf16.msra.mxu0 %v67
  %93 = vmatprep.subr.bf16.mxu0 0
  %94 = vmatpush1.bf16.msra.mxu0 %v68
  %95 = vmatprep.subr.bf16.mxu0 0
  %96 = vmatpush1.bf16.msra.mxu0 %v69
  %97 = vmatprep.subr.bf16.mxu0 0
  %98 = vmatpush1.bf16.msra.mxu0 %v70
  %99 = vmatprep.subr.bf16.mxu0 0
  %100 = vmatpush1.bf16.msra.mxu0 %v71
  %101 = vmatprep.subr.bf16.mxu0 0
  %102 = vmatpush1.bf16.msra.mxu0 %v72
  %103 = vmatprep.subr.bf16.mxu0 0
  %104 = vmatpush1.bf16.msra.mxu0 %v73
  %105 = vmatprep.subr.bf16.mxu0 0
  %106 = vmatpush1.bf16.msra.mxu0 %v74
  %107 = vmatprep.mubr.bf16.mxu0 %v58
  %108 = vmatmul.mubr.bf16.gmra.mrb[0].mxu0 %v57
  %v109 = vpop.f32.mrb[0].mxu0
  %v110 = vadd.f32 0.0, %v109
  %v111 = vpop.f32.mrb[0].mxu0
  %v112 = vpop.f32.mrb[0].mxu0
  %v113 = vpop.f32.mrb[0].mxu0
  %114 = vdwg.mxu0
  %v115 = vld [vmem:[%s2] sm:$0xff]
  %v116 = vadd.f32 %v115, %v110
  %vm117 = vcmask 31744
  %118 = vst.msk [vmem:[%s5] sm:$0xff] %vm117, %v116
  %v119 = vld [vmem:[%s4] sm:$0xf]
  %v121 = vsel %vm117, %v116, 0
  %vm123 = vcmask 1043456
  %v125 = vsel %vm123, %v119, 0
  %127 = vmatprep.subr.mxu0 0.0
  %128 = vmatpush1.msra.mxu0 %v125
  %129 = vmatprep.subr.mxu0 0.0
  %130 = vmatpush1.msra.mxu0 0.0
  %131 = vmatprep.subr.mxu0 0.0
  %132 = vmatpush1.msra.mxu0 0.0
  %133 = vmatprep.subr.mxu0 0.0
  %134 = vmatpush1.msra.mxu0 0.0
  %135 = vmatprep.subr.mxu0 0.0
  %136 = vmatpush1.msra.mxu0 0.0
  %137 = vmatprep.subr.mxu0 0.0
  %138 = vmatpush1.msra.mxu0 0.0
  %139 = vmatprep.subr.mxu0 0.0
  %140 = vmatpush1.msra.mxu0 0.0
  %141 = vmatprep.subr.mxu0 0.0
  %142 = vmatpush1.msra.mxu0 0.0
  %143 = vmatprep.subr.mxu0 0.0
  %144 = vmatpush1.msra.mxu0 0.0
  %145 = vmatprep.subr.mxu0 0.0
  %146 = vmatpush1.msra.mxu0 0.0
  %147 = vmatprep.subr.mxu0 0.0
  %148 = vmatpush1.msra.mxu0 0.0
  %149 = vmatprep.subr.mxu0 0.0
  %150 = vmatpush1.msra.mxu0 0.0
  %151 = vmatprep.subr.mxu0 0.0
  %152 = vmatpush1.msra.mxu0 0.0
  %153 = vmatprep.subr.mxu0 0.0
  %154 = vmatpush1.msra.mxu0 0.0
  %155 = vmatprep.subr.mxu0 0.0
  %156 = vmatpush1.msra.mxu0 0.0
  %157 = vmatprep.subr.mxu0 0.0
  %158 = vmatpush1.msra.mxu0 0.0
  %159 = vmatprep.subr.mxu0 0.0
  %160 = vmatpush1.msra.mxu0 0.0
  %161 = vmatprep.subr.mxu0 0.0
  %162 = vmatpush1.msra.mxu0 0.0
  %163 = vmatprep.subr.mxu0 0.0
  %164 = vmatpush1.msra.mxu0 0.0
  %165 = vmatprep.subr.mxu0 0.0
  %166 = vmatpush1.msra.mxu0 0.0
  %167 = vmatprep.subr.mxu0 0.0
  %168 = vmatpush1.msra.mxu0 0.0
  %169 = vmatprep.subr.mxu0 0.0
  %170 = vmatpush1.msra.mxu0 0.0
  %171 = vmatprep.subr.mxu0 0.0
  %172 = vmatpush1.msra.mxu0 0.0
  %173 = vmatprep.subr.mxu0 0.0
  %174 = vmatpush1.msra.mxu0 0.0
  %175 = vmatprep.subr.mxu0 0.0
  %176 = vmatpush1.msra.mxu0 0.0
  %177 = vmatprep.subr.mxu0 0.0
  %178 = vmatpush1.msra.mxu0 0.0
  %179 = vmatprep.subr.mxu0 0.0
  %180 = vmatpush1.msra.mxu0 0.0
  %181 = vmatprep.subr.mxu0 0.0
  %182 = vmatpush1.msra.mxu0 0.0
  %183 = vmatprep.subr.mxu0 0.0
  %184 = vmatpush1.msra.mxu0 0.0
  %185 = vmatprep.subr.mxu0 0.0
  %186 = vmatpush1.msra.mxu0 0.0
  %187 = vmatprep.subr.mxu0 0.0
  %188 = vmatpush1.msra.mxu0 0.0
  %189 = vmatprep.subr.mxu0 0.0
  %190 = vmatpush1.msra.mxu0 0.0
  %191 = vmatprep.mubr.f32.mxu0 0.0
  %192 = vmatmul.mubr.f32.gmra.mrb[0].mxu0 %v121
  %v193 = vpop.f32.mrb[0].mxu0
  %v194 = vadd.f32 0.0, %v193
  %v195 = vpop.f32.mrb[0].mxu0
  %196 = vdwg.mxu0
  %v197 = vld [vmem:[%s3] sm:$0xff]
  %v198 = vmul.f32 %v197, %v194
  %vm199 = vcmask 523264
  %200 = vst.msk [vmem:[%s6] sm:$0xff] %vm199, %v198
  // Predicated region
  $region22: #{dualfen_forward.7} parent=0 // pred_check
    _
  $region23: #{dualfen_forward.7} parent=0 // pred_check_branch
    %202 = sbr.rel (0) target = $region25
  $region24: #{dualfen_forward.7} parent=0 // pred_region
    _
  $region25: #{dualfen_forward.7} parent=0 // pred_fallthru
    _
  // Predicated region
  $region26: #{dualfen_forward.7} parent=0 // pred_check
    _
  $region27: #{dualfen_forward.7} parent=0 // pred_check_branch
    %204 = sbr.rel (0) target = $region29
  $region28: #{dualfen_forward.7} parent=0 // pred_region
    _
  $region29: #{dualfen_forward.7} parent=0 // pred_fallthru
    _
  // Predicated region
  $region30: #{dualfen_forward.7} parent=0 // pred_check
    _
  $region31: #{dualfen_forward.7} parent=0 // pred_check_branch
    %206 = sbr.rel (0) target = $region33
  $region32: #{dualfen_forward.7} parent=0 // pred_region
    _
  $region33: #{dualfen_forward.7} parent=0 // pred_fallthru
    _
  // Predicated region
  $region34: #{dualfen_forward.7} parent=0 // pred_check
    _
  $region35: #{dualfen_forward.7} parent=0 // pred_check_branch
    %208 = sbr.rel (0) target = $region37
  $region36: #{dualfen_forward.7} parent=0 // pred_region
    _
  $region37: #{dualfen_forward.7} parent=0 // pred_fallthru
    _

</llo_original>
